<compile_context>
chip_gen: v6e
topology: v6e:2x2x1
jax: 0.10.0
libtpu: 0.0.40
codegen_flags: <defaults>
</compile_context>

<pallas_src>
import functools

import jax
import jax.numpy as jnp
from jax import lax
from jax.experimental import pallas as pl
from jax.experimental.pallas import tpu as pltpu

# ----------------------------- problem sizes -----------------------------
T, S, B = 8, 8, 2        # tgt len, src len, batch
E, H = 32, 4             # decoder embed dim, attention heads
D = E // H               # head dim
FFN = 64                 # decoder ffn embed dim
EPS = 1e-5               # LayerNorm eps (fairseq LayerNorm default)


def _full_spec(shape):
    """Whole-array block (satisfies (8,128) rule because block == array)."""
    nd = len(shape)
    return pl.BlockSpec(shape, lambda i, _nd=nd: (0,) * _nd)


# ------------------------------ fused kernel ------------------------------

def _layer_norm(y, g, b):
    mean = jnp.mean(y, axis=-1, keepdims=True)
    c = y - mean
    var = jnp.mean(c * c, axis=-1, keepdims=True)
    return c * lax.rsqrt(var + EPS) * g + b


def _softmax_rows(s):
    m = jnp.max(s, axis=-1, keepdims=True)
    e = jnp.exp(s - m)
    # approx reciprocal -> EUP slot (otherwise idle), frees VALU.
    return e * pl.reciprocal(jnp.sum(e, axis=-1, keepdims=True), approx=True)


def _fused_layer_kernel(
    # inputs
    x_ref, enc_ref,
    sa_wqkv_ref, sa_bqkv_ref, sa_wo_ref, sa_bo_ref, sa_g_ref, sa_b_ref,
    ea_wq_ref, ea_bq_ref, ea_wkv_ref, ea_bkv_ref, ea_wo_ref, ea_bo_ref,
    ea_g_ref, ea_b_ref,
    fc1_w_ref, fc1_b_ref, fc2_w_ref, fc2_b_ref, fin_g_ref, fin_b_ref,
    # outputs
    out_ref, attn_ref,
    # scratch
    ctx_scr,
    *, n_tgt, n_src, n_batch, n_heads, d_head,
):
    e_dim = n_heads * d_head
    scale = d_head ** -0.5

    x = x_ref[...]       # (B*T, E), batch-major rows (row = b*T + t)
    enc = enc_ref[...]   # (B*S, E), batch-major rows (row = b*S + s)

    # ------------------------- self-attention -------------------------
    residual = x
    qkv = jnp.dot(x, sa_wqkv_ref[...],
                  preferred_element_type=jnp.float32) + sa_bqkv_ref[...]
    for b in range(n_batch):                    # static unroll (tiny sizes)
        r0 = b * n_tgt
        for h in range(n_heads):
            c0 = h * d_head
            q = qkv[r0:r0 + n_tgt, c0:c0 + d_head] * scale
            k = qkv[r0:r0 + n_tgt, e_dim + c0:e_dim + c0 + d_head]
            v = qkv[r0:r0 + n_tgt, 2 * e_dim + c0:2 * e_dim + c0 + d_head]
            s = lax.dot_general(q, k, (((1,), (1,)), ((), ())),
                                preferred_element_type=jnp.float32)
            p = _softmax_rows(s)                # probs not needed -> not stored
            ctx_scr[r0:r0 + n_tgt, c0:c0 + d_head] = jnp.dot(
                p, v, preferred_element_type=jnp.float32)
    y = jnp.dot(ctx_scr[...], sa_wo_ref[...],
                preferred_element_type=jnp.float32) + sa_bo_ref[...]
    x = _layer_norm(y + residual, sa_g_ref[...], sa_b_ref[...])

    # ------------------------ encoder attention ------------------------
    residual = x
    q_all = jnp.dot(x, ea_wq_ref[...],
                    preferred_element_type=jnp.float32) + ea_bq_ref[...]
    kv_all = jnp.dot(enc, ea_wkv_ref[...],
                     preferred_element_type=jnp.float32) + ea_bkv_ref[...]
    inv_h = 1.0 / n_heads
    for b in range(n_batch):
        rq = b * n_tgt
        rk = b * n_src
        p_sum = jnp.zeros((n_tgt, n_src), jnp.float32)
        for h in range(n_heads):
            c0 = h * d_head
            q = q_all[rq:rq + n_tgt, c0:c0 + d_head] * scale
            k = kv_all[rk:rk + n_src, c0:c0 + d_head]
            v = kv_all[rk:rk + n_src, e_dim + c0:e_dim + c0 + d_head]
            s = lax.dot_general(q, k, (((1,), (1,)), ((), ())),
                                preferred_element_type=jnp.float32)
            p = _softmax_rows(s)
            p_sum = p_sum + p
            ctx_scr[rq:rq + n_tgt, c0:c0 + d_head] = jnp.dot(
                p, v, preferred_element_type=jnp.float32)
        attn_ref[rq:rq + n_tgt, :] = p_sum * inv_h   # head-mean computed in-kernel
    y = jnp.dot(ctx_scr[...], ea_wo_ref[...],
                preferred_element_type=jnp.float32) + ea_bo_ref[...]
    x = _layer_norm(y + residual, ea_g_ref[...], ea_b_ref[...])

    # --------------------------- feed-forward ---------------------------
    residual = x
    h1 = jnp.maximum(
        jnp.dot(x, fc1_w_ref[...], preferred_element_type=jnp.float32)
        + fc1_b_ref[...], 0.0)
    y = jnp.dot(h1, fc2_w_ref[...],
                preferred_element_type=jnp.float32) + fc2_b_ref[...]
    out_ref[...] = _layer_norm(y + residual, fin_g_ref[...], fin_b_ref[...])


# --------------------------- module-level glue ---------------------------

def decoder_layer_forward(x, encoder_out, params):
    """Returns (x_out, attn, None) like the PyTorch module (post-norm path)."""
    t, bsz, e = x.shape
    s = encoder_out.shape[0]
    n_heads = H
    d_head = e // n_heads

    # fairseq layout (L, B, E) -> batch-major 2-D slabs for the kernel.
    xb = jnp.transpose(x, (1, 0, 2)).reshape(bsz * t, e)
    encb = jnp.transpose(encoder_out, (1, 0, 2)).reshape(bsz * s, e)

    sa = params["self_attn"]
    ea = params["enc_attn"]
    sa_wqkv = jnp.concatenate([sa["wq"], sa["wk"], sa["wv"]], axis=1)  # (E,3E)
    sa_bqkv = jnp.concatenate([sa["bq"], sa["bk"], sa["bv"]], axis=1)  # (1,3E)
    ea_wkv = jnp.concatenate([ea["wk"], ea["wv"]], axis=1)             # (E,2E)
    ea_bkv = jnp.concatenate([ea["bk"], ea["bv"]], axis=1)             # (1,2E)

    args = (
        xb, encb,
        sa_wqkv, sa_bqkv, sa["wo"], sa["bo"],
        params["self_ln_g"], params["self_ln_b"],
        ea["wq"], ea["bq"], ea_wkv, ea_bkv, ea["wo"], ea["bo"],
        params["enc_ln_g"], params["enc_ln_b"],
        params["fc1_w"], params["fc1_b"], params["fc2_w"], params["fc2_b"],
        params["final_ln_g"], params["final_ln_b"],
    )

    kernel = functools.partial(
        _fused_layer_kernel,
        n_tgt=t, n_src=s, n_batch=bsz, n_heads=n_heads, d_head=d_head)

    # TODO(synk): at real sizes, add a parallel grid axis over row tiles /
    # (B*H) with flash-style online softmax (v7x megacore + 64 MiB VMEM) and
    # bf16 weights; at this toy size everything fits in one VMEM-resident call.
    out2d, attn2d = pl.pallas_call(
        kernel,
        grid=(1,),
        in_specs=[_full_spec(a.shape) for a in args],
        out_specs=[_full_spec((bsz * t, e)), _full_spec((bsz * t, s))],
        out_shape=[jax.ShapeDtypeStruct((bsz * t, e), jnp.float32),
                   jax.ShapeDtypeStruct((bsz * t, s), jnp.float32)],
        scratch_shapes=[pltpu.VMEM((bsz * t, e), jnp.float32)],
        compiler_params=pltpu.CompilerParams(
            dimension_semantics=("arbitrary",)),
    )(*args)

    x_out = out2d.reshape(bsz, t, e).transpose(1, 0, 2)   # back to (T, B, E)
    attn = attn2d.reshape(bsz, t, s)                      # (B, T, S)
    # TODO(synk): incremental_state / prev_*_attn_state caching and attention
    # masks are not modeled (not used in this eval configuration).
    return x_out, attn, None


# --------------------------- parameter init ---------------------------

def init_params(key):
    keys = iter(jax.random.split(key, 32))

    def lin(din, dout):
        w = jax.random.normal(next(keys), (din, dout), jnp.float32) * (din ** -0.5)
        b = jax.random.normal(next(keys), (1, dout), jnp.float32) * 0.02
        return w, b

    def attn_params(kdim):
        p = {}
        p["wq"], p["bq"] = lin(E, E)
        p["wk"], p["bk"] = lin(kdim, E)
        p["wv"], p["bv"] = lin(kdim, E)
        p["wo"], p["bo"] = lin(E, E)
        return p

    params = {
        "self_attn": attn_params(E),
        "enc_attn": attn_params(E),   # encoder embed dim == E here
    }
    params["fc1_w"], params["fc1_b"] = lin(E, FFN)
    params["fc2_w"], params["fc2_b"] = lin(FFN, E)
    for name in ("self", "enc", "final"):
        params[f"{name}_ln_g"] = jnp.ones((1, E), jnp.float32)
        params[f"{name}_ln_b"] = jnp.zeros((1, E), jnp.float32)
    return params


# --------------------------- pure-JAX reference ---------------------------

def ref_forward(x, encoder_out, params):
    def ln(y, g, b):
        mean = y.mean(-1, keepdims=True)
        var = ((y - mean) ** 2).mean(-1, keepdims=True)
        return (y - mean) * jax.lax.rsqrt(var + EPS) * g[0] + b[0]

    def mha(query, key, value, p):
        tq, bsz, e = query.shape
        sk = key.shape[0]
        q = query.reshape(-1, e) @ p["wq"] + p["bq"][0]
        k = key.reshape(-1, e) @ p["wk"] + p["bk"][0]
        v = value.reshape(-1, e) @ p["wv"] + p["bv"][0]
        q = q.reshape(tq, bsz * H, D).transpose(1, 0, 2) * (D ** -0.5)
        k = k.reshape(sk, bsz * H, D).transpose(1, 0, 2)
        v = v.reshape(sk, bsz * H, D).transpose(1, 0, 2)
        s = jnp.einsum("bqd,bkd->bqk", q, k)
        probs = jax.nn.softmax(s, axis=-1)
        o = jnp.einsum("bqk,bkd->bqd", probs, v)
        o = o.transpose(1, 0, 2).reshape(tq * bsz, e) @ p["wo"] + p["bo"][0]
        return o.reshape(tq, bsz, e), probs.reshape(bsz, H, tq, sk).mean(axis=1)

    t, bsz, e = x.shape
    res = x
    y, _ = mha(x, x, x, params["self_attn"])
    x = ln((res + y).reshape(-1, e),
           params["self_ln_g"], params["self_ln_b"]).reshape(t, bsz, e)
    res = x
    y, attn = mha(x, encoder_out, encoder_out, params["enc_attn"])
    x = ln((res + y).reshape(-1, e),
           params["enc_ln_g"], params["enc_ln_b"]).reshape(t, bsz, e)
    res = x
    h = jnp.maximum(x.reshape(-1, e) @ params["fc1_w"] + params["fc1_b"][0], 0.0)
    h = h @ params["fc2_w"] + params["fc2_b"][0]
    x = ln(res.reshape(-1, e) + h,
           params["final_ln_g"], params["final_ln_b"]).reshape(t, bsz, e)
    return x, attn


# --------------------------------- main ---------------------------------

if __name__ == "__main__":
    key = jax.random.PRNGKey(0)
    kx, kenc, kp = jax.random.split(key, 3)
    x = jax.random.normal(kx, (T, B, E), jnp.float32)
    encoder_out = jax.random.normal(kenc, (S, B, E), jnp.float32)
    params = init_params(kp)

    out, attn, _ = jax.jit(decoder_layer_forward)(x, encoder_out, params)
    out = jax.block_until_ready(out)
    attn = jax.block_until_ready(attn)

    ref_out, ref_attn = ref_forward(x, encoder_out, params)
    assert out.shape == (T, B, E) and attn.shape == (B, T, S)
    assert bool(jnp.allclose(out, ref_out, atol=5e-2, rtol=5e-2)), (
        "max |diff| = %f" % float(jnp.max(jnp.abs(out - ref_out))))
    assert bool(jnp.allclose(attn, ref_attn, atol=5e-2, rtol=5e-2)), (
        "max |attn diff| = %f" % float(jnp.max(jnp.abs(attn - ref_attn))))
    print("KERNEL_OK")
</pallas_src>

<mosaic_0001>
module attributes {stable_mosaic.version = 11 : i64} {
  func.func @_fused_layer_kernel(%arg0: i32, %arg1: memref<16x32xf32, #tpu.memory_space<vmem>>, %arg2: memref<16x32xf32, #tpu.memory_space<vmem>>, %arg3: memref<32x96xf32, #tpu.memory_space<vmem>>, %arg4: memref<1x96xf32, #tpu.memory_space<vmem>>, %arg5: memref<32x32xf32, #tpu.memory_space<vmem>>, %arg6: memref<1x32xf32, #tpu.memory_space<vmem>>, %arg7: memref<1x32xf32, #tpu.memory_space<vmem>>, %arg8: memref<1x32xf32, #tpu.memory_space<vmem>>, %arg9: memref<32x32xf32, #tpu.memory_space<vmem>>, %arg10: memref<1x32xf32, #tpu.memory_space<vmem>>, %arg11: memref<32x64xf32, #tpu.memory_space<vmem>>, %arg12: memref<1x64xf32, #tpu.memory_space<vmem>>, %arg13: memref<32x32xf32, #tpu.memory_space<vmem>>, %arg14: memref<1x32xf32, #tpu.memory_space<vmem>>, %arg15: memref<1x32xf32, #tpu.memory_space<vmem>>, %arg16: memref<1x32xf32, #tpu.memory_space<vmem>>, %arg17: memref<32x64xf32, #tpu.memory_space<vmem>>, %arg18: memref<1x64xf32, #tpu.memory_space<vmem>>, %arg19: memref<64x32xf32, #tpu.memory_space<vmem>>, %arg20: memref<1x32xf32, #tpu.memory_space<vmem>>, %arg21: memref<1x32xf32, #tpu.memory_space<vmem>>, %arg22: memref<1x32xf32, #tpu.memory_space<vmem>>, %arg23: memref<16x32xf32, #tpu.memory_space<vmem>>, %arg24: memref<16x8xf32, #tpu.memory_space<vmem>>, %arg25: memref<16x32xf32, #tpu.memory_space<vmem>>) attributes {dimension_semantics = [#tpu.dimension_semantics<arbitrary>], iteration_bounds = array<i64: 1>, scalar_prefetch = 0 : i64, scratch_operands = 1 : i64, tpu.core_type = #tpu.core_type<tc>, window_params = [{pipeline_mode = #tpu.pipeline_mode<synchronous>, transform_indices = @transform_0, window_bounds = array<i64: 16, 32>}, {pipeline_mode = #tpu.pipeline_mode<synchronous>, transform_indices = @transform_1, window_bounds = array<i64: 16, 32>}, {pipeline_mode = #tpu.pipeline_mode<synchronous>, transform_indices = @transform_2, window_bounds = array<i64: 32, 96>}, {pipeline_mode = #tpu.pipeline_mode<synchronous>, transform_indices = @transform_3, window_bounds = array<i64: 1, 96>}, {pipeline_mode = #tpu.pipeline_mode<synchronous>, transform_indices = @transform_4, window_bounds = array<i64: 32, 32>}, {pipeline_mode = #tpu.pipeline_mode<synchronous>, transform_indices = @transform_5, window_bounds = array<i64: 1, 32>}, {pipeline_mode = #tpu.pipeline_mode<synchronous>, transform_indices = @transform_6, window_bounds = array<i64: 1, 32>}, {pipeline_mode = #tpu.pipeline_mode<synchronous>, transform_indices = @transform_7, window_bounds = array<i64: 1, 32>}, {pipeline_mode = #tpu.pipeline_mode<synchronous>, transform_indices = @transform_8, window_bounds = array<i64: 32, 32>}, {pipeline_mode = #tpu.pipeline_mode<synchronous>, transform_indices = @transform_9, window_bounds = array<i64: 1, 32>}, {pipeline_mode = #tpu.pipeline_mode<synchronous>, transform_indices = @transform_10, window_bounds = array<i64: 32, 64>}, {pipeline_mode = #tpu.pipeline_mode<synchronous>, transform_indices = @transform_11, window_bounds = array<i64: 1, 64>}, {pipeline_mode = #tpu.pipeline_mode<synchronous>, transform_indices = @transform_12, window_bounds = array<i64: 32, 32>}, {pipeline_mode = #tpu.pipeline_mode<synchronous>, transform_indices = @transform_13, window_bounds = array<i64: 1, 32>}, {pipeline_mode = #tpu.pipeline_mode<synchronous>, transform_indices = @transform_14, window_bounds = array<i64: 1, 32>}, {pipeline_mode = #tpu.pipeline_mode<synchronous>, transform_indices = @transform_15, window_bounds = array<i64: 1, 32>}, {pipeline_mode = #tpu.pipeline_mode<synchronous>, transform_indices = @transform_16, window_bounds = array<i64: 32, 64>}, {pipeline_mode = #tpu.pipeline_mode<synchronous>, transform_indices = @transform_17, window_bounds = array<i64: 1, 64>}, {pipeline_mode = #tpu.pipeline_mode<synchronous>, transform_indices = @transform_18, window_bounds = array<i64: 64, 32>}, {pipeline_mode = #tpu.pipeline_mode<synchronous>, transform_indices = @transform_19, window_bounds = array<i64: 1, 32>}, {pipeline_mode = #tpu.pipeline_mode<synchronous>, transform_indices = @transform_20, window_bounds = array<i64: 1, 32>}, {pipeline_mode = #tpu.pipeline_mode<synchronous>, transform_indices = @transform_21, window_bounds = array<i64: 1, 32>}, {pipeline_mode = #tpu.pipeline_mode<synchronous>, transform_indices = @transform_22, window_bounds = array<i64: 16, 32>}, {pipeline_mode = #tpu.pipeline_mode<synchronous>, transform_indices = @transform_23, window_bounds = array<i64: 16, 8>}]} {
    %c0 = arith.constant 0 : index
    %c0_0 = arith.constant 0 : index
    %0 = vector.load %arg1[%c0, %c0_0] : memref<16x32xf32, #tpu.memory_space<vmem>>, vector<16x32xf32>
    %c0_1 = arith.constant 0 : index
    %c0_2 = arith.constant 0 : index
    %1 = vector.load %arg2[%c0_1, %c0_2] : memref<16x32xf32, #tpu.memory_space<vmem>>, vector<16x32xf32>
    %c0_3 = arith.constant 0 : index
    %c0_4 = arith.constant 0 : index
    %2 = vector.load %arg3[%c0_3, %c0_4] : memref<32x96xf32, #tpu.memory_space<vmem>>, vector<32x96xf32>
    %cst = arith.constant dense<0.000000e+00> : vector<16x96xf32>
    %3 = tpu.matmul %0, %2, %cst {dimension_numbers = #tpu.dot_dimension_numbers<[1], [0], [0], [1], [0, 0, 1, 1], [], []>} : vector<16x32xf32>, vector<32x96xf32>, vector<16x96xf32> -> vector<16x96xf32>
    %c0_5 = arith.constant 0 : index
    %c0_6 = arith.constant 0 : index
    %4 = vector.load %arg4[%c0_5, %c0_6] : memref<1x96xf32, #tpu.memory_space<vmem>>, vector<1x96xf32>
    %5 = vector.broadcast %4 : vector<1x96xf32> to vector<16x96xf32>
    %6 = arith.addf %3, %5 : vector<16x96xf32>
    %7 = vector.extract_strided_slice %6 {offsets = [0, 0], sizes = [8, 8], strides = [1, 1]} : vector<16x96xf32> to vector<8x8xf32>
    %cst_7 = arith.constant 0.353553385 : f32
    %8 = vector.broadcast %cst_7 : f32 to vector<8x8xf32>
    %9 = arith.mulf %7, %8 : vector<8x8xf32>
    %10 = vector.extract_strided_slice %6 {offsets = [0, 32], sizes = [8, 8], strides = [1, 1]} : vector<16x96xf32> to vector<8x8xf32>
    %11 = vector.extract_strided_slice %6 {offsets = [0, 64], sizes = [8, 8], strides = [1, 1]} : vector<16x96xf32> to vector<8x8xf32>
    %cst_8 = arith.constant dense<0.000000e+00> : vector<8x8xf32>
    %12 = tpu.matmul %9, %10, %cst_8 {dimension_numbers = #tpu.dot_dimension_numbers<[1], [1], [0], [0], [0, 0, 1, 0], [], []>} : vector<8x8xf32>, vector<8x8xf32>, vector<8x8xf32> -> vector<8x8xf32>
    %cst_9 = arith.constant dense<0xFF800000> : vector<8xf32>
    %13 = vector.multi_reduction <maximumf>, %12, %cst_9 [1] : vector<8x8xf32> to vector<8xf32>
    %14 = vector.shape_cast %13 : vector<8xf32> to vector<8x1xf32>
    %15 = vector.broadcast %14 : vector<8x1xf32> to vector<8x8xf32>
    %16 = arith.subf %12, %15 : vector<8x8xf32>
    %17 = math.exp %16 : vector<8x8xf32>
    %cst_10 = arith.constant dense<0.000000e+00> : vector<8xf32>
    %18 = vector.multi_reduction <add>, %17, %cst_10 [1] : vector<8x8xf32> to vector<8xf32>
    %19 = vector.shape_cast %18 : vector<8xf32> to vector<8x1xf32>
    %20 = tpu.reciprocal %19 {approx = true} : vector<8x1xf32> -> vector<8x1xf32>
    %21 = vector.broadcast %20 : vector<8x1xf32> to vector<8x8xf32>
    %22 = arith.mulf %17, %21 : vector<8x8xf32>
    %cst_11 = arith.constant dense<0.000000e+00> : vector<8x8xf32>
    %23 = tpu.matmul %22, %11, %cst_11 {dimension_numbers = #tpu.dot_dimension_numbers<[1], [0], [0], [1], [0, 0, 1, 1], [], []>} : vector<8x8xf32>, vector<8x8xf32>, vector<8x8xf32> -> vector<8x8xf32>
    %c0_12 = arith.constant 0 : index
    %c0_13 = arith.constant 0 : index
    %24 = vector.load %arg25[%c0_12, %c0_13] : memref<16x32xf32, #tpu.memory_space<vmem>>, vector<8x8xf32>
    tpu.vector_store %arg25[%c0_12, %c0_13], %23 {strides = array<i32>} : memref<16x32xf32, #tpu.memory_space<vmem>>, vector<8x8xf32>,
    %25 = vector.extract_strided_slice %6 {offsets = [0, 8], sizes = [8, 8], strides = [1, 1]} : vector<16x96xf32> to vector<8x8xf32>
    %cst_14 = arith.constant 0.353553385 : f32
    %26 = vector.broadcast %cst_14 : f32 to vector<8x8xf32>
    %27 = arith.mulf %25, %26 : vector<8x8xf32>
    %28 = vector.extract_strided_slice %6 {offsets = [0, 40], sizes = [8, 8], strides = [1, 1]} : vector<16x96xf32> to vector<8x8xf32>
    %29 = vector.extract_strided_slice %6 {offsets = [0, 72], sizes = [8, 8], strides = [1, 1]} : vector<16x96xf32> to vector<8x8xf32>
    %cst_15 = arith.constant dense<0.000000e+00> : vector<8x8xf32>
    %30 = tpu.matmul %27, %28, %cst_15 {dimension_numbers = #tpu.dot_dimension_numbers<[1], [1], [0], [0], [0, 0, 1, 0], [], []>} : vector<8x8xf32>, vector<8x8xf32>, vector<8x8xf32> -> vector<8x8xf32>
    %cst_16 = arith.constant dense<0xFF800000> : vector<8xf32>
    %31 = vector.multi_reduction <maximumf>, %30, %cst_16 [1] : vector<8x8xf32> to vector<8xf32>
    %32 = vector.shape_cast %31 : vector<8xf32> to vector<8x1xf32>
    %33 = vector.broadcast %32 : vector<8x1xf32> to vector<8x8xf32>
    %34 = arith.subf %30, %33 : vector<8x8xf32>
    %35 = math.exp %34 : vector<8x8xf32>
    %cst_17 = arith.constant dense<0.000000e+00> : vector<8xf32>
    %36 = vector.multi_reduction <add>, %35, %cst_17 [1] : vector<8x8xf32> to vector<8xf32>
    %37 = vector.shape_cast %36 : vector<8xf32> to vector<8x1xf32>
    %38 = tpu.reciprocal %37 {approx = true} : vector<8x1xf32> -> vector<8x1xf32>
    %39 = vector.broadcast %38 : vector<8x1xf32> to vector<8x8xf32>
    %40 = arith.mulf %35, %39 : vector<8x8xf32>
    %cst_18 = arith.constant dense<0.000000e+00> : vector<8x8xf32>
    %41 = tpu.matmul %40, %29, %cst_18 {dimension_numbers = #tpu.dot_dimension_numbers<[1], [0], [0], [1], [0, 0, 1, 1], [], []>} : vector<8x8xf32>, vector<8x8xf32>, vector<8x8xf32> -> vector<8x8xf32>
    %c0_19 = arith.constant 0 : index
    %c8 = arith.constant 8 : index
    %42 = vector.load %arg25[%c0_19, %c8] : memref<16x32xf32, #tpu.memory_space<vmem>>, vector<8x8xf32>
    tpu.vector_store %arg25[%c0_19, %c8], %41 {strides = array<i32>} : memref<16x32xf32, #tpu.memory_space<vmem>>, vector<8x8xf32>,
    %43 = vector.extract_strided_slice %6 {offsets = [0, 16], sizes = [8, 8], strides = [1, 1]} : vector<16x96xf32> to vector<8x8xf32>
    %cst_20 = arith.constant 0.353553385 : f32
    %44 = vector.broadcast %cst_20 : f32 to vector<8x8xf32>
    %45 = arith.mulf %43, %44 : vector<8x8xf32>
    %46 = vector.extract_strided_slice %6 {offsets = [0, 48], sizes = [8, 8], strides = [1, 1]} : vector<16x96xf32> to vector<8x8xf32>
    %47 = vector.extract_strided_slice %6 {offsets = [0, 80], sizes = [8, 8], strides = [1, 1]} : vector<16x96xf32> to vector<8x8xf32>
    %cst_21 = arith.constant dense<0.000000e+00> : vector<8x8xf32>
    %48 = tpu.matmul %45, %46, %cst_21 {dimension_numbers = #tpu.dot_dimension_numbers<[1], [1], [0], [0], [0, 0, 1, 0], [], []>} : vector<8x8xf32>, vector<8x8xf32>, vector<8x8xf32> -> vector<8x8xf32>
    %cst_22 = arith.constant dense<0xFF800000> : vector<8xf32>
    %49 = vector.multi_reduction <maximumf>, %48, %cst_22 [1] : vector<8x8xf32> to vector<8xf32>
    %50 = vector.shape_cast %49 : vector<8xf32> to vector<8x1xf32>
    %51 = vector.broadcast %50 : vector<8x1xf32> to vector<8x8xf32>
    %52 = arith.subf %48, %51 : vector<8x8xf32>
    %53 = math.exp %52 : vector<8x8xf32>
    %cst_23 = arith.constant dense<0.000000e+00> : vector<8xf32>
    %54 = vector.multi_reduction <add>, %53, %cst_23 [1] : vector<8x8xf32> to vector<8xf32>
    %55 = vector.shape_cast %54 : vector<8xf32> to vector<8x1xf32>
    %56 = tpu.reciprocal %55 {approx = true} : vector<8x1xf32> -> vector<8x1xf32>
    %57 = vector.broadcast %56 : vector<8x1xf32> to vector<8x8xf32>
    %58 = arith.mulf %53, %57 : vector<8x8xf32>
    %cst_24 = arith.constant dense<0.000000e+00> : vector<8x8xf32>
    %59 = tpu.matmul %58, %47, %cst_24 {dimension_numbers = #tpu.dot_dimension_numbers<[1], [0], [0], [1], [0, 0, 1, 1], [], []>} : vector<8x8xf32>, vector<8x8xf32>, vector<8x8xf32> -> vector<8x8xf32>
    %c0_25 = arith.constant 0 : index
    %c16 = arith.constant 16 : index
    %60 = vector.load %arg25[%c0_25, %c16] : memref<16x32xf32, #tpu.memory_space<vmem>>, vector<8x8xf32>
    tpu.vector_store %arg25[%c0_25, %c16], %59 {strides = array<i32>} : memref<16x32xf32, #tpu.memory_space<vmem>>, vector<8x8xf32>,
    %61 = vector.extract_strided_slice %6 {offsets = [0, 24], sizes = [8, 8], strides = [1, 1]} : vector<16x96xf32> to vector<8x8xf32>
    %cst_26 = arith.constant 0.353553385 : f32
    %62 = vector.broadcast %cst_26 : f32 to vector<8x8xf32>
    %63 = arith.mulf %61, %62 : vector<8x8xf32>
    %64 = vector.extract_strided_slice %6 {offsets = [0, 56], sizes = [8, 8], strides = [1, 1]} : vector<16x96xf32> to vector<8x8xf32>
    %65 = vector.extract_strided_slice %6 {offsets = [0, 88], sizes = [8, 8], strides = [1, 1]} : vector<16x96xf32> to vector<8x8xf32>
    %cst_27 = arith.constant dense<0.000000e+00> : vector<8x8xf32>
    %66 = tpu.matmul %63, %64, %cst_27 {dimension_numbers = #tpu.dot_dimension_numbers<[1], [1], [0], [0], [0, 0, 1, 0], [], []>} : vector<8x8xf32>, vector<8x8xf32>, vector<8x8xf32> -> vector<8x8xf32>
    %cst_28 = arith.constant dense<0xFF800000> : vector<8xf32>
    %67 = vector.multi_reduction <maximumf>, %66, %cst_28 [1] : vector<8x8xf32> to vector<8xf32>
    %68 = vector.shape_cast %67 : vector<8xf32> to vector<8x1xf32>
    %69 = vector.broadcast %68 : vector<8x1xf32> to vector<8x8xf32>
    %70 = arith.subf %66, %69 : vector<8x8xf32>
    %71 = math.exp %70 : vector<8x8xf32>
    %cst_29 = arith.constant dense<0.000000e+00> : vector<8xf32>
    %72 = vector.multi_reduction <add>, %71, %cst_29 [1] : vector<8x8xf32> to vector<8xf32>
    %73 = vector.shape_cast %72 : vector<8xf32> to vector<8x1xf32>
    %74 = tpu.reciprocal %73 {approx = true} : vector<8x1xf32> -> vector<8x1xf32>
    %75 = vector.broadcast %74 : vector<8x1xf32> to vector<8x8xf32>
    %76 = arith.mulf %71, %75 : vector<8x8xf32>
    %cst_30 = arith.constant dense<0.000000e+00> : vector<8x8xf32>
    %77 = tpu.matmul %76, %65, %cst_30 {dimension_numbers = #tpu.dot_dimension_numbers<[1], [0], [0], [1], [0, 0, 1, 1], [], []>} : vector<8x8xf32>, vector<8x8xf32>, vector<8x8xf32> -> vector<8x8xf32>
    %c0_31 = arith.constant 0 : index
    %c24 = arith.constant 24 : index
    %78 = vector.load %arg25[%c0_31, %c24] : memref<16x32xf32, #tpu.memory_space<vmem>>, vector<8x8xf32>
    tpu.vector_store %arg25[%c0_31, %c24], %77 {strides = array<i32>} : memref<16x32xf32, #tpu.memory_space<vmem>>, vector<8x8xf32>,
    %79 = vector.extract_strided_slice %6 {offsets = [8, 0], sizes = [8, 8], strides = [1, 1]} : vector<16x96xf32> to vector<8x8xf32>
    %cst_32 = arith.constant 0.353553385 : f32
    %80 = vector.broadcast %cst_32 : f32 to vector<8x8xf32>
    %81 = arith.mulf %79, %80 : vector<8x8xf32>
    %82 = vector.extract_strided_slice %6 {offsets = [8, 32], sizes = [8, 8], strides = [1, 1]} : vector<16x96xf32> to vector<8x8xf32>
    %83 = vector.extract_strided_slice %6 {offsets = [8, 64], sizes = [8, 8], strides = [1, 1]} : vector<16x96xf32> to vector<8x8xf32>
    %cst_33 = arith.constant dense<0.000000e+00> : vector<8x8xf32>
    %84 = tpu.matmul %81, %82, %cst_33 {dimension_numbers = #tpu.dot_dimension_numbers<[1], [1], [0], [0], [0, 0, 1, 0], [], []>} : vector<8x8xf32>, vector<8x8xf32>, vector<8x8xf32> -> vector<8x8xf32>
    %cst_34 = arith.constant dense<0xFF800000> : vector<8xf32>
    %85 = vector.multi_reduction <maximumf>, %84, %cst_34 [1] : vector<8x8xf32> to vector<8xf32>
    %86 = vector.shape_cast %85 : vector<8xf32> to vector<8x1xf32>
    %87 = vector.broadcast %86 : vector<8x1xf32> to vector<8x8xf32>
    %88 = arith.subf %84, %87 : vector<8x8xf32>
    %89 = math.exp %88 : vector<8x8xf32>
    %cst_35 = arith.constant dense<0.000000e+00> : vector<8xf32>
    %90 = vector.multi_reduction <add>, %89, %cst_35 [1] : vector<8x8xf32> to vector<8xf32>
    %91 = vector.shape_cast %90 : vector<8xf32> to vector<8x1xf32>
    %92 = tpu.reciprocal %91 {approx = true} : vector<8x1xf32> -> vector<8x1xf32>
    %93 = vector.broadcast %92 : vector<8x1xf32> to vector<8x8xf32>
    %94 = arith.mulf %89, %93 : vector<8x8xf32>
    %cst_36 = arith.constant dense<0.000000e+00> : vector<8x8xf32>
    %95 = tpu.matmul %94, %83, %cst_36 {dimension_numbers = #tpu.dot_dimension_numbers<[1], [0], [0], [1], [0, 0, 1, 1], [], []>} : vector<8x8xf32>, vector<8x8xf32>, vector<8x8xf32> -> vector<8x8xf32>
    %c8_37 = arith.constant 8 : index
    %c0_38 = arith.constant 0 : index
    %96 = vector.load %arg25[%c8_37, %c0_38] : memref<16x32xf32, #tpu.memory_space<vmem>>, vector<8x8xf32>
    tpu.vector_store %arg25[%c8_37, %c0_38], %95 {strides = array<i32>} : memref<16x32xf32, #tpu.memory_space<vmem>>, vector<8x8xf32>,
    %97 = vector.extract_strided_slice %6 {offsets = [8, 8], sizes = [8, 8], strides = [1, 1]} : vector<16x96xf32> to vector<8x8xf32>
    %cst_39 = arith.constant 0.353553385 : f32
    %98 = vector.broadcast %cst_39 : f32 to vector<8x8xf32>
    %99 = arith.mulf %97, %98 : vector<8x8xf32>
    %100 = vector.extract_strided_slice %6 {offsets = [8, 40], sizes = [8, 8], strides = [1, 1]} : vector<16x96xf32> to vector<8x8xf32>
    %101 = vector.extract_strided_slice %6 {offsets = [8, 72], sizes = [8, 8], strides = [1, 1]} : vector<16x96xf32> to vector<8x8xf32>
    %cst_40 = arith.constant dense<0.000000e+00> : vector<8x8xf32>
    %102 = tpu.matmul %99, %100, %cst_40 {dimension_numbers = #tpu.dot_dimension_numbers<[1], [1], [0], [0], [0, 0, 1, 0], [], []>} : vector<8x8xf32>, vector<8x8xf32>, vector<8x8xf32> -> vector<8x8xf32>
    %cst_41 = arith.constant dense<0xFF800000> : vector<8xf32>
    %103 = vector.multi_reduction <maximumf>, %102, %cst_41 [1] : vector<8x8xf32> to vector<8xf32>
    %104 = vector.shape_cast %103 : vector<8xf32> to vector<8x1xf32>
    %105 = vector.broadcast %104 : vector<8x1xf32> to vector<8x8xf32>
    %106 = arith.subf %102, %105 : vector<8x8xf32>
    %107 = math.exp %106 : vector<8x8xf32>
    %cst_42 = arith.constant dense<0.000000e+00> : vector<8xf32>
    %108 = vector.multi_reduction <add>, %107, %cst_42 [1] : vector<8x8xf32> to vector<8xf32>
    %109 = vector.shape_cast %108 : vector<8xf32> to vector<8x1xf32>
    %110 = tpu.reciprocal %109 {approx = true} : vector<8x1xf32> -> vector<8x1xf32>
    %111 = vector.broadcast %110 : vector<8x1xf32> to vector<8x8xf32>
    %112 = arith.mulf %107, %111 : vector<8x8xf32>
    %cst_43 = arith.constant dense<0.000000e+00> : vector<8x8xf32>
    %113 = tpu.matmul %112, %101, %cst_43 {dimension_numbers = #tpu.dot_dimension_numbers<[1], [0], [0], [1], [0, 0, 1, 1], [], []>} : vector<8x8xf32>, vector<8x8xf32>, vector<8x8xf32> -> vector<8x8xf32>
    %c8_44 = arith.constant 8 : index
    %c8_45 = arith.constant 8 : index
    %114 = vector.load %arg25[%c8_44, %c8_45] : memref<16x32xf32, #tpu.memory_space<vmem>>, vector<8x8xf32>
    tpu.vector_store %arg25[%c8_44, %c8_45], %113 {strides = array<i32>} : memref<16x32xf32, #tpu.memory_space<vmem>>, vector<8x8xf32>,
    %115 = vector.extract_strided_slice %6 {offsets = [8, 16], sizes = [8, 8], strides = [1, 1]} : vector<16x96xf32> to vector<8x8xf32>
    %cst_46 = arith.constant 0.353553385 : f32
    %116 = vector.broadcast %cst_46 : f32 to vector<8x8xf32>
    %117 = arith.mulf %115, %116 : vector<8x8xf32>
    %118 = vector.extract_strided_slice %6 {offsets = [8, 48], sizes = [8, 8], strides = [1, 1]} : vector<16x96xf32> to vector<8x8xf32>
    %119 = vector.extract_strided_slice %6 {offsets = [8, 80], sizes = [8, 8], strides = [1, 1]} : vector<16x96xf32> to vector<8x8xf32>
    %cst_47 = arith.constant dense<0.000000e+00> : vector<8x8xf32>
    %120 = tpu.matmul %117, %118, %cst_47 {dimension_numbers = #tpu.dot_dimension_numbers<[1], [1], [0], [0], [0, 0, 1, 0], [], []>} : vector<8x8xf32>, vector<8x8xf32>, vector<8x8xf32> -> vector<8x8xf32>
    %cst_48 = arith.constant dense<0xFF800000> : vector<8xf32>
    %121 = vector.multi_reduction <maximumf>, %120, %cst_48 [1] : vector<8x8xf32> to vector<8xf32>
    %122 = vector.shape_cast %121 : vector<8xf32> to vector<8x1xf32>
    %123 = vector.broadcast %122 : vector<8x1xf32> to vector<8x8xf32>
    %124 = arith.subf %120, %123 : vector<8x8xf32>
    %125 = math.exp %124 : vector<8x8xf32>
    %cst_49 = arith.constant dense<0.000000e+00> : vector<8xf32>
    %126 = vector.multi_reduction <add>, %125, %cst_49 [1] : vector<8x8xf32> to vector<8xf32>
    %127 = vector.shape_cast %126 : vector<8xf32> to vector<8x1xf32>
    %128 = tpu.reciprocal %127 {approx = true} : vector<8x1xf32> -> vector<8x1xf32>
    %129 = vector.broadcast %128 : vector<8x1xf32> to vector<8x8xf32>
    %130 = arith.mulf %125, %129 : vector<8x8xf32>
    %cst_50 = arith.constant dense<0.000000e+00> : vector<8x8xf32>
    %131 = tpu.matmul %130, %119, %cst_50 {dimension_numbers = #tpu.dot_dimension_numbers<[1], [0], [0], [1], [0, 0, 1, 1], [], []>} : vector<8x8xf32>, vector<8x8xf32>, vector<8x8xf32> -> vector<8x8xf32>
    %c8_51 = arith.constant 8 : index
    %c16_52 = arith.constant 16 : index
    %132 = vector.load %arg25[%c8_51, %c16_52] : memref<16x32xf32, #tpu.memory_space<vmem>>, vector<8x8xf32>
    tpu.vector_store %arg25[%c8_51, %c16_52], %131 {strides = array<i32>} : memref<16x32xf32, #tpu.memory_space<vmem>>, vector<8x8xf32>,
    %133 = vector.extract_strided_slice %6 {offsets = [8, 24], sizes = [8, 8], strides = [1, 1]} : vector<16x96xf32> to vector<8x8xf32>
    %cst_53 = arith.constant 0.353553385 : f32
    %134 = vector.broadcast %cst_53 : f32 to vector<8x8xf32>
    %135 = arith.mulf %133, %134 : vector<8x8xf32>
    %136 = vector.extract_strided_slice %6 {offsets = [8, 56], sizes = [8, 8], strides = [1, 1]} : vector<16x96xf32> to vector<8x8xf32>
    %137 = vector.extract_strided_slice %6 {offsets = [8, 88], sizes = [8, 8], strides = [1, 1]} : vector<16x96xf32> to vector<8x8xf32>
    %cst_54 = arith.constant dense<0.000000e+00> : vector<8x8xf32>
    %138 = tpu.matmul %135, %136, %cst_54 {dimension_numbers = #tpu.dot_dimension_numbers<[1], [1], [0], [0], [0, 0, 1, 0], [], []>} : vector<8x8xf32>, vector<8x8xf32>, vector<8x8xf32> -> vector<8x8xf32>
    %cst_55 = arith.constant dense<0xFF800000> : vector<8xf32>
    %139 = vector.multi_reduction <maximumf>, %138, %cst_55 [1] : vector<8x8xf32> to vector<8xf32>
    %140 = vector.shape_cast %139 : vector<8xf32> to vector<8x1xf32>
    %141 = vector.broadcast %140 : vector<8x1xf32> to vector<8x8xf32>
    %142 = arith.subf %138, %141 : vector<8x8xf32>
    %143 = math.exp %142 : vector<8x8xf32>
    %cst_56 = arith.constant dense<0.000000e+00> : vector<8xf32>
    %144 = vector.multi_reduction <add>, %143, %cst_56 [1] : vector<8x8xf32> to vector<8xf32>
    %145 = vector.shape_cast %144 : vector<8xf32> to vector<8x1xf32>
    %146 = tpu.reciprocal %145 {approx = true} : vector<8x1xf32> -> vector<8x1xf32>
    %147 = vector.broadcast %146 : vector<8x1xf32> to vector<8x8xf32>
    %148 = arith.mulf %143, %147 : vector<8x8xf32>
    %cst_57 = arith.constant dense<0.000000e+00> : vector<8x8xf32>
    %149 = tpu.matmul %148, %137, %cst_57 {dimension_numbers = #tpu.dot_dimension_numbers<[1], [0], [0], [1], [0, 0, 1, 1], [], []>} : vector<8x8xf32>, vector<8x8xf32>, vector<8x8xf32> -> vector<8x8xf32>
    %c8_58 = arith.constant 8 : index
    %c24_59 = arith.constant 24 : index
    %150 = vector.load %arg25[%c8_58, %c24_59] : memref<16x32xf32, #tpu.memory_space<vmem>>, vector<8x8xf32>
    tpu.vector_store %arg25[%c8_58, %c24_59], %149 {strides = array<i32>} : memref<16x32xf32, #tpu.memory_space<vmem>>, vector<8x8xf32>,
    %c0_60 = arith.constant 0 : index
    %c0_61 = arith.constant 0 : index
    %151 = vector.load %arg25[%c0_60, %c0_61] : memref<16x32xf32, #tpu.memory_space<vmem>>, vector<16x32xf32>
    %c0_62 = arith.constant 0 : index
    %c0_63 = arith.constant 0 : index
    %152 = vector.load %arg5[%c0_62, %c0_63] : memref<32x32xf32, #tpu.memory_space<vmem>>, vector<32x32xf32>
    %cst_64 = arith.constant dense<0.000000e+00> : vector<16x32xf32>
    %153 = tpu.matmul %151, %152, %cst_64 {dimension_numbers = #tpu.dot_dimension_numbers<[1], [0], [0], [1], [0, 0, 1, 1], [], []>} : vector<16x32xf32>, vector<32x32xf32>, vector<16x32xf32> -> vector<16x32xf32>
    %c0_65 = arith.constant 0 : index
    %c0_66 = arith.constant 0 : index
    %154 = vector.load %arg6[%c0_65, %c0_66] : memref<1x32xf32, #tpu.memory_space<vmem>>, vector<1x32xf32>
    %155 = vector.broadcast %154 : vector<1x32xf32> to vector<16x32xf32>
    %156 = arith.addf %153, %155 : vector<16x32xf32>
    %157 = arith.addf %156, %0 : vector<16x32xf32>
    %c0_67 = arith.constant 0 : index
    %c0_68 = arith.constant 0 : index
    %158 = vector.load %arg7[%c0_67, %c0_68] : memref<1x32xf32, #tpu.memory_space<vmem>>, vector<1x32xf32>
    %c0_69 = arith.constant 0 : index
    %c0_70 = arith.constant 0 : index
    %159 = vector.load %arg8[%c0_69, %c0_70] : memref<1x32xf32, #tpu.memory_space<vmem>>, vector<1x32xf32>
    %cst_71 = arith.constant dense<0.000000e+00> : vector<16xf32>
    %160 = vector.multi_reduction <add>, %157, %cst_71 [1] : vector<16x32xf32> to vector<16xf32>
    %161 = vector.shape_cast %160 : vector<16xf32> to vector<16x1xf32>
    %cst_72 = arith.constant 3.200000e+01 : f32
    %162 = vector.broadcast %cst_72 : f32 to vector<16x1xf32>
    %163 = arith.divf %161, %162 : vector<16x1xf32>
    %164 = vector.broadcast %163 : vector<16x1xf32> to vector<16x32xf32>
    %165 = arith.subf %157, %164 : vector<16x32xf32>
    %166 = arith.mulf %165, %165 : vector<16x32xf32>
    %cst_73 = arith.constant dense<0.000000e+00> : vector<16xf32>
    %167 = vector.multi_reduction <add>, %166, %cst_73 [1] : vector<16x32xf32> to vector<16xf32>
    %168 = vector.shape_cast %167 : vector<16xf32> to vector<16x1xf32>
    %cst_74 = arith.constant 3.200000e+01 : f32
    %169 = vector.broadcast %cst_74 : f32 to vector<16x1xf32>
    %170 = arith.divf %168, %169 : vector<16x1xf32>
    %cst_75 = arith.constant 9.99999974E-6 : f32
    %171 = vector.broadcast %cst_75 : f32 to vector<16x1xf32>
    %172 = arith.addf %170, %171 : vector<16x1xf32>
    %173 = math.rsqrt %172 : vector<16x1xf32>
    %174 = vector.broadcast %173 : vector<16x1xf32> to vector<16x32xf32>
    %175 = arith.mulf %165, %174 : vector<16x32xf32>
    %176 = vector.broadcast %158 : vector<1x32xf32> to vector<16x32xf32>
    %177 = arith.mulf %175, %176 : vector<16x32xf32>
    %178 = vector.broadcast %159 : vector<1x32xf32> to vector<16x32xf32>
    %179 = arith.addf %177, %178 : vector<16x32xf32>
    %c0_76 = arith.constant 0 : index
    %c0_77 = arith.constant 0 : index
    %180 = vector.load %arg9[%c0_76, %c0_77] : memref<32x32xf32, #tpu.memory_space<vmem>>, vector<32x32xf32>
    %cst_78 = arith.constant dense<0.000000e+00> : vector<16x32xf32>
    %181 = tpu.matmul %179, %180, %cst_78 {dimension_numbers = #tpu.dot_dimension_numbers<[1], [0], [0], [1], [0, 0, 1, 1], [], []>} : vector<16x32xf32>, vector<32x32xf32>, vector<16x32xf32> -> vector<16x32xf32>
    %c0_79 = arith.constant 0 : index
    %c0_80 = arith.constant 0 : index
    %182 = vector.load %arg10[%c0_79, %c0_80] : memref<1x32xf32, #tpu.memory_space<vmem>>, vector<1x32xf32>
    %183 = vector.broadcast %182 : vector<1x32xf32> to vector<16x32xf32>
    %184 = arith.addf %181, %183 : vector<16x32xf32>
    %c0_81 = arith.constant 0 : index
    %c0_82 = arith.constant 0 : index
    %185 = vector.load %arg11[%c0_81, %c0_82] : memref<32x64xf32, #tpu.memory_space<vmem>>, vector<32x64xf32>
    %cst_83 = arith.constant dense<0.000000e+00> : vector<16x64xf32>
    %186 = tpu.matmul %1, %185, %cst_83 {dimension_numbers = #tpu.dot_dimension_numbers<[1], [0], [0], [1], [0, 0, 1, 1], [], []>} : vector<16x32xf32>, vector<32x64xf32>, vector<16x64xf32> -> vector<16x64xf32>
    %c0_84 = arith.constant 0 : index
    %c0_85 = arith.constant 0 : index
    %187 = vector.load %arg12[%c0_84, %c0_85] : memref<1x64xf32, #tpu.memory_space<vmem>>, vector<1x64xf32>
    %188 = vector.broadcast %187 : vector<1x64xf32> to vector<16x64xf32>
    %189 = arith.addf %186, %188 : vector<16x64xf32>
    %cst_86 = arith.constant 0.000000e+00 : f32
    %190 = vector.broadcast %cst_86 : f32 to vector<8x8xf32>
    %191 = vector.extract_strided_slice %184 {offsets = [0, 0], sizes = [8, 8], strides = [1, 1]} : vector<16x32xf32> to vector<8x8xf32>
    %cst_87 = arith.constant 0.353553385 : f32
    %192 = vector.broadcast %cst_87 : f32 to vector<8x8xf32>
    %193 = arith.mulf %191, %192 : vector<8x8xf32>
    %194 = vector.extract_strided_slice %189 {offsets = [0, 0], sizes = [8, 8], strides = [1, 1]} : vector<16x64xf32> to vector<8x8xf32>
    %195 = vector.extract_strided_slice %189 {offsets = [0, 32], sizes = [8, 8], strides = [1, 1]} : vector<16x64xf32> to vector<8x8xf32>
    %cst_88 = arith.constant dense<0.000000e+00> : vector<8x8xf32>
    %196 = tpu.matmul %193, %194, %cst_88 {dimension_numbers = #tpu.dot_dimension_numbers<[1], [1], [0], [0], [0, 0, 1, 0], [], []>} : vector<8x8xf32>, vector<8x8xf32>, vector<8x8xf32> -> vector<8x8xf32>
    %cst_89 = arith.constant dense<0xFF800000> : vector<8xf32>
    %197 = vector.multi_reduction <maximumf>, %196, %cst_89 [1] : vector<8x8xf32> to vector<8xf32>
    %198 = vector.shape_cast %197 : vector<8xf32> to vector<8x1xf32>
    %199 = vector.broadcast %198 : vector<8x1xf32> to vector<8x8xf32>
    %200 = arith.subf %196, %199 : vector<8x8xf32>
    %201 = math.exp %200 : vector<8x8xf32>
    %cst_90 = arith.constant dense<0.000000e+00> : vector<8xf32>
    %202 = vector.multi_reduction <add>, %201, %cst_90 [1] : vector<8x8xf32> to vector<8xf32>
    %203 = vector.shape_cast %202 : vector<8xf32> to vector<8x1xf32>
    %204 = tpu.reciprocal %203 {approx = true} : vector<8x1xf32> -> vector<8x1xf32>
    %205 = vector.broadcast %204 : vector<8x1xf32> to vector<8x8xf32>
    %206 = arith.mulf %201, %205 : vector<8x8xf32>
    %207 = arith.addf %190, %206 : vector<8x8xf32>
    %cst_91 = arith.constant dense<0.000000e+00> : vector<8x8xf32>
    %208 = tpu.matmul %206, %195, %cst_91 {dimension_numbers = #tpu.dot_dimension_numbers<[1], [0], [0], [1], [0, 0, 1, 1], [], []>} : vector<8x8xf32>, vector<8x8xf32>, vector<8x8xf32> -> vector<8x8xf32>
    %c0_92 = arith.constant 0 : index
    %c0_93 = arith.constant 0 : index
    %209 = vector.load %arg25[%c0_92, %c0_93] : memref<16x32xf32, #tpu.memory_space<vmem>>, vector<8x8xf32>
    tpu.vector_store %arg25[%c0_92, %c0_93], %208 {strides = array<i32>} : memref<16x32xf32, #tpu.memory_space<vmem>>, vector<8x8xf32>,
    %210 = vector.extract_strided_slice %184 {offsets = [0, 8], sizes = [8, 8], strides = [1, 1]} : vector<16x32xf32> to vector<8x8xf32>
    %cst_94 = arith.constant 0.353553385 : f32
    %211 = vector.broadcast %cst_94 : f32 to vector<8x8xf32>
    %212 = arith.mulf %210, %211 : vector<8x8xf32>
    %213 = vector.extract_strided_slice %189 {offsets = [0, 8], sizes = [8, 8], strides = [1, 1]} : vector<16x64xf32> to vector<8x8xf32>
    %214 = vector.extract_strided_slice %189 {offsets = [0, 40], sizes = [8, 8], strides = [1, 1]} : vector<16x64xf32> to vector<8x8xf32>
    %cst_95 = arith.constant dense<0.000000e+00> : vector<8x8xf32>
    %215 = tpu.matmul %212, %213, %cst_95 {dimension_numbers = #tpu.dot_dimension_numbers<[1], [1], [0], [0], [0, 0, 1, 0], [], []>} : vector<8x8xf32>, vector<8x8xf32>, vector<8x8xf32> -> vector<8x8xf32>
    %cst_96 = arith.constant dense<0xFF800000> : vector<8xf32>
    %216 = vector.multi_reduction <maximumf>, %215, %cst_96 [1] : vector<8x8xf32> to vector<8xf32>
    %217 = vector.shape_cast %216 : vector<8xf32> to vector<8x1xf32>
    %218 = vector.broadcast %217 : vector<8x1xf32> to vector<8x8xf32>
    %219 = arith.subf %215, %218 : vector<8x8xf32>
    %220 = math.exp %219 : vector<8x8xf32>
    %cst_97 = arith.constant dense<0.000000e+00> : vector<8xf32>
    %221 = vector.multi_reduction <add>, %220, %cst_97 [1] : vector<8x8xf32> to vector<8xf32>
    %222 = vector.shape_cast %221 : vector<8xf32> to vector<8x1xf32>
    %223 = tpu.reciprocal %222 {approx = true} : vector<8x1xf32> -> vector<8x1xf32>
    %224 = vector.broadcast %223 : vector<8x1xf32> to vector<8x8xf32>
    %225 = arith.mulf %220, %224 : vector<8x8xf32>
    %226 = arith.addf %207, %225 : vector<8x8xf32>
    %cst_98 = arith.constant dense<0.000000e+00> : vector<8x8xf32>
    %227 = tpu.matmul %225, %214, %cst_98 {dimension_numbers = #tpu.dot_dimension_numbers<[1], [0], [0], [1], [0, 0, 1, 1], [], []>} : vector<8x8xf32>, vector<8x8xf32>, vector<8x8xf32> -> vector<8x8xf32>
    %c0_99 = arith.constant 0 : index
    %c8_100 = arith.constant 8 : index
    %228 = vector.load %arg25[%c0_99, %c8_100] : memref<16x32xf32, #tpu.memory_space<vmem>>, vector<8x8xf32>
    tpu.vector_store %arg25[%c0_99, %c8_100], %227 {strides = array<i32>} : memref<16x32xf32, #tpu.memory_space<vmem>>, vector<8x8xf32>,
    %229 = vector.extract_strided_slice %184 {offsets = [0, 16], sizes = [8, 8], strides = [1, 1]} : vector<16x32xf32> to vector<8x8xf32>
    %cst_101 = arith.constant 0.353553385 : f32
    %230 = vector.broadcast %cst_101 : f32 to vector<8x8xf32>
    %231 = arith.mulf %229, %230 : vector<8x8xf32>
    %232 = vector.extract_strided_slice %189 {offsets = [0, 16], sizes = [8, 8], strides = [1, 1]} : vector<16x64xf32> to vector<8x8xf32>
    %233 = vector.extract_strided_slice %189 {offsets = [0, 48], sizes = [8, 8], strides = [1, 1]} : vector<16x64xf32> to vector<8x8xf32>
    %cst_102 = arith.constant dense<0.000000e+00> : vector<8x8xf32>
    %234 = tpu.matmul %231, %232, %cst_102 {dimension_numbers = #tpu.dot_dimension_numbers<[1], [1], [0], [0], [0, 0, 1, 0], [], []>} : vector<8x8xf32>, vector<8x8xf32>, vector<8x8xf32> -> vector<8x8xf32>
    %cst_103 = arith.constant dense<0xFF800000> : vector<8xf32>
    %235 = vector.multi_reduction <maximumf>, %234, %cst_103 [1] : vector<8x8xf32> to vector<8xf32>
    %236 = vector.shape_cast %235 : vector<8xf32> to vector<8x1xf32>
    %237 = vector.broadcast %236 : vector<8x1xf32> to vector<8x8xf32>
    %238 = arith.subf %234, %237 : vector<8x8xf32>
    %239 = math.exp %238 : vector<8x8xf32>
    %cst_104 = arith.constant dense<0.000000e+00> : vector<8xf32>
    %240 = vector.multi_reduction <add>, %239, %cst_104 [1] : vector<8x8xf32> to vector<8xf32>
    %241 = vector.shape_cast %240 : vector<8xf32> to vector<8x1xf32>
    %242 = tpu.reciprocal %241 {approx = true} : vector<8x1xf32> -> vector<8x1xf32>
    %243 = vector.broadcast %242 : vector<8x1xf32> to vector<8x8xf32>
    %244 = arith.mulf %239, %243 : vector<8x8xf32>
    %245 = arith.addf %226, %244 : vector<8x8xf32>
    %cst_105 = arith.constant dense<0.000000e+00> : vector<8x8xf32>
    %246 = tpu.matmul %244, %233, %cst_105 {dimension_numbers = #tpu.dot_dimension_numbers<[1], [0], [0], [1], [0, 0, 1, 1], [], []>} : vector<8x8xf32>, vector<8x8xf32>, vector<8x8xf32> -> vector<8x8xf32>
    %c0_106 = arith.constant 0 : index
    %c16_107 = arith.constant 16 : index
    %247 = vector.load %arg25[%c0_106, %c16_107] : memref<16x32xf32, #tpu.memory_space<vmem>>, vector<8x8xf32>
    tpu.vector_store %arg25[%c0_106, %c16_107], %246 {strides = array<i32>} : memref<16x32xf32, #tpu.memory_space<vmem>>, vector<8x8xf32>,
    %248 = vector.extract_strided_slice %184 {offsets = [0, 24], sizes = [8, 8], strides = [1, 1]} : vector<16x32xf32> to vector<8x8xf32>
    %cst_108 = arith.constant 0.353553385 : f32
    %249 = vector.broadcast %cst_108 : f32 to vector<8x8xf32>
    %250 = arith.mulf %248, %249 : vector<8x8xf32>
    %251 = vector.extract_strided_slice %189 {offsets = [0, 24], sizes = [8, 8], strides = [1, 1]} : vector<16x64xf32> to vector<8x8xf32>
    %252 = vector.extract_strided_slice %189 {offsets = [0, 56], sizes = [8, 8], strides = [1, 1]} : vector<16x64xf32> to vector<8x8xf32>
    %cst_109 = arith.constant dense<0.000000e+00> : vector<8x8xf32>
    %253 = tpu.matmul %250, %251, %cst_109 {dimension_numbers = #tpu.dot_dimension_numbers<[1], [1], [0], [0], [0, 0, 1, 0], [], []>} : vector<8x8xf32>, vector<8x8xf32>, vector<8x8xf32> -> vector<8x8xf32>
    %cst_110 = arith.constant dense<0xFF800000> : vector<8xf32>
    %254 = vector.multi_reduction <maximumf>, %253, %cst_110 [1] : vector<8x8xf32> to vector<8xf32>
    %255 = vector.shape_cast %254 : vector<8xf32> to vector<8x1xf32>
    %256 = vector.broadcast %255 : vector<8x1xf32> to vector<8x8xf32>
    %257 = arith.subf %253, %256 : vector<8x8xf32>
    %258 = math.exp %257 : vector<8x8xf32>
    %cst_111 = arith.constant dense<0.000000e+00> : vector<8xf32>
    %259 = vector.multi_reduction <add>, %258, %cst_111 [1] : vector<8x8xf32> to vector<8xf32>
    %260 = vector.shape_cast %259 : vector<8xf32> to vector<8x1xf32>
    %261 = tpu.reciprocal %260 {approx = true} : vector<8x1xf32> -> vector<8x1xf32>
    %262 = vector.broadcast %261 : vector<8x1xf32> to vector<8x8xf32>
    %263 = arith.mulf %258, %262 : vector<8x8xf32>
    %264 = arith.addf %245, %263 : vector<8x8xf32>
    %cst_112 = arith.constant dense<0.000000e+00> : vector<8x8xf32>
    %265 = tpu.matmul %263, %252, %cst_112 {dimension_numbers = #tpu.dot_dimension_numbers<[1], [0], [0], [1], [0, 0, 1, 1], [], []>} : vector<8x8xf32>, vector<8x8xf32>, vector<8x8xf32> -> vector<8x8xf32>
    %c0_113 = arith.constant 0 : index
    %c24_114 = arith.constant 24 : index
    %266 = vector.load %arg25[%c0_113, %c24_114] : memref<16x32xf32, #tpu.memory_space<vmem>>, vector<8x8xf32>
    tpu.vector_store %arg25[%c0_113, %c24_114], %265 {strides = array<i32>} : memref<16x32xf32, #tpu.memory_space<vmem>>, vector<8x8xf32>,
    %cst_115 = arith.constant 2.500000e-01 : f32
    %267 = vector.broadcast %cst_115 : f32 to vector<8x8xf32>
    %268 = arith.mulf %264, %267 : vector<8x8xf32>
    %c0_116 = arith.constant 0 : index
    %c0_117 = arith.constant 0 : index
    %269 = vector.load %arg24[%c0_116, %c0_117] : memref<16x8xf32, #tpu.memory_space<vmem>>, vector<8x8xf32>
    tpu.vector_store %arg24[%c0_116, %c0_117], %268 {strides = array<i32>} : memref<16x8xf32, #tpu.memory_space<vmem>>, vector<8x8xf32>,
    %cst_118 = arith.constant 0.000000e+00 : f32
    %270 = vector.broadcast %cst_118 : f32 to vector<8x8xf32>
    %271 = vector.extract_strided_slice %184 {offsets = [8, 0], sizes = [8, 8], strides = [1, 1]} : vector<16x32xf32> to vector<8x8xf32>
    %cst_119 = arith.constant 0.353553385 : f32
    %272 = vector.broadcast %cst_119 : f32 to vector<8x8xf32>
    %273 = arith.mulf %271, %272 : vector<8x8xf32>
    %274 = vector.extract_strided_slice %189 {offsets = [8, 0], sizes = [8, 8], strides = [1, 1]} : vector<16x64xf32> to vector<8x8xf32>
    %275 = vector.extract_strided_slice %189 {offsets = [8, 32], sizes = [8, 8], strides = [1, 1]} : vector<16x64xf32> to vector<8x8xf32>
    %cst_120 = arith.constant dense<0.000000e+00> : vector<8x8xf32>
    %276 = tpu.matmul %273, %274, %cst_120 {dimension_numbers = #tpu.dot_dimension_numbers<[1], [1], [0], [0], [0, 0, 1, 0], [], []>} : vector<8x8xf32>, vector<8x8xf32>, vector<8x8xf32> -> vector<8x8xf32>
    %cst_121 = arith.constant dense<0xFF800000> : vector<8xf32>
    %277 = vector.multi_reduction <maximumf>, %276, %cst_121 [1] : vector<8x8xf32> to vector<8xf32>
    %278 = vector.shape_cast %277 : vector<8xf32> to vector<8x1xf32>
    %279 = vector.broadcast %278 : vector<8x1xf32> to vector<8x8xf32>
    %280 = arith.subf %276, %279 : vector<8x8xf32>
    %281 = math.exp %280 : vector<8x8xf32>
    %cst_122 = arith.constant dense<0.000000e+00> : vector<8xf32>
    %282 = vector.multi_reduction <add>, %281, %cst_122 [1] : vector<8x8xf32> to vector<8xf32>
    %283 = vector.shape_cast %282 : vector<8xf32> to vector<8x1xf32>
    %284 = tpu.reciprocal %283 {approx = true} : vector<8x1xf32> -> vector<8x1xf32>
    %285 = vector.broadcast %284 : vector<8x1xf32> to vector<8x8xf32>
    %286 = arith.mulf %281, %285 : vector<8x8xf32>
    %287 = arith.addf %270, %286 : vector<8x8xf32>
    %cst_123 = arith.constant dense<0.000000e+00> : vector<8x8xf32>
    %288 = tpu.matmul %286, %275, %cst_123 {dimension_numbers = #tpu.dot_dimension_numbers<[1], [0], [0], [1], [0, 0, 1, 1], [], []>} : vector<8x8xf32>, vector<8x8xf32>, vector<8x8xf32> -> vector<8x8xf32>
    %c8_124 = arith.constant 8 : index
    %c0_125 = arith.constant 0 : index
    %289 = vector.load %arg25[%c8_124, %c0_125] : memref<16x32xf32, #tpu.memory_space<vmem>>, vector<8x8xf32>
    tpu.vector_store %arg25[%c8_124, %c0_125], %288 {strides = array<i32>} : memref<16x32xf32, #tpu.memory_space<vmem>>, vector<8x8xf32>,
    %290 = vector.extract_strided_slice %184 {offsets = [8, 8], sizes = [8, 8], strides = [1, 1]} : vector<16x32xf32> to vector<8x8xf32>
    %cst_126 = arith.constant 0.353553385 : f32
    %291 = vector.broadcast %cst_126 : f32 to vector<8x8xf32>
    %292 = arith.mulf %290, %291 : vector<8x8xf32>
    %293 = vector.extract_strided_slice %189 {offsets = [8, 8], sizes = [8, 8], strides = [1, 1]} : vector<16x64xf32> to vector<8x8xf32>
    %294 = vector.extract_strided_slice %189 {offsets = [8, 40], sizes = [8, 8], strides = [1, 1]} : vector<16x64xf32> to vector<8x8xf32>
    %cst_127 = arith.constant dense<0.000000e+00> : vector<8x8xf32>
    %295 = tpu.matmul %292, %293, %cst_127 {dimension_numbers = #tpu.dot_dimension_numbers<[1], [1], [0], [0], [0, 0, 1, 0], [], []>} : vector<8x8xf32>, vector<8x8xf32>, vector<8x8xf32> -> vector<8x8xf32>
    %cst_128 = arith.constant dense<0xFF800000> : vector<8xf32>
    %296 = vector.multi_reduction <maximumf>, %295, %cst_128 [1] : vector<8x8xf32> to vector<8xf32>
    %297 = vector.shape_cast %296 : vector<8xf32> to vector<8x1xf32>
    %298 = vector.broadcast %297 : vector<8x1xf32> to vector<8x8xf32>
    %299 = arith.subf %295, %298 : vector<8x8xf32>
    %300 = math.exp %299 : vector<8x8xf32>
    %cst_129 = arith.constant dense<0.000000e+00> : vector<8xf32>
    %301 = vector.multi_reduction <add>, %300, %cst_129 [1] : vector<8x8xf32> to vector<8xf32>
    %302 = vector.shape_cast %301 : vector<8xf32> to vector<8x1xf32>
    %303 = tpu.reciprocal %302 {approx = true} : vector<8x1xf32> -> vector<8x1xf32>
    %304 = vector.broadcast %303 : vector<8x1xf32> to vector<8x8xf32>
    %305 = arith.mulf %300, %304 : vector<8x8xf32>
    %306 = arith.addf %287, %305 : vector<8x8xf32>
    %cst_130 = arith.constant dense<0.000000e+00> : vector<8x8xf32>
    %307 = tpu.matmul %305, %294, %cst_130 {dimension_numbers = #tpu.dot_dimension_numbers<[1], [0], [0], [1], [0, 0, 1, 1], [], []>} : vector<8x8xf32>, vector<8x8xf32>, vector<8x8xf32> -> vector<8x8xf32>
    %c8_131 = arith.constant 8 : index
    %c8_132 = arith.constant 8 : index
    %308 = vector.load %arg25[%c8_131, %c8_132] : memref<16x32xf32, #tpu.memory_space<vmem>>, vector<8x8xf32>
    tpu.vector_store %arg25[%c8_131, %c8_132], %307 {strides = array<i32>} : memref<16x32xf32, #tpu.memory_space<vmem>>, vector<8x8xf32>,
    %309 = vector.extract_strided_slice %184 {offsets = [8, 16], sizes = [8, 8], strides = [1, 1]} : vector<16x32xf32> to vector<8x8xf32>
    %cst_133 = arith.constant 0.353553385 : f32
    %310 = vector.broadcast %cst_133 : f32 to vector<8x8xf32>
    %311 = arith.mulf %309, %310 : vector<8x8xf32>
    %312 = vector.extract_strided_slice %189 {offsets = [8, 16], sizes = [8, 8], strides = [1, 1]} : vector<16x64xf32> to vector<8x8xf32>
    %313 = vector.extract_strided_slice %189 {offsets = [8, 48], sizes = [8, 8], strides = [1, 1]} : vector<16x64xf32> to vector<8x8xf32>
    %cst_134 = arith.constant dense<0.000000e+00> : vector<8x8xf32>
    %314 = tpu.matmul %311, %312, %cst_134 {dimension_numbers = #tpu.dot_dimension_numbers<[1], [1], [0], [0], [0, 0, 1, 0], [], []>} : vector<8x8xf32>, vector<8x8xf32>, vector<8x8xf32> -> vector<8x8xf32>
    %cst_135 = arith.constant dense<0xFF800000> : vector<8xf32>
    %315 = vector.multi_reduction <maximumf>, %314, %cst_135 [1] : vector<8x8xf32> to vector<8xf32>
    %316 = vector.shape_cast %315 : vector<8xf32> to vector<8x1xf32>
    %317 = vector.broadcast %316 : vector<8x1xf32> to vector<8x8xf32>
    %318 = arith.subf %314, %317 : vector<8x8xf32>
    %319 = math.exp %318 : vector<8x8xf32>
    %cst_136 = arith.constant dense<0.000000e+00> : vector<8xf32>
    %320 = vector.multi_reduction <add>, %319, %cst_136 [1] : vector<8x8xf32> to vector<8xf32>
    %321 = vector.shape_cast %320 : vector<8xf32> to vector<8x1xf32>
    %322 = tpu.reciprocal %321 {approx = true} : vector<8x1xf32> -> vector<8x1xf32>
    %323 = vector.broadcast %322 : vector<8x1xf32> to vector<8x8xf32>
    %324 = arith.mulf %319, %323 : vector<8x8xf32>
    %325 = arith.addf %306, %324 : vector<8x8xf32>
    %cst_137 = arith.constant dense<0.000000e+00> : vector<8x8xf32>
    %326 = tpu.matmul %324, %313, %cst_137 {dimension_numbers = #tpu.dot_dimension_numbers<[1], [0], [0], [1], [0, 0, 1, 1], [], []>} : vector<8x8xf32>, vector<8x8xf32>, vector<8x8xf32> -> vector<8x8xf32>
    %c8_138 = arith.constant 8 : index
    %c16_139 = arith.constant 16 : index
    %327 = vector.load %arg25[%c8_138, %c16_139] : memref<16x32xf32, #tpu.memory_space<vmem>>, vector<8x8xf32>
    tpu.vector_store %arg25[%c8_138, %c16_139], %326 {strides = array<i32>} : memref<16x32xf32, #tpu.memory_space<vmem>>, vector<8x8xf32>,
    %328 = vector.extract_strided_slice %184 {offsets = [8, 24], sizes = [8, 8], strides = [1, 1]} : vector<16x32xf32> to vector<8x8xf32>
    %cst_140 = arith.constant 0.353553385 : f32
    %329 = vector.broadcast %cst_140 : f32 to vector<8x8xf32>
    %330 = arith.mulf %328, %329 : vector<8x8xf32>
    %331 = vector.extract_strided_slice %189 {offsets = [8, 24], sizes = [8, 8], strides = [1, 1]} : vector<16x64xf32> to vector<8x8xf32>
    %332 = vector.extract_strided_slice %189 {offsets = [8, 56], sizes = [8, 8], strides = [1, 1]} : vector<16x64xf32> to vector<8x8xf32>
    %cst_141 = arith.constant dense<0.000000e+00> : vector<8x8xf32>
    %333 = tpu.matmul %330, %331, %cst_141 {dimension_numbers = #tpu.dot_dimension_numbers<[1], [1], [0], [0], [0, 0, 1, 0], [], []>} : vector<8x8xf32>, vector<8x8xf32>, vector<8x8xf32> -> vector<8x8xf32>
    %cst_142 = arith.constant dense<0xFF800000> : vector<8xf32>
    %334 = vector.multi_reduction <maximumf>, %333, %cst_142 [1] : vector<8x8xf32> to vector<8xf32>
    %335 = vector.shape_cast %334 : vector<8xf32> to vector<8x1xf32>
    %336 = vector.broadcast %335 : vector<8x1xf32> to vector<8x8xf32>
    %337 = arith.subf %333, %336 : vector<8x8xf32>
    %338 = math.exp %337 : vector<8x8xf32>
    %cst_143 = arith.constant dense<0.000000e+00> : vector<8xf32>
    %339 = vector.multi_reduction <add>, %338, %cst_143 [1] : vector<8x8xf32> to vector<8xf32>
    %340 = vector.shape_cast %339 : vector<8xf32> to vector<8x1xf32>
    %341 = tpu.reciprocal %340 {approx = true} : vector<8x1xf32> -> vector<8x1xf32>
    %342 = vector.broadcast %341 : vector<8x1xf32> to vector<8x8xf32>
    %343 = arith.mulf %338, %342 : vector<8x8xf32>
    %344 = arith.addf %325, %343 : vector<8x8xf32>
    %cst_144 = arith.constant dense<0.000000e+00> : vector<8x8xf32>
    %345 = tpu.matmul %343, %332, %cst_144 {dimension_numbers = #tpu.dot_dimension_numbers<[1], [0], [0], [1], [0, 0, 1, 1], [], []>} : vector<8x8xf32>, vector<8x8xf32>, vector<8x8xf32> -> vector<8x8xf32>
    %c8_145 = arith.constant 8 : index
    %c24_146 = arith.constant 24 : index
    %346 = vector.load %arg25[%c8_145, %c24_146] : memref<16x32xf32, #tpu.memory_space<vmem>>, vector<8x8xf32>
    tpu.vector_store %arg25[%c8_145, %c24_146], %345 {strides = array<i32>} : memref<16x32xf32, #tpu.memory_space<vmem>>, vector<8x8xf32>,
    %cst_147 = arith.constant 2.500000e-01 : f32
    %347 = vector.broadcast %cst_147 : f32 to vector<8x8xf32>
    %348 = arith.mulf %344, %347 : vector<8x8xf32>
    %c8_148 = arith.constant 8 : index
    %c0_149 = arith.constant 0 : index
    %349 = vector.load %arg24[%c8_148, %c0_149] : memref<16x8xf32, #tpu.memory_space<vmem>>, vector<8x8xf32>
    tpu.vector_store %arg24[%c8_148, %c0_149], %348 {strides = array<i32>} : memref<16x8xf32, #tpu.memory_space<vmem>>, vector<8x8xf32>,
    %c0_150 = arith.constant 0 : index
    %c0_151 = arith.constant 0 : index
    %350 = vector.load %arg25[%c0_150, %c0_151] : memref<16x32xf32, #tpu.memory_space<vmem>>, vector<16x32xf32>
    %c0_152 = arith.constant 0 : index
    %c0_153 = arith.constant 0 : index
    %351 = vector.load %arg13[%c0_152, %c0_153] : memref<32x32xf32, #tpu.memory_space<vmem>>, vector<32x32xf32>
    %cst_154 = arith.constant dense<0.000000e+00> : vector<16x32xf32>
    %352 = tpu.matmul %350, %351, %cst_154 {dimension_numbers = #tpu.dot_dimension_numbers<[1], [0], [0], [1], [0, 0, 1, 1], [], []>} : vector<16x32xf32>, vector<32x32xf32>, vector<16x32xf32> -> vector<16x32xf32>
    %c0_155 = arith.constant 0 : index
    %c0_156 = arith.constant 0 : index
    %353 = vector.load %arg14[%c0_155, %c0_156] : memref<1x32xf32, #tpu.memory_space<vmem>>, vector<1x32xf32>
    %354 = vector.broadcast %353 : vector<1x32xf32> to vector<16x32xf32>
    %355 = arith.addf %352, %354 : vector<16x32xf32>
    %356 = arith.addf %355, %179 : vector<16x32xf32>
    %c0_157 = arith.constant 0 : index
    %c0_158 = arith.constant 0 : index
    %357 = vector.load %arg15[%c0_157, %c0_158] : memref<1x32xf32, #tpu.memory_space<vmem>>, vector<1x32xf32>
    %c0_159 = arith.constant 0 : index
    %c0_160 = arith.constant 0 : index
    %358 = vector.load %arg16[%c0_159, %c0_160] : memref<1x32xf32, #tpu.memory_space<vmem>>, vector<1x32xf32>
    %cst_161 = arith.constant dense<0.000000e+00> : vector<16xf32>
    %359 = vector.multi_reduction <add>, %356, %cst_161 [1] : vector<16x32xf32> to vector<16xf32>
    %360 = vector.shape_cast %359 : vector<16xf32> to vector<16x1xf32>
    %cst_162 = arith.constant 3.200000e+01 : f32
    %361 = vector.broadcast %cst_162 : f32 to vector<16x1xf32>
    %362 = arith.divf %360, %361 : vector<16x1xf32>
    %363 = vector.broadcast %362 : vector<16x1xf32> to vector<16x32xf32>
    %364 = arith.subf %356, %363 : vector<16x32xf32>
    %365 = arith.mulf %364, %364 : vector<16x32xf32>
    %cst_163 = arith.constant dense<0.000000e+00> : vector<16xf32>
    %366 = vector.multi_reduction <add>, %365, %cst_163 [1] : vector<16x32xf32> to vector<16xf32>
    %367 = vector.shape_cast %366 : vector<16xf32> to vector<16x1xf32>
    %cst_164 = arith.constant 3.200000e+01 : f32
    %368 = vector.broadcast %cst_164 : f32 to vector<16x1xf32>
    %369 = arith.divf %367, %368 : vector<16x1xf32>
    %cst_165 = arith.constant 9.99999974E-6 : f32
    %370 = vector.broadcast %cst_165 : f32 to vector<16x1xf32>
    %371 = arith.addf %369, %370 : vector<16x1xf32>
    %372 = math.rsqrt %371 : vector<16x1xf32>
    %373 = vector.broadcast %372 : vector<16x1xf32> to vector<16x32xf32>
    %374 = arith.mulf %364, %373 : vector<16x32xf32>
    %375 = vector.broadcast %357 : vector<1x32xf32> to vector<16x32xf32>
    %376 = arith.mulf %374, %375 : vector<16x32xf32>
    %377 = vector.broadcast %358 : vector<1x32xf32> to vector<16x32xf32>
    %378 = arith.addf %376, %377 : vector<16x32xf32>
    %c0_166 = arith.constant 0 : index
    %c0_167 = arith.constant 0 : index
    %379 = vector.load %arg17[%c0_166, %c0_167] : memref<32x64xf32, #tpu.memory_space<vmem>>, vector<32x64xf32>
    %cst_168 = arith.constant dense<0.000000e+00> : vector<16x64xf32>
    %380 = tpu.matmul %378, %379, %cst_168 {dimension_numbers = #tpu.dot_dimension_numbers<[1], [0], [0], [1], [0, 0, 1, 1], [], []>} : vector<16x32xf32>, vector<32x64xf32>, vector<16x64xf32> -> vector<16x64xf32>
    %c0_169 = arith.constant 0 : index
    %c0_170 = arith.constant 0 : index
    %381 = vector.load %arg18[%c0_169, %c0_170] : memref<1x64xf32, #tpu.memory_space<vmem>>, vector<1x64xf32>
    %382 = vector.broadcast %381 : vector<1x64xf32> to vector<16x64xf32>
    %383 = arith.addf %380, %382 : vector<16x64xf32>
    %cst_171 = arith.constant 0.000000e+00 : f32
    %384 = vector.broadcast %cst_171 : f32 to vector<16x64xf32>
    %385 = arith.maximumf %383, %384 : vector<16x64xf32>
    %c0_172 = arith.constant 0 : index
    %c0_173 = arith.constant 0 : index
    %386 = vector.load %arg19[%c0_172, %c0_173] : memref<64x32xf32, #tpu.memory_space<vmem>>, vector<64x32xf32>
    %cst_174 = arith.constant dense<0.000000e+00> : vector<16x32xf32>
    %387 = tpu.matmul %385, %386, %cst_174 {dimension_numbers = #tpu.dot_dimension_numbers<[1], [0], [0], [1], [0, 0, 1, 1], [], []>} : vector<16x64xf32>, vector<64x32xf32>, vector<16x32xf32> -> vector<16x32xf32>
    %c0_175 = arith.constant 0 : index
    %c0_176 = arith.constant 0 : index
    %388 = vector.load %arg20[%c0_175, %c0_176] : memref<1x32xf32, #tpu.memory_space<vmem>>, vector<1x32xf32>
    %389 = vector.broadcast %388 : vector<1x32xf32> to vector<16x32xf32>
    %390 = arith.addf %387, %389 : vector<16x32xf32>
    %391 = arith.addf %390, %378 : vector<16x32xf32>
    %c0_177 = arith.constant 0 : index
    %c0_178 = arith.constant 0 : index
    %392 = vector.load %arg21[%c0_177, %c0_178] : memref<1x32xf32, #tpu.memory_space<vmem>>, vector<1x32xf32>
    %c0_179 = arith.constant 0 : index
    %c0_180 = arith.constant 0 : index
    %393 = vector.load %arg22[%c0_179, %c0_180] : memref<1x32xf32, #tpu.memory_space<vmem>>, vector<1x32xf32>
    %cst_181 = arith.constant dense<0.000000e+00> : vector<16xf32>
    %394 = vector.multi_reduction <add>, %391, %cst_181 [1] : vector<16x32xf32> to vector<16xf32>
    %395 = vector.shape_cast %394 : vector<16xf32> to vector<16x1xf32>
    %cst_182 = arith.constant 3.200000e+01 : f32
    %396 = vector.broadcast %cst_182 : f32 to vector<16x1xf32>
    %397 = arith.divf %395, %396 : vector<16x1xf32>
    %398 = vector.broadcast %397 : vector<16x1xf32> to vector<16x32xf32>
    %399 = arith.subf %391, %398 : vector<16x32xf32>
    %400 = arith.mulf %399, %399 : vector<16x32xf32>
    %cst_183 = arith.constant dense<0.000000e+00> : vector<16xf32>
    %401 = vector.multi_reduction <add>, %400, %cst_183 [1] : vector<16x32xf32> to vector<16xf32>
    %402 = vector.shape_cast %401 : vector<16xf32> to vector<16x1xf32>
    %cst_184 = arith.constant 3.200000e+01 : f32
    %403 = vector.broadcast %cst_184 : f32 to vector<16x1xf32>
    %404 = arith.divf %402, %403 : vector<16x1xf32>
    %cst_185 = arith.constant 9.99999974E-6 : f32
    %405 = vector.broadcast %cst_185 : f32 to vector<16x1xf32>
    %406 = arith.addf %404, %405 : vector<16x1xf32>
    %407 = math.rsqrt %406 : vector<16x1xf32>
    %408 = vector.broadcast %407 : vector<16x1xf32> to vector<16x32xf32>
    %409 = arith.mulf %399, %408 : vector<16x32xf32>
    %410 = vector.broadcast %392 : vector<1x32xf32> to vector<16x32xf32>
    %411 = arith.mulf %409, %410 : vector<16x32xf32>
    %412 = vector.broadcast %393 : vector<1x32xf32> to vector<16x32xf32>
    %413 = arith.addf %411, %412 : vector<16x32xf32>
    %c0_186 = arith.constant 0 : index
    %c0_187 = arith.constant 0 : index
    %414 = vector.load %arg23[%c0_186, %c0_187] : memref<16x32xf32, #tpu.memory_space<vmem>>, vector<16x32xf32>
    tpu.vector_store %arg23[%c0_186, %c0_187], %413 {strides = array<i32>} : memref<16x32xf32, #tpu.memory_space<vmem>>, vector<16x32xf32>,
    return
  }
  func.func @transform_0(%arg0: i32) -> (i32, i32) {
    %c0_i32 = arith.constant 0 : i32
    %c0_i32_0 = arith.constant 0 : i32
    %c0_i32_1 = arith.constant 0 : i32
    return %c0_i32, %c0_i32_0 : i32, i32
  }
  func.func @transform_1(%arg0: i32) -> (i32, i32) {
    %c0_i32 = arith.constant 0 : i32
    %c0_i32_0 = arith.constant 0 : i32
    %c0_i32_1 = arith.constant 0 : i32
    return %c0_i32, %c0_i32_0 : i32, i32
  }
  func.func @transform_2(%arg0: i32) -> (i32, i32) {
    %c0_i32 = arith.constant 0 : i32
    %c0_i32_0 = arith.constant 0 : i32
    %c0_i32_1 = arith.constant 0 : i32
    return %c0_i32, %c0_i32_0 : i32, i32
  }
  func.func @transform_3(%arg0: i32) -> (i32, i32) {
    %c0_i32 = arith.constant 0 : i32
    %c0_i32_0 = arith.constant 0 : i32
    %c0_i32_1 = arith.constant 0 : i32
    return %c0_i32, %c0_i32_0 : i32, i32
  }
  func.func @transform_4(%arg0: i32) -> (i32, i32) {
    %c0_i32 = arith.constant 0 : i32
    %c0_i32_0 = arith.constant 0 : i32
    %c0_i32_1 = arith.constant 0 : i32
    return %c0_i32, %c0_i32_0 : i32, i32
  }
  func.func @transform_5(%arg0: i32) -> (i32, i32) {
    %c0_i32 = arith.constant 0 : i32
    %c0_i32_0 = arith.constant 0 : i32
    %c0_i32_1 = arith.constant 0 : i32
    return %c0_i32, %c0_i32_0 : i32, i32
  }
  func.func @transform_6(%arg0: i32) -> (i32, i32) {
    %c0_i32 = arith.constant 0 : i32
    %c0_i32_0 = arith.constant 0 : i32
    %c0_i32_1 = arith.constant 0 : i32
    return %c0_i32, %c0_i32_0 : i32, i32
  }
  func.func @transform_7(%arg0: i32) -> (i32, i32) {
    %c0_i32 = arith.constant 0 : i32
    %c0_i32_0 = arith.constant 0 : i32
    %c0_i32_1 = arith.constant 0 : i32
    return %c0_i32, %c0_i32_0 : i32, i32
  }
  func.func @transform_8(%arg0: i32) -> (i32, i32) {
    %c0_i32 = arith.constant 0 : i32
    %c0_i32_0 = arith.constant 0 : i32
    %c0_i32_1 = arith.constant 0 : i32
    return %c0_i32, %c0_i32_0 : i32, i32
  }
  func.func @transform_9(%arg0: i32) -> (i32, i32) {
    %c0_i32 = arith.constant 0 : i32
    %c0_i32_0 = arith.constant 0 : i32
    %c0_i32_1 = arith.constant 0 : i32
    return %c0_i32, %c0_i32_0 : i32, i32
  }
  func.func @transform_10(%arg0: i32) -> (i32, i32) {
    %c0_i32 = arith.constant 0 : i32
    %c0_i32_0 = arith.constant 0 : i32
    %c0_i32_1 = arith.constant 0 : i32
    return %c0_i32, %c0_i32_0 : i32, i32
  }
  func.func @transform_11(%arg0: i32) -> (i32, i32) {
    %c0_i32 = arith.constant 0 : i32
    %c0_i32_0 = arith.constant 0 : i32
    %c0_i32_1 = arith.constant 0 : i32
    return %c0_i32, %c0_i32_0 : i32, i32
  }
  func.func @transform_12(%arg0: i32) -> (i32, i32) {
    %c0_i32 = arith.constant 0 : i32
    %c0_i32_0 = arith.constant 0 : i32
    %c0_i32_1 = arith.constant 0 : i32
    return %c0_i32, %c0_i32_0 : i32, i32
  }
  func.func @transform_13(%arg0: i32) -> (i32, i32) {
    %c0_i32 = arith.constant 0 : i32
    %c0_i32_0 = arith.constant 0 : i32
    %c0_i32_1 = arith.constant 0 : i32
    return %c0_i32, %c0_i32_0 : i32, i32
  }
  func.func @transform_14(%arg0: i32) -> (i32, i32) {
    %c0_i32 = arith.constant 0 : i32
    %c0_i32_0 = arith.constant 0 : i32
    %c0_i32_1 = arith.constant 0 : i32
    return %c0_i32, %c0_i32_0 : i32, i32
  }
  func.func @transform_15(%arg0: i32) -> (i32, i32) {
    %c0_i32 = arith.constant 0 : i32
    %c0_i32_0 = arith.constant 0 : i32
    %c0_i32_1 = arith.constant 0 : i32
    return %c0_i32, %c0_i32_0 : i32, i32
  }
  func.func @transform_16(%arg0: i32) -> (i32, i32) {
    %c0_i32 = arith.constant 0 : i32
    %c0_i32_0 = arith.constant 0 : i32
    %c0_i32_1 = arith.constant 0 : i32
    return %c0_i32, %c0_i32_0 : i32, i32
  }
  func.func @transform_17(%arg0: i32) -> (i32, i32) {
    %c0_i32 = arith.constant 0 : i32
    %c0_i32_0 = arith.constant 0 : i32
    %c0_i32_1 = arith.constant 0 : i32
    return %c0_i32, %c0_i32_0 : i32, i32
  }
  func.func @transform_18(%arg0: i32) -> (i32, i32) {
    %c0_i32 = arith.constant 0 : i32
    %c0_i32_0 = arith.constant 0 : i32
    %c0_i32_1 = arith.constant 0 : i32
    return %c0_i32, %c0_i32_0 : i32, i32
  }
  func.func @transform_19(%arg0: i32) -> (i32, i32) {
    %c0_i32 = arith.constant 0 : i32
    %c0_i32_0 = arith.constant 0 : i32
    %c0_i32_1 = arith.constant 0 : i32
    return %c0_i32, %c0_i32_0 : i32, i32
  }
  func.func @transform_20(%arg0: i32) -> (i32, i32) {
    %c0_i32 = arith.constant 0 : i32
    %c0_i32_0 = arith.constant 0 : i32
    %c0_i32_1 = arith.constant 0 : i32
    return %c0_i32, %c0_i32_0 : i32, i32
  }
  func.func @transform_21(%arg0: i32) -> (i32, i32) {
    %c0_i32 = arith.constant 0 : i32
    %c0_i32_0 = arith.constant 0 : i32
    %c0_i32_1 = arith.constant 0 : i32
    return %c0_i32, %c0_i32_0 : i32, i32
  }
  func.func @transform_22(%arg0: i32) -> (i32, i32) {
    %c0_i32 = arith.constant 0 : i32
    %c0_i32_0 = arith.constant 0 : i32
    %c0_i32_1 = arith.constant 0 : i32
    return %c0_i32, %c0_i32_0 : i32, i32
  }
  func.func @transform_23(%arg0: i32) -> (i32, i32) {
    %c0_i32 = arith.constant 0 : i32
    %c0_i32_0 = arith.constant 0 : i32
    %c0_i32_1 = arith.constant 0 : i32
    return %c0_i32, %c0_i32_0 : i32, i32
  }
}

</mosaic_0001>

<llo_original>
// kernel: decoder_layer_forward.1
$region0: #{decoder_layer_forward.1}
  #allocation0 [shape = 'u32[]', space=smem, size = 0x4, offset = 0x4, fixed_abs, tag = 'smem constant byte address 0x4 - core index']
  #allocation1 [shape = 'u32[144,128]{1,0:T(1,128)}', space=vmem, size = 0x12000, scoped, tag = 'internal scratch']
  #allocation2 [shape = 'f32[16,32]{1,0:T(8,128)}', space=vmem, size = 0x2000, scoped, tag = 'scratch operand']
  %s0 = inlined_call_operand.vmem [shape: f32[16,32], index: 0, kind: input, shape index: {}]
  %s1 = inlined_call_operand.vmem [shape: f32[16,32], index: 1, kind: input, shape index: {}]
  %s2 = inlined_call_operand.vmem [shape: f32[32,96], index: 2, kind: input, shape index: {}]
  %s3 = inlined_call_operand.vmem [shape: f32[1,96], index: 3, kind: input, shape index: {}]
  %s4 = inlined_call_operand.vmem [shape: f32[32,32], index: 4, kind: input, shape index: {}]
  %s5 = inlined_call_operand.vmem [shape: f32[1,32], index: 5, kind: input, shape index: {}]
  %s6 = inlined_call_operand.vmem [shape: f32[1,32], index: 6, kind: input, shape index: {}]
  %s7 = inlined_call_operand.vmem [shape: f32[1,32], index: 7, kind: input, shape index: {}]
  %s8 = inlined_call_operand.vmem [shape: f32[32,32], index: 8, kind: input, shape index: {}]
  %s9 = inlined_call_operand.vmem [shape: f32[1,32], index: 9, kind: input, shape index: {}]
  %s10 = inlined_call_operand.vmem [shape: f32[32,64], index: 10, kind: input, shape index: {}]
  %s11 = inlined_call_operand.vmem [shape: f32[1,64], index: 11, kind: input, shape index: {}]
  %s12 = inlined_call_operand.vmem [shape: f32[32,32], index: 12, kind: input, shape index: {}]
  %s13 = inlined_call_operand.vmem [shape: f32[1,32], index: 13, kind: input, shape index: {}]
  %s14 = inlined_call_operand.vmem [shape: f32[1,32], index: 14, kind: input, shape index: {}]
  %s15 = inlined_call_operand.vmem [shape: f32[1,32], index: 15, kind: input, shape index: {}]
  %s16 = inlined_call_operand.vmem [shape: f32[32,64], index: 16, kind: input, shape index: {}]
  %s17 = inlined_call_operand.vmem [shape: f32[1,64], index: 17, kind: input, shape index: {}]
  %s18 = inlined_call_operand.vmem [shape: f32[64,32], index: 18, kind: input, shape index: {}]
  %s19 = inlined_call_operand.vmem [shape: f32[1,32], index: 19, kind: input, shape index: {}]
  %s20 = inlined_call_operand.vmem [shape: f32[1,32], index: 20, kind: input, shape index: {}]
  %s21 = inlined_call_operand.vmem [shape: f32[1,32], index: 21, kind: input, shape index: {}]
  %s22 = inlined_call_operand.vmem [shape: f32[16,32], index: 22, kind: output, shape index: {0}]
  %s23 = inlined_call_operand.hbm [shape: f32[16,8], index: 23, kind: output, shape index: {1}]
  %24 = xla_tuple %s22, %s23
  %s25 = sld [smem:[#allocation0]]
  $region106: #{decoder_layer_forward.1} parent=0
    _
  %s27 = ssub.s32 1, %s25
  %s28 = scalar_select 0, %s27, %s25
  $region1: #{decoder_layer_forward.1} parent=0
    #allocation3 [shape = 'u8[8192]{0}', space=vmem, size = 0x2000, scoped, tag = 'output window, operand 1, single buffered']
    #allocation4 [shape = 's32[1]{0}', space=sflag, size = 0x4, scoped, tag = 'scoped memory for decoder_layer_forward.1']
    %29 = vsyncpa [#allocation4], 0
    // Predicated region
    $region2: #{decoder_layer_forward.1} parent=1 // pred_check
      _
    $region3: #{decoder_layer_forward.1} parent=1 // pred_check_branch
      %31 = sbr.rel (0) target = $region5
    $region4: #{decoder_layer_forward.1} parent=1 // pred_region
      _
    $region5: #{decoder_layer_forward.1} parent=1 // pred_fallthru
      _
    // Predicated region
    $region6: #{decoder_layer_forward.1} parent=1 // pred_check
      _
    $region7: #{decoder_layer_forward.1} parent=1 // pred_check_branch
      %33 = sbr.rel (0) target = $region9
    $region8: #{decoder_layer_forward.1} parent=1 // pred_region
      _
    $region9: #{decoder_layer_forward.1} parent=1 // pred_fallthru
      _
    // Predicated region
    $region10: #{decoder_layer_forward.1} parent=1 // pred_check
      _
    $region11: #{decoder_layer_forward.1} parent=1 // pred_check_branch
      %35 = sbr.rel (0) target = $region13
    $region12: #{decoder_layer_forward.1} parent=1 // pred_region
      _
    $region13: #{decoder_layer_forward.1} parent=1 // pred_fallthru
      _
    // Predicated region
    $region14: #{decoder_layer_forward.1} parent=1 // pred_check
      _
    $region15: #{decoder_layer_forward.1} parent=1 // pred_check_branch
      %37 = sbr.rel (0) target = $region17
    $region16: #{decoder_layer_forward.1} parent=1 // pred_region
      _
    $region17: #{decoder_layer_forward.1} parent=1 // pred_fallthru
      _
    // Predicated region
    $region18: #{decoder_layer_forward.1} parent=1 // pred_check
      _
    $region19: #{decoder_layer_forward.1} parent=1 // pred_check_branch
      %39 = sbr.rel (0) target = $region21
    $region20: #{decoder_layer_forward.1} parent=1 // pred_region
      _
    $region21: #{decoder_layer_forward.1} parent=1 // pred_fallthru
      _
    // Predicated region
    $region22: #{decoder_layer_forward.1} parent=1 // pred_check
      _
    $region23: #{decoder_layer_forward.1} parent=1 // pred_check_branch
      %41 = sbr.rel (0) target = $region25
    $region24: #{decoder_layer_forward.1} parent=1 // pred_region
      _
    $region25: #{decoder_layer_forward.1} parent=1 // pred_fallthru
      _
    // Predicated region
    $region26: #{decoder_layer_forward.1} parent=1 // pred_check
      _
    $region27: #{decoder_layer_forward.1} parent=1 // pred_check_branch
      %43 = sbr.rel (0) target = $region29
    $region28: #{decoder_layer_forward.1} parent=1 // pred_region
      _
    $region29: #{decoder_layer_forward.1} parent=1 // pred_fallthru
      _
    // Predicated region
    $region30: #{decoder_layer_forward.1} parent=1 // pred_check
      _
    $region31: #{decoder_layer_forward.1} parent=1 // pred_check_branch
      %45 = sbr.rel (0) target = $region33
    $region32: #{decoder_layer_forward.1} parent=1 // pred_region
      _
    $region33: #{decoder_layer_forward.1} parent=1 // pred_fallthru
      _
    // Predicated region
    $region34: #{decoder_layer_forward.1} parent=1 // pred_check
      _
    $region35: #{decoder_layer_forward.1} parent=1 // pred_check_branch
      %47 = sbr.rel (0) target = $region37
    $region36: #{decoder_layer_forward.1} parent=1 // pred_region
      _
    $region37: #{decoder_layer_forward.1} parent=1 // pred_fallthru
      _
    // Predicated region
    $region38: #{decoder_layer_forward.1} parent=1 // pred_check
      _
    $region39: #{decoder_layer_forward.1} parent=1 // pred_check_branch
      %49 = sbr.rel (0) target = $region41
    $region40: #{decoder_layer_forward.1} parent=1 // pred_region
      _
    $region41: #{decoder_layer_forward.1} parent=1 // pred_fallthru
      _
    // Predicated region
    $region42: #{decoder_layer_forward.1} parent=1 // pred_check
      _
    $region43: #{decoder_layer_forward.1} parent=1 // pred_check_branch
      %51 = sbr.rel (0) target = $region45
    $region44: #{decoder_layer_forward.1} parent=1 // pred_region
      _
    $region45: #{decoder_layer_forward.1} parent=1 // pred_fallthru
      _
    // Predicated region
    $region46: #{decoder_layer_forward.1} parent=1 // pred_check
      _
    $region47: #{decoder_layer_forward.1} parent=1 // pred_check_branch
      %53 = sbr.rel (0) target = $region49
    $region48: #{decoder_layer_forward.1} parent=1 // pred_region
      _
    $region49: #{decoder_layer_forward.1} parent=1 // pred_fallthru
      _
    // Predicated region
    $region50: #{decoder_layer_forward.1} parent=1 // pred_check
      _
    $region51: #{decoder_layer_forward.1} parent=1 // pred_check_branch
      %55 = sbr.rel (0) target = $region53
    $region52: #{decoder_layer_forward.1} parent=1 // pred_region
      _
    $region53: #{decoder_layer_forward.1} parent=1 // pred_fallthru
      _
    // Predicated region
    $region54: #{decoder_layer_forward.1} parent=1 // pred_check
      _
    $region55: #{decoder_layer_forward.1} parent=1 // pred_check_branch
      %57 = sbr.rel (0) target = $region57
    $region56: #{decoder_layer_forward.1} parent=1 // pred_region
      _
    $region57: #{decoder_layer_forward.1} parent=1 // pred_fallthru
      _
    // Predicated region
    $region58: #{decoder_layer_forward.1} parent=1 // pred_check
      _
    $region59: #{decoder_layer_forward.1} parent=1 // pred_check_branch
      %59 = sbr.rel (0) target = $region61
    $region60: #{decoder_layer_forward.1} parent=1 // pred_region
      _
    $region61: #{decoder_layer_forward.1} parent=1 // pred_fallthru
      _
    // Predicated region
    $region62: #{decoder_layer_forward.1} parent=1 // pred_check
      _
    $region63: #{decoder_layer_forward.1} parent=1 // pred_check_branch
      %61 = sbr.rel (0) target = $region65
    $region64: #{decoder_layer_forward.1} parent=1 // pred_region
      _
    $region65: #{decoder_layer_forward.1} parent=1 // pred_fallthru
      _
    // Predicated region
    $region66: #{decoder_layer_forward.1} parent=1 // pred_check
      _
    $region67: #{decoder_layer_forward.1} parent=1 // pred_check_branch
      %63 = sbr.rel (0) target = $region69
    $region68: #{decoder_layer_forward.1} parent=1 // pred_region
      _
    $region69: #{decoder_layer_forward.1} parent=1 // pred_fallthru
      _
    // Predicated region
    $region70: #{decoder_layer_forward.1} parent=1 // pred_check
      _
    $region71: #{decoder_layer_forward.1} parent=1 // pred_check_branch
      %65 = sbr.rel (0) target = $region73
    $region72: #{decoder_layer_forward.1} parent=1 // pred_region
      _
    $region73: #{decoder_layer_forward.1} parent=1 // pred_fallthru
      _
    // Predicated region
    $region74: #{decoder_layer_forward.1} parent=1 // pred_check
      _
    $region75: #{decoder_layer_forward.1} parent=1 // pred_check_branch
      %67 = sbr.rel (0) target = $region77
    $region76: #{decoder_layer_forward.1} parent=1 // pred_region
      _
    $region77: #{decoder_layer_forward.1} parent=1 // pred_fallthru
      _
    // Predicated region
    $region78: #{decoder_layer_forward.1} parent=1 // pred_check
      _
    $region79: #{decoder_layer_forward.1} parent=1 // pred_check_branch
      %69 = sbr.rel (0) target = $region81
    $region80: #{decoder_layer_forward.1} parent=1 // pred_region
      _
    $region81: #{decoder_layer_forward.1} parent=1 // pred_fallthru
      _
    // Predicated region
    $region82: #{decoder_layer_forward.1} parent=1 // pred_check
      _
    $region83: #{decoder_layer_forward.1} parent=1 // pred_check_branch
      %71 = sbr.rel (0) target = $region85
    $region84: #{decoder_layer_forward.1} parent=1 // pred_region
      _
    $region85: #{decoder_layer_forward.1} parent=1 // pred_fallthru
      _
    // Predicated region
    $region86: #{decoder_layer_forward.1} parent=1 // pred_check
      _
    $region87: #{decoder_layer_forward.1} parent=1 // pred_check_branch
      %73 = sbr.rel (0) target = $region89
    $region88: #{decoder_layer_forward.1} parent=1 // pred_region
      _
    $region89: #{decoder_layer_forward.1} parent=1 // pred_fallthru
      _
    %v74 = vld [vmem:[%s0] sm:$0xff]
    %v75 = vld [vmem:[%s0 + $0x8] sm:$0xff]
    %v76 = vld [vmem:[%s1] sm:$0xff]
    %v77 = vld [vmem:[%s1 + $0x8] sm:$0xff]
    %v78 = vld [vmem:[%s2] sm:$0xff]
    %v79 = vld [vmem:[%s2 + $0x8] sm:$0xff]
    %v80 = vld [vmem:[%s2 + $0x10] sm:$0xff]
    %v81 = vld [vmem:[%s2 + $0x18] sm:$0xff]
    %v82 = vld [vmem:[%s3] sm:$0x1]
    %v84 = vlaneseq
    %v85 = vshrl.u32 %v84, 7
    %v86 = vsub.s32 0, %v85
    %v87 = vrot.slane %v82, %v86
    %vm89 = vcmask 261120
    %v91 = vsel %vm89, %v74, 0
    %v94 = vsel %vm89, %v75, 0
    %96 = vmatprep.subr.mxu0 0.0
    %97 = vmatpush1.msra.mxu0 0.0
    %98 = vmatprep.subr.mxu0 0.0
    %99 = vmatpush1.msra.mxu0 0.0
    %100 = vmatprep.subr.mxu0 0.0
    %101 = vmatpush1.msra.mxu0 0.0
    %102 = vmatprep.subr.mxu0 0.0
    %103 = vmatpush1.msra.mxu0 0.0
    %104 = vmatprep.subr.mxu0 0.0
    %105 = vmatpush1.msra.mxu0 0.0
    %106 = vmatprep.subr.mxu0 0.0
    %107 = vmatpush1.msra.mxu0 0.0
    %108 = vmatprep.subr.mxu0 0.0
    %109 = vmatpush1.msra.mxu0 0.0
    %110 = vmatprep.subr.mxu0 0.0
    %111 = vmatpush1.msra.mxu0 0.0
    %112 = vmatprep.subr.mxu0 0.0
    %113 = vmatpush1.msra.mxu0 0.0
    %114 = vmatprep.subr.mxu0 0.0
    %115 = vmatpush1.msra.mxu0 0.0
    %116 = vmatprep.subr.mxu0 0.0
    %117 = vmatpush1.msra.mxu0 0.0
    %118 = vmatprep.subr.mxu0 0.0
    %119 = vmatpush1.msra.mxu0 0.0
    %120 = vmatprep.subr.mxu0 0.0
    %121 = vmatpush1.msra.mxu0 %v81
    %122 = vmatprep.subr.mxu0 0.0
    %123 = vmatpush1.msra.mxu0 %v80
    %124 = vmatprep.subr.mxu0 0.0
    %125 = vmatpush1.msra.mxu0 %v79
    %126 = vmatprep.subr.mxu0 0.0
    %127 = vmatpush1.msra.mxu0 %v78
    %128 = vmatprep.subr.mxu0 0.0
    %129 = vmatpush2.msra.mxu0 0.0
    %130 = vmatprep.subr.mxu0 0.0
    %131 = vmatpush2.msra.mxu0 0.0
    %132 = vmatprep.subr.mxu0 0.0
    %133 = vmatpush2.msra.mxu0 0.0
    %134 = vmatprep.subr.mxu0 0.0
    %135 = vmatpush2.msra.mxu0 0.0
    %136 = vmatprep.subr.mxu0 0.0
    %137 = vmatpush2.msra.mxu0 0.0
    %138 = vmatprep.subr.mxu0 0.0
    %139 = vmatpush2.msra.mxu0 0.0
    %140 = vmatprep.subr.mxu0 0.0
    %141 = vmatpush2.msra.mxu0 0.0
    %142 = vmatprep.subr.mxu0 0.0
    %143 = vmatpush2.msra.mxu0 0.0
    %144 = vmatprep.subr.mxu0 0.0
    %145 = vmatpush2.msra.mxu0 0.0
    %146 = vmatprep.subr.mxu0 0.0
    %147 = vmatpush2.msra.mxu0 0.0
    %148 = vmatprep.subr.mxu0 0.0
    %149 = vmatpush2.msra.mxu0 0.0
    %150 = vmatprep.subr.mxu0 0.0
    %151 = vmatpush2.msra.mxu0 0.0
    %152 = vmatprep.subr.mxu0 0.0
    %153 = vmatpush2.msra.mxu0 0.0
    %154 = vmatprep.subr.mxu0 0.0
    %155 = vmatpush2.msra.mxu0 0.0
    %156 = vmatprep.subr.mxu0 0.0
    %157 = vmatpush2.msra.mxu0 0.0
    %158 = vmatprep.subr.mxu0 0.0
    %159 = vmatpush2.msra.mxu0 0.0
    %160 = vmatprep.mubr.f32.mxu0 0.0
    %161 = vmatmul.mubr.f32.gmra.mxu0 %v91
    %v162 = vpop.f32.mrf.mxu0
    %v163 = vadd.f32 %v87, %v162
    %v164 = vpop.f32.mrf.mxu0
    %165 = vmatprep.mubr.f32.mxu0 0.0
    %166 = vmatmul.mubr.f32.gmra.mxu0 %v94
    %v167 = vpop.f32.mrf.mxu0
    %v168 = vadd.f32 %v87, %v167
    %v169 = vpop.f32.mrf.mxu0
    %170 = vdwg.mxu0
    %v171 = vmul.f32 %v163, 0.35355338
    %173 = vrot.lane.b32.xlu0 %v163, 96
    %v174 = vpop.permute.xlu0 %173
    %vm175 = vcmask 64512
    %v177 = vsel %vm175, %v171, 0
    %v179 = vsel %vm175, %v174, 0
    %181 = vmatprep.subr.mxu0 0.0
    %182 = vmatpush1.xpose.msra.mxu0 0.0
    %183 = vmatprep.subr.mxu0 0.0
    %184 = vmatpush1.xpose.msra.mxu0 0.0
    %185 = vmatprep.subr.mxu0 0.0
    %186 = vmatpush1.xpose.msra.mxu0 0.0
    %187 = vmatprep.subr.mxu0 0.0
    %188 = vmatpush1.xpose.msra.mxu0 0.0
    %189 = vmatprep.subr.mxu0 0.0
    %190 = vmatpush1.xpose.msra.mxu0 0.0
    %191 = vmatprep.subr.mxu0 0.0
    %192 = vmatpush1.xpose.msra.mxu0 0.0
    %193 = vmatprep.subr.mxu0 0.0
    %194 = vmatpush1.xpose.msra.mxu0 0.0
    %195 = vmatprep.subr.mxu0 0.0
    %196 = vmatpush1.xpose.msra.mxu0 0.0
    %197 = vmatprep.subr.mxu0 0.0
    %198 = vmatpush1.xpose.msra.mxu0 0.0
    %199 = vmatprep.subr.mxu0 0.0
    %200 = vmatpush1.xpose.msra.mxu0 0.0
    %201 = vmatprep.subr.mxu0 0.0
    %202 = vmatpush1.xpose.msra.mxu0 0.0
    %203 = vmatprep.subr.mxu0 0.0
    %204 = vmatpush1.xpose.msra.mxu0 0.0
    %205 = vmatprep.subr.mxu0 0.0
    %206 = vmatpush1.xpose.msra.mxu0 0.0
    %207 = vmatprep.subr.mxu0 0.0
    %208 = vmatpush1.xpose.msra.mxu0 0.0
    %209 = vmatprep.subr.mxu0 0.0
    %210 = vmatpush1.xpose.msra.mxu0 0.0
    %211 = vmatprep.subr.mxu0 0.0
    %212 = vmatpush1.xpose.msra.mxu0 %v179
    %213 = vmatprep.subr.mxu0 0.0
    %214 = vmatpush2.xpose.msra.mxu0 0.0
    %215 = vmatprep.subr.mxu0 0.0
    %216 = vmatpush2.xpose.msra.mxu0 0.0
    %217 = vmatprep.subr.mxu0 0.0
    %218 = vmatpush2.xpose.msra.mxu0 0.0
    %219 = vmatprep.subr.mxu0 0.0
    %220 = vmatpush2.xpose.msra.mxu0 0.0
    %221 = vmatprep.subr.mxu0 0.0
    %222 = vmatpush2.xpose.msra.mxu0 0.0
    %223 = vmatprep.subr.mxu0 0.0
    %224 = vmatpush2.xpose.msra.mxu0 0.0
    %225 = vmatprep.subr.mxu0 0.0
    %226 = vmatpush2.xpose.msra.mxu0 0.0
    %227 = vmatprep.subr.mxu0 0.0
    %228 = vmatpush2.xpose.msra.mxu0 0.0
    %229 = vmatprep.subr.mxu0 0.0
    %230 = vmatpush2.xpose.msra.mxu0 0.0
    %231 = vmatprep.subr.mxu0 0.0
    %232 = vmatpush2.xpose.msra.mxu0 0.0
    %233 = vmatprep.subr.mxu0 0.0
    %234 = vmatpush2.xpose.msra.mxu0 0.0
    %235 = vmatprep.subr.mxu0 0.0
    %236 = vmatpush2.xpose.msra.mxu0 0.0
    %237 = vmatprep.subr.mxu0 0.0
    %238 = vmatpush2.xpose.msra.mxu0 0.0
    %239 = vmatprep.subr.mxu0 0.0
    %240 = vmatpush2.xpose.msra.mxu0 0.0
    %241 = vmatprep.subr.mxu0 0.0
    %242 = vmatpush2.xpose.msra.mxu0 0.0
    %243 = vmatprep.subr.mxu0 0.0
    %244 = vmatpush2.xpose.msra.mxu0 0.0
    %245 = vmatprep.mubr.f32.mxu0 0.0
    %246 = vmatmul.mubr.f32.gmra.mxu0 %v177
    %v247 = vpop.f32.mrf.mxu0
    %v248 = vadd.f32 0.0, %v247
    %v249 = vpop.f32.mrf.mxu0
    %250 = vdwg.mxu0
    %v251 = vsel %vm175, %v248, -inf
    %252 = vmax.xlane.f32.xlu0 %v251
    %v253 = vpop.xlane.xlu0 %252
    %v254 = vsub.f32 %v248, %v253
    %v255 = vmul.f32 %v254, 1.442695
    %v256 = vpow.pop %v255
    %v257 = vsel %vm175, %v256, 0.0
    %258 = vadd.xlane.f32.xlu0 %v257
    %v259 = vpop.xlane.xlu0 %258
    %v260 = vrcp.pop %v259
    %v261 = vmul.f32 %v256, %v260
    %262 = vrot.lane.b32.xlu0 %v163, 64
    %v263 = vpop.permute.xlu0 %262
    %v266 = vsel %vm175, %v261, 0
    %268 = vmatprep.subr.mxu0 0.0
    %269 = vmatpush1.msra.mxu0 0.0
    %270 = vmatprep.subr.mxu0 0.0
    %271 = vmatpush1.msra.mxu0 0.0
    %272 = vmatprep.subr.mxu0 0.0
    %273 = vmatpush1.msra.mxu0 0.0
    %274 = vmatprep.subr.mxu0 0.0
    %275 = vmatpush1.msra.mxu0 0.0
    %276 = vmatprep.subr.mxu0 0.0
    %277 = vmatpush1.msra.mxu0 0.0
    %278 = vmatprep.subr.mxu0 0.0
    %279 = vmatpush1.msra.mxu0 0.0
    %280 = vmatprep.subr.mxu0 0.0
    %281 = vmatpush1.msra.mxu0 0.0
    %282 = vmatprep.subr.mxu0 0.0
    %283 = vmatpush1.msra.mxu0 0.0
    %284 = vmatprep.subr.mxu0 0.0
    %285 = vmatpush1.msra.mxu0 0.0
    %286 = vmatprep.subr.mxu0 0.0
    %287 = vmatpush1.msra.mxu0 0.0
    %288 = vmatprep.subr.mxu0 0.0
    %289 = vmatpush1.msra.mxu0 0.0
    %290 = vmatprep.subr.mxu0 0.0
    %291 = vmatpush1.msra.mxu0 0.0
    %292 = vmatprep.subr.mxu0 0.0
    %293 = vmatpush1.msra.mxu0 0.0
    %294 = vmatprep.subr.mxu0 0.0
    %295 = vmatpush1.msra.mxu0 0.0
    %296 = vmatprep.subr.mxu0 0.0
    %297 = vmatpush1.msra.mxu0 0.0
    %298 = vmatprep.subr.mxu0 0.0
    %299 = vmatpush1.msra.mxu0 %v263
    %300 = vmatprep.subr.mxu0 0.0
    %301 = vmatpush2.msra.mxu0 0.0
    %302 = vmatprep.subr.mxu0 0.0
    %303 = vmatpush2.msra.mxu0 0.0
    %304 = vmatprep.subr.mxu0 0.0
    %305 = vmatpush2.msra.mxu0 0.0
    %306 = vmatprep.subr.mxu0 0.0
    %307 = vmatpush2.msra.mxu0 0.0
    %308 = vmatprep.subr.mxu0 0.0
    %309 = vmatpush2.msra.mxu0 0.0
    %310 = vmatprep.subr.mxu0 0.0
    %311 = vmatpush2.msra.mxu0 0.0
    %312 = vmatprep.subr.mxu0 0.0
    %313 = vmatpush2.msra.mxu0 0.0
    %314 = vmatprep.subr.mxu0 0.0
    %315 = vmatpush2.msra.mxu0 0.0
    %316 = vmatprep.subr.mxu0 0.0
    %317 = vmatpush2.msra.mxu0 0.0
    %318 = vmatprep.subr.mxu0 0.0
    %319 = vmatpush2.msra.mxu0 0.0
    %320 = vmatprep.subr.mxu0 0.0
    %321 = vmatpush2.msra.mxu0 0.0
    %322 = vmatprep.subr.mxu0 0.0
    %323 = vmatpush2.msra.mxu0 0.0
    %324 = vmatprep.subr.mxu0 0.0
    %325 = vmatpush2.msra.mxu0 0.0
    %326 = vmatprep.subr.mxu0 0.0
    %327 = vmatpush2.msra.mxu0 0.0
    %328 = vmatprep.subr.mxu0 0.0
    %329 = vmatpush2.msra.mxu0 0.0
    %330 = vmatprep.subr.mxu0 0.0
    %331 = vmatpush2.msra.mxu0 0.0
    %332 = vmatprep.mubr.f32.mxu0 0.0
    %333 = vmatmul.mubr.f32.gmra.mxu0 %v266
    %v334 = vpop.f32.mrf.mxu0
    %v335 = vadd.f32 0.0, %v334
    %v336 = vpop.f32.mrf.mxu0
    %337 = vdwg.mxu0
    %338 = vst.msk [vmem:[#allocation2] sm:$0xff] %vm175, %v335
    %339 = vrot.lane.b32.xlu0 %v171, 120
    %v340 = vpop.permute.xlu0 %339
    %341 = vrot.lane.b32.xlu0 %v163, 88
    %v342 = vpop.permute.xlu0 %341
    %v343 = vsel %vm175, %v340, 0
    %v345 = vsel %vm175, %v342, 0
    %347 = vmatprep.subr.mxu0 0.0
    %348 = vmatpush1.xpose.msra.mxu0 0.0
    %349 = vmatprep.subr.mxu0 0.0
    %350 = vmatpush1.xpose.msra.mxu0 0.0
    %351 = vmatprep.subr.mxu0 0.0
    %352 = vmatpush1.xpose.msra.mxu0 0.0
    %353 = vmatprep.subr.mxu0 0.0
    %354 = vmatpush1.xpose.msra.mxu0 0.0
    %355 = vmatprep.subr.mxu0 0.0
    %356 = vmatpush1.xpose.msra.mxu0 0.0
    %357 = vmatprep.subr.mxu0 0.0
    %358 = vmatpush1.xpose.msra.mxu0 0.0
    %359 = vmatprep.subr.mxu0 0.0
    %360 = vmatpush1.xpose.msra.mxu0 0.0
    %361 = vmatprep.subr.mxu0 0.0
    %362 = vmatpush1.xpose.msra.mxu0 0.0
    %363 = vmatprep.subr.mxu0 0.0
    %364 = vmatpush1.xpose.msra.mxu0 0.0
    %365 = vmatprep.subr.mxu0 0.0
    %366 = vmatpush1.xpose.msra.mxu0 0.0
    %367 = vmatprep.subr.mxu0 0.0
    %368 = vmatpush1.xpose.msra.mxu0 0.0
    %369 = vmatprep.subr.mxu0 0.0
    %370 = vmatpush1.xpose.msra.mxu0 0.0
    %371 = vmatprep.subr.mxu0 0.0
    %372 = vmatpush1.xpose.msra.mxu0 0.0
    %373 = vmatprep.subr.mxu0 0.0
    %374 = vmatpush1.xpose.msra.mxu0 0.0
    %375 = vmatprep.subr.mxu0 0.0
    %376 = vmatpush1.xpose.msra.mxu0 0.0
    %377 = vmatprep.subr.mxu0 0.0
    %378 = vmatpush1.xpose.msra.mxu0 %v345
    %379 = vmatprep.subr.mxu0 0.0
    %380 = vmatpush2.xpose.msra.mxu0 0.0
    %381 = vmatprep.subr.mxu0 0.0
    %382 = vmatpush2.xpose.msra.mxu0 0.0
    %383 = vmatprep.subr.mxu0 0.0
    %384 = vmatpush2.xpose.msra.mxu0 0.0
    %385 = vmatprep.subr.mxu0 0.0
    %386 = vmatpush2.xpose.msra.mxu0 0.0
    %387 = vmatprep.subr.mxu0 0.0
    %388 = vmatpush2.xpose.msra.mxu0 0.0
    %389 = vmatprep.subr.mxu0 0.0
    %390 = vmatpush2.xpose.msra.mxu0 0.0
    %391 = vmatprep.subr.mxu0 0.0
    %392 = vmatpush2.xpose.msra.mxu0 0.0
    %393 = vmatprep.subr.mxu0 0.0
    %394 = vmatpush2.xpose.msra.mxu0 0.0
    %395 = vmatprep.subr.mxu0 0.0
    %396 = vmatpush2.xpose.msra.mxu0 0.0
    %397 = vmatprep.subr.mxu0 0.0
    %398 = vmatpush2.xpose.msra.mxu0 0.0
    %399 = vmatprep.subr.mxu0 0.0
    %400 = vmatpush2.xpose.msra.mxu0 0.0
    %401 = vmatprep.subr.mxu0 0.0
    %402 = vmatpush2.xpose.msra.mxu0 0.0
    %403 = vmatprep.subr.mxu0 0.0
    %404 = vmatpush2.xpose.msra.mxu0 0.0
    %405 = vmatprep.subr.mxu0 0.0
    %406 = vmatpush2.xpose.msra.mxu0 0.0
    %407 = vmatprep.subr.mxu0 0.0
    %408 = vmatpush2.xpose.msra.mxu0 0.0
    %409 = vmatprep.subr.mxu0 0.0
    %410 = vmatpush2.xpose.msra.mxu0 0.0
    %411 = vmatprep.mubr.f32.mxu0 0.0
    %412 = vmatmul.mubr.f32.gmra.mxu0 %v343
    %v413 = vpop.f32.mrf.mxu0
    %v414 = vadd.f32 0.0, %v413
    %v415 = vpop.f32.mrf.mxu0
    %416 = vdwg.mxu0
    %v417 = vsel %vm175, %v414, -inf
    %418 = vmax.xlane.f32.xlu0 %v417
    %v419 = vpop.xlane.xlu0 %418
    %v420 = vsub.f32 %v414, %v419
    %v421 = vmul.f32 %v420, 1.442695
    %v422 = vpow.pop %v421
    %v423 = vsel %vm175, %v422, 0.0
    %424 = vadd.xlane.f32.xlu0 %v423
    %v425 = vpop.xlane.xlu0 %424
    %v426 = vrcp.pop %v425
    %v427 = vmul.f32 %v422, %v426
    %428 = vrot.lane.b32.xlu0 %v163, 56
    %v429 = vpop.permute.xlu0 %428
    %v432 = vsel %vm175, %v427, 0
    %434 = vmatprep.subr.mxu0 0.0
    %435 = vmatpush1.msra.mxu0 0.0
    %436 = vmatprep.subr.mxu0 0.0
    %437 = vmatpush1.msra.mxu0 0.0
    %438 = vmatprep.subr.mxu0 0.0
    %439 = vmatpush1.msra.mxu0 0.0
    %440 = vmatprep.subr.mxu0 0.0
    %441 = vmatpush1.msra.mxu0 0.0
    %442 = vmatprep.subr.mxu0 0.0
    %443 = vmatpush1.msra.mxu0 0.0
    %444 = vmatprep.subr.mxu0 0.0
    %445 = vmatpush1.msra.mxu0 0.0
    %446 = vmatprep.subr.mxu0 0.0
    %447 = vmatpush1.msra.mxu0 0.0
    %448 = vmatprep.subr.mxu0 0.0
    %449 = vmatpush1.msra.mxu0 0.0
    %450 = vmatprep.subr.mxu0 0.0
    %451 = vmatpush1.msra.mxu0 0.0
    %452 = vmatprep.subr.mxu0 0.0
    %453 = vmatpush1.msra.mxu0 0.0
    %454 = vmatprep.subr.mxu0 0.0
    %455 = vmatpush1.msra.mxu0 0.0
    %456 = vmatprep.subr.mxu0 0.0
    %457 = vmatpush1.msra.mxu0 0.0
    %458 = vmatprep.subr.mxu0 0.0
    %459 = vmatpush1.msra.mxu0 0.0
    %460 = vmatprep.subr.mxu0 0.0
    %461 = vmatpush1.msra.mxu0 0.0
    %462 = vmatprep.subr.mxu0 0.0
    %463 = vmatpush1.msra.mxu0 0.0
    %464 = vmatprep.subr.mxu0 0.0
    %465 = vmatpush1.msra.mxu0 %v429
    %466 = vmatprep.subr.mxu0 0.0
    %467 = vmatpush2.msra.mxu0 0.0
    %468 = vmatprep.subr.mxu0 0.0
    %469 = vmatpush2.msra.mxu0 0.0
    %470 = vmatprep.subr.mxu0 0.0
    %471 = vmatpush2.msra.mxu0 0.0
    %472 = vmatprep.subr.mxu0 0.0
    %473 = vmatpush2.msra.mxu0 0.0
    %474 = vmatprep.subr.mxu0 0.0
    %475 = vmatpush2.msra.mxu0 0.0
    %476 = vmatprep.subr.mxu0 0.0
    %477 = vmatpush2.msra.mxu0 0.0
    %478 = vmatprep.subr.mxu0 0.0
    %479 = vmatpush2.msra.mxu0 0.0
    %480 = vmatprep.subr.mxu0 0.0
    %481 = vmatpush2.msra.mxu0 0.0
    %482 = vmatprep.subr.mxu0 0.0
    %483 = vmatpush2.msra.mxu0 0.0
    %484 = vmatprep.subr.mxu0 0.0
    %485 = vmatpush2.msra.mxu0 0.0
    %486 = vmatprep.subr.mxu0 0.0
    %487 = vmatpush2.msra.mxu0 0.0
    %488 = vmatprep.subr.mxu0 0.0
    %489 = vmatpush2.msra.mxu0 0.0
    %490 = vmatprep.subr.mxu0 0.0
    %491 = vmatpush2.msra.mxu0 0.0
    %492 = vmatprep.subr.mxu0 0.0
    %493 = vmatpush2.msra.mxu0 0.0
    %494 = vmatprep.subr.mxu0 0.0
    %495 = vmatpush2.msra.mxu0 0.0
    %496 = vmatprep.subr.mxu0 0.0
    %497 = vmatpush2.msra.mxu0 0.0
    %498 = vmatprep.mubr.f32.mxu0 0.0
    %499 = vmatmul.mubr.f32.gmra.mxu0 %v432
    %v500 = vpop.f32.mrf.mxu0
    %v501 = vadd.f32 0.0, %v500
    %v502 = vpop.f32.mrf.mxu0
    %503 = vdwg.mxu0
    %505 = vrot.lane.b32.xlu0 %v501, 8
    %v506 = vpop.permute.xlu0 %505
    %vm508 = vcmask 130112
    %509 = vst.msk [vmem:[#allocation2] sm:$0xff] %vm508, %v506
    %510 = vrot.lane.b32.xlu0 %v171, 112
    %v511 = vpop.permute.xlu0 %510
    %512 = vrot.lane.b32.xlu0 %v163, 80
    %v513 = vpop.permute.xlu0 %512
    %v514 = vsel %vm175, %v511, 0
    %v516 = vsel %vm175, %v513, 0
    %518 = vmatprep.subr.mxu0 0.0
    %519 = vmatpush1.xpose.msra.mxu0 0.0
    %520 = vmatprep.subr.mxu0 0.0
    %521 = vmatpush1.xpose.msra.mxu0 0.0
    %522 = vmatprep.subr.mxu0 0.0
    %523 = vmatpush1.xpose.msra.mxu0 0.0
    %524 = vmatprep.subr.mxu0 0.0
    %525 = vmatpush1.xpose.msra.mxu0 0.0
    %526 = vmatprep.subr.mxu0 0.0
    %527 = vmatpush1.xpose.msra.mxu0 0.0
    %528 = vmatprep.subr.mxu0 0.0
    %529 = vmatpush1.xpose.msra.mxu0 0.0
    %530 = vmatprep.subr.mxu0 0.0
    %531 = vmatpush1.xpose.msra.mxu0 0.0
    %532 = vmatprep.subr.mxu0 0.0
    %533 = vmatpush1.xpose.msra.mxu0 0.0
    %534 = vmatprep.subr.mxu0 0.0
    %535 = vmatpush1.xpose.msra.mxu0 0.0
    %536 = vmatprep.subr.mxu0 0.0
    %537 = vmatpush1.xpose.msra.mxu0 0.0
    %538 = vmatprep.subr.mxu0 0.0
    %539 = vmatpush1.xpose.msra.mxu0 0.0
    %540 = vmatprep.subr.mxu0 0.0
    %541 = vmatpush1.xpose.msra.mxu0 0.0
    %542 = vmatprep.subr.mxu0 0.0
    %543 = vmatpush1.xpose.msra.mxu0 0.0
    %544 = vmatprep.subr.mxu0 0.0
    %545 = vmatpush1.xpose.msra.mxu0 0.0
    %546 = vmatprep.subr.mxu0 0.0
    %547 = vmatpush1.xpose.msra.mxu0 0.0
    %548 = vmatprep.subr.mxu0 0.0
    %549 = vmatpush1.xpose.msra.mxu0 %v516
    %550 = vmatprep.subr.mxu0 0.0
    %551 = vmatpush2.xpose.msra.mxu0 0.0
    %552 = vmatprep.subr.mxu0 0.0
    %553 = vmatpush2.xpose.msra.mxu0 0.0
    %554 = vmatprep.subr.mxu0 0.0
    %555 = vmatpush2.xpose.msra.mxu0 0.0
    %556 = vmatprep.subr.mxu0 0.0
    %557 = vmatpush2.xpose.msra.mxu0 0.0
    %558 = vmatprep.subr.mxu0 0.0
    %559 = vmatpush2.xpose.msra.mxu0 0.0
    %560 = vmatprep.subr.mxu0 0.0
    %561 = vmatpush2.xpose.msra.mxu0 0.0
    %562 = vmatprep.subr.mxu0 0.0
    %563 = vmatpush2.xpose.msra.mxu0 0.0
    %564 = vmatprep.subr.mxu0 0.0
    %565 = vmatpush2.xpose.msra.mxu0 0.0
    %566 = vmatprep.subr.mxu0 0.0
    %567 = vmatpush2.xpose.msra.mxu0 0.0
    %568 = vmatprep.subr.mxu0 0.0
    %569 = vmatpush2.xpose.msra.mxu0 0.0
    %570 = vmatprep.subr.mxu0 0.0
    %571 = vmatpush2.xpose.msra.mxu0 0.0
    %572 = vmatprep.subr.mxu0 0.0
    %573 = vmatpush2.xpose.msra.mxu0 0.0
    %574 = vmatprep.subr.mxu0 0.0
    %575 = vmatpush2.xpose.msra.mxu0 0.0
    %576 = vmatprep.subr.mxu0 0.0
    %577 = vmatpush2.xpose.msra.mxu0 0.0
    %578 = vmatprep.subr.mxu0 0.0
    %579 = vmatpush2.xpose.msra.mxu0 0.0
    %580 = vmatprep.subr.mxu0 0.0
    %581 = vmatpush2.xpose.msra.mxu0 0.0
    %582 = vmatprep.mubr.f32.mxu0 0.0
    %583 = vmatmul.mubr.f32.gmra.mxu0 %v514
    %v584 = vpop.f32.mrf.mxu0
    %v585 = vadd.f32 0.0, %v584
    %v586 = vpop.f32.mrf.mxu0
    %587 = vdwg.mxu0
    %v588 = vsel %vm175, %v585, -inf
    %589 = vmax.xlane.f32.xlu0 %v588
    %v590 = vpop.xlane.xlu0 %589
    %v591 = vsub.f32 %v585, %v590
    %v592 = vmul.f32 %v591, 1.442695
    %v593 = vpow.pop %v592
    %v594 = vsel %vm175, %v593, 0.0
    %595 = vadd.xlane.f32.xlu0 %v594
    %v596 = vpop.xlane.xlu0 %595
    %v597 = vrcp.pop %v596
    %v598 = vmul.f32 %v593, %v597
    %599 = vrot.lane.b32.xlu0 %v163, 48
    %v600 = vpop.permute.xlu0 %599
    %v603 = vsel %vm175, %v598, 0
    %605 = vmatprep.subr.mxu0 0.0
    %606 = vmatpush1.msra.mxu0 0.0
    %607 = vmatprep.subr.mxu0 0.0
    %608 = vmatpush1.msra.mxu0 0.0
    %609 = vmatprep.subr.mxu0 0.0
    %610 = vmatpush1.msra.mxu0 0.0
    %611 = vmatprep.subr.mxu0 0.0
    %612 = vmatpush1.msra.mxu0 0.0
    %613 = vmatprep.subr.mxu0 0.0
    %614 = vmatpush1.msra.mxu0 0.0
    %615 = vmatprep.subr.mxu0 0.0
    %616 = vmatpush1.msra.mxu0 0.0
    %617 = vmatprep.subr.mxu0 0.0
    %618 = vmatpush1.msra.mxu0 0.0
    %619 = vmatprep.subr.mxu0 0.0
    %620 = vmatpush1.msra.mxu0 0.0
    %621 = vmatprep.subr.mxu0 0.0
    %622 = vmatpush1.msra.mxu0 0.0
    %623 = vmatprep.subr.mxu0 0.0
    %624 = vmatpush1.msra.mxu0 0.0
    %625 = vmatprep.subr.mxu0 0.0
    %626 = vmatpush1.msra.mxu0 0.0
    %627 = vmatprep.subr.mxu0 0.0
    %628 = vmatpush1.msra.mxu0 0.0
    %629 = vmatprep.subr.mxu0 0.0
    %630 = vmatpush1.msra.mxu0 0.0
    %631 = vmatprep.subr.mxu0 0.0
    %632 = vmatpush1.msra.mxu0 0.0
    %633 = vmatprep.subr.mxu0 0.0
    %634 = vmatpush1.msra.mxu0 0.0
    %635 = vmatprep.subr.mxu0 0.0
    %636 = vmatpush1.msra.mxu0 %v600
    %637 = vmatprep.subr.mxu0 0.0
    %638 = vmatpush2.msra.mxu0 0.0
    %639 = vmatprep.subr.mxu0 0.0
    %640 = vmatpush2.msra.mxu0 0.0
    %641 = vmatprep.subr.mxu0 0.0
    %642 = vmatpush2.msra.mxu0 0.0
    %643 = vmatprep.subr.mxu0 0.0
    %644 = vmatpush2.msra.mxu0 0.0
    %645 = vmatprep.subr.mxu0 0.0
    %646 = vmatpush2.msra.mxu0 0.0
    %647 = vmatprep.subr.mxu0 0.0
    %648 = vmatpush2.msra.mxu0 0.0
    %649 = vmatprep.subr.mxu0 0.0
    %650 = vmatpush2.msra.mxu0 0.0
    %651 = vmatprep.subr.mxu0 0.0
    %652 = vmatpush2.msra.mxu0 0.0
    %653 = vmatprep.subr.mxu0 0.0
    %654 = vmatpush2.msra.mxu0 0.0
    %655 = vmatprep.subr.mxu0 0.0
    %656 = vmatpush2.msra.mxu0 0.0
    %657 = vmatprep.subr.mxu0 0.0
    %658 = vmatpush2.msra.mxu0 0.0
    %659 = vmatprep.subr.mxu0 0.0
    %660 = vmatpush2.msra.mxu0 0.0
    %661 = vmatprep.subr.mxu0 0.0
    %662 = vmatpush2.msra.mxu0 0.0
    %663 = vmatprep.subr.mxu0 0.0
    %664 = vmatpush2.msra.mxu0 0.0
    %665 = vmatprep.subr.mxu0 0.0
    %666 = vmatpush2.msra.mxu0 0.0
    %667 = vmatprep.subr.mxu0 0.0
    %668 = vmatpush2.msra.mxu0 0.0
    %669 = vmatprep.mubr.f32.mxu0 0.0
    %670 = vmatmul.mubr.f32.gmra.mxu0 %v603
    %v671 = vpop.f32.mrf.mxu0
    %v672 = vadd.f32 0.0, %v671
    %v673 = vpop.f32.mrf.mxu0
    %674 = vdwg.mxu0
    %676 = vrot.lane.b32.xlu0 %v672, 16
    %v677 = vpop.permute.xlu0 %676
    %vm679 = vcmask 195712
    %680 = vst.msk [vmem:[#allocation2] sm:$0xff] %vm679, %v677
    %681 = vrot.lane.b32.xlu0 %v171, 104
    %v682 = vpop.permute.xlu0 %681
    %683 = vrot.lane.b32.xlu0 %v163, 72
    %v684 = vpop.permute.xlu0 %683
    %v685 = vsel %vm175, %v682, 0
    %v687 = vsel %vm175, %v684, 0
    %689 = vmatprep.subr.mxu0 0.0
    %690 = vmatpush1.xpose.msra.mxu0 0.0
    %691 = vmatprep.subr.mxu0 0.0
    %692 = vmatpush1.xpose.msra.mxu0 0.0
    %693 = vmatprep.subr.mxu0 0.0
    %694 = vmatpush1.xpose.msra.mxu0 0.0
    %695 = vmatprep.subr.mxu0 0.0
    %696 = vmatpush1.xpose.msra.mxu0 0.0
    %697 = vmatprep.subr.mxu0 0.0
    %698 = vmatpush1.xpose.msra.mxu0 0.0
    %699 = vmatprep.subr.mxu0 0.0
    %700 = vmatpush1.xpose.msra.mxu0 0.0
    %701 = vmatprep.subr.mxu0 0.0
    %702 = vmatpush1.xpose.msra.mxu0 0.0
    %703 = vmatprep.subr.mxu0 0.0
    %704 = vmatpush1.xpose.msra.mxu0 0.0
    %705 = vmatprep.subr.mxu0 0.0
    %706 = vmatpush1.xpose.msra.mxu0 0.0
    %707 = vmatprep.subr.mxu0 0.0
    %708 = vmatpush1.xpose.msra.mxu0 0.0
    %709 = vmatprep.subr.mxu0 0.0
    %710 = vmatpush1.xpose.msra.mxu0 0.0
    %711 = vmatprep.subr.mxu0 0.0
    %712 = vmatpush1.xpose.msra.mxu0 0.0
    %713 = vmatprep.subr.mxu0 0.0
    %714 = vmatpush1.xpose.msra.mxu0 0.0
    %715 = vmatprep.subr.mxu0 0.0
    %716 = vmatpush1.xpose.msra.mxu0 0.0
    %717 = vmatprep.subr.mxu0 0.0
    %718 = vmatpush1.xpose.msra.mxu0 0.0
    %719 = vmatprep.subr.mxu0 0.0
    %720 = vmatpush1.xpose.msra.mxu0 %v687
    %721 = vmatprep.subr.mxu0 0.0
    %722 = vmatpush2.xpose.msra.mxu0 0.0
    %723 = vmatprep.subr.mxu0 0.0
    %724 = vmatpush2.xpose.msra.mxu0 0.0
    %725 = vmatprep.subr.mxu0 0.0
    %726 = vmatpush2.xpose.msra.mxu0 0.0
    %727 = vmatprep.subr.mxu0 0.0
    %728 = vmatpush2.xpose.msra.mxu0 0.0
    %729 = vmatprep.subr.mxu0 0.0
    %730 = vmatpush2.xpose.msra.mxu0 0.0
    %731 = vmatprep.subr.mxu0 0.0
    %732 = vmatpush2.xpose.msra.mxu0 0.0
    %733 = vmatprep.subr.mxu0 0.0
    %734 = vmatpush2.xpose.msra.mxu0 0.0
    %735 = vmatprep.subr.mxu0 0.0
    %736 = vmatpush2.xpose.msra.mxu0 0.0
    %737 = vmatprep.subr.mxu0 0.0
    %738 = vmatpush2.xpose.msra.mxu0 0.0
    %739 = vmatprep.subr.mxu0 0.0
    %740 = vmatpush2.xpose.msra.mxu0 0.0
    %741 = vmatprep.subr.mxu0 0.0
    %742 = vmatpush2.xpose.msra.mxu0 0.0
    %743 = vmatprep.subr.mxu0 0.0
    %744 = vmatpush2.xpose.msra.mxu0 0.0
    %745 = vmatprep.subr.mxu0 0.0
    %746 = vmatpush2.xpose.msra.mxu0 0.0
    %747 = vmatprep.subr.mxu0 0.0
    %748 = vmatpush2.xpose.msra.mxu0 0.0
    %749 = vmatprep.subr.mxu0 0.0
    %750 = vmatpush2.xpose.msra.mxu0 0.0
    %751 = vmatprep.subr.mxu0 0.0
    %752 = vmatpush2.xpose.msra.mxu0 0.0
    %753 = vmatprep.mubr.f32.mxu0 0.0
    %754 = vmatmul.mubr.f32.gmra.mxu0 %v685
    %v755 = vpop.f32.mrf.mxu0
    %v756 = vadd.f32 0.0, %v755
    %v757 = vpop.f32.mrf.mxu0
    %758 = vdwg.mxu0
    %v759 = vsel %vm175, %v756, -inf
    %760 = vmax.xlane.f32.xlu0 %v759
    %v761 = vpop.xlane.xlu0 %760
    %v762 = vsub.f32 %v756, %v761
    %v763 = vmul.f32 %v762, 1.442695
    %v764 = vpow.pop %v763
    %v765 = vsel %vm175, %v764, 0.0
    %766 = vadd.xlane.f32.xlu0 %v765
    %v767 = vpop.xlane.xlu0 %766
    %v768 = vrcp.pop %v767
    %v769 = vmul.f32 %v764, %v768
    %770 = vrot.lane.b32.xlu0 %v163, 40
    %v771 = vpop.permute.xlu0 %770
    %v774 = vsel %vm175, %v769, 0
    %776 = vmatprep.subr.mxu0 0.0
    %777 = vmatpush1.msra.mxu0 0.0
    %778 = vmatprep.subr.mxu0 0.0
    %779 = vmatpush1.msra.mxu0 0.0
    %780 = vmatprep.subr.mxu0 0.0
    %781 = vmatpush1.msra.mxu0 0.0
    %782 = vmatprep.subr.mxu0 0.0
    %783 = vmatpush1.msra.mxu0 0.0
    %784 = vmatprep.subr.mxu0 0.0
    %785 = vmatpush1.msra.mxu0 0.0
    %786 = vmatprep.subr.mxu0 0.0
    %787 = vmatpush1.msra.mxu0 0.0
    %788 = vmatprep.subr.mxu0 0.0
    %789 = vmatpush1.msra.mxu0 0.0
    %790 = vmatprep.subr.mxu0 0.0
    %791 = vmatpush1.msra.mxu0 0.0
    %792 = vmatprep.subr.mxu0 0.0
    %793 = vmatpush1.msra.mxu0 0.0
    %794 = vmatprep.subr.mxu0 0.0
    %795 = vmatpush1.msra.mxu0 0.0
    %796 = vmatprep.subr.mxu0 0.0
    %797 = vmatpush1.msra.mxu0 0.0
    %798 = vmatprep.subr.mxu0 0.0
    %799 = vmatpush1.msra.mxu0 0.0
    %800 = vmatprep.subr.mxu0 0.0
    %801 = vmatpush1.msra.mxu0 0.0
    %802 = vmatprep.subr.mxu0 0.0
    %803 = vmatpush1.msra.mxu0 0.0
    %804 = vmatprep.subr.mxu0 0.0
    %805 = vmatpush1.msra.mxu0 0.0
    %806 = vmatprep.subr.mxu0 0.0
    %807 = vmatpush1.msra.mxu0 %v771
    %808 = vmatprep.subr.mxu0 0.0
    %809 = vmatpush2.msra.mxu0 0.0
    %810 = vmatprep.subr.mxu0 0.0
    %811 = vmatpush2.msra.mxu0 0.0
    %812 = vmatprep.subr.mxu0 0.0
    %813 = vmatpush2.msra.mxu0 0.0
    %814 = vmatprep.subr.mxu0 0.0
    %815 = vmatpush2.msra.mxu0 0.0
    %816 = vmatprep.subr.mxu0 0.0
    %817 = vmatpush2.msra.mxu0 0.0
    %818 = vmatprep.subr.mxu0 0.0
    %819 = vmatpush2.msra.mxu0 0.0
    %820 = vmatprep.subr.mxu0 0.0
    %821 = vmatpush2.msra.mxu0 0.0
    %822 = vmatprep.subr.mxu0 0.0
    %823 = vmatpush2.msra.mxu0 0.0
    %824 = vmatprep.subr.mxu0 0.0
    %825 = vmatpush2.msra.mxu0 0.0
    %826 = vmatprep.subr.mxu0 0.0
    %827 = vmatpush2.msra.mxu0 0.0
    %828 = vmatprep.subr.mxu0 0.0
    %829 = vmatpush2.msra.mxu0 0.0
    %830 = vmatprep.subr.mxu0 0.0
    %831 = vmatpush2.msra.mxu0 0.0
    %832 = vmatprep.subr.mxu0 0.0
    %833 = vmatpush2.msra.mxu0 0.0
    %834 = vmatprep.subr.mxu0 0.0
    %835 = vmatpush2.msra.mxu0 0.0
    %836 = vmatprep.subr.mxu0 0.0
    %837 = vmatpush2.msra.mxu0 0.0
    %838 = vmatprep.subr.mxu0 0.0
    %839 = vmatpush2.msra.mxu0 0.0
    %840 = vmatprep.mubr.f32.mxu0 0.0
    %841 = vmatmul.mubr.f32.gmra.mxu0 %v774
    %v842 = vpop.f32.mrf.mxu0
    %v843 = vadd.f32 0.0, %v842
    %v844 = vpop.f32.mrf.mxu0
    %845 = vdwg.mxu0
    %847 = vrot.lane.b32.xlu0 %v843, 24
    %v848 = vpop.permute.xlu0 %847
    %vm850 = vcmask 261312
    %851 = vst.msk [vmem:[#allocation2] sm:$0xff] %vm850, %v848
    %v852 = vmul.f32 %v168, 0.35355338
    %854 = vrot.lane.b32.xlu0 %v168, 96
    %v855 = vpop.permute.xlu0 %854
    %v857 = vsel %vm175, %v852, 0
    %v859 = vsel %vm175, %v855, 0
    %861 = vmatprep.subr.mxu0 0.0
    %862 = vmatpush1.xpose.msra.mxu0 0.0
    %863 = vmatprep.subr.mxu0 0.0
    %864 = vmatpush1.xpose.msra.mxu0 0.0
    %865 = vmatprep.subr.mxu0 0.0
    %866 = vmatpush1.xpose.msra.mxu0 0.0
    %867 = vmatprep.subr.mxu0 0.0
    %868 = vmatpush1.xpose.msra.mxu0 0.0
    %869 = vmatprep.subr.mxu0 0.0
    %870 = vmatpush1.xpose.msra.mxu0 0.0
    %871 = vmatprep.subr.mxu0 0.0
    %872 = vmatpush1.xpose.msra.mxu0 0.0
    %873 = vmatprep.subr.mxu0 0.0
    %874 = vmatpush1.xpose.msra.mxu0 0.0
    %875 = vmatprep.subr.mxu0 0.0
    %876 = vmatpush1.xpose.msra.mxu0 0.0
    %877 = vmatprep.subr.mxu0 0.0
    %878 = vmatpush1.xpose.msra.mxu0 0.0
    %879 = vmatprep.subr.mxu0 0.0
    %880 = vmatpush1.xpose.msra.mxu0 0.0
    %881 = vmatprep.subr.mxu0 0.0
    %882 = vmatpush1.xpose.msra.mxu0 0.0
    %883 = vmatprep.subr.mxu0 0.0
    %884 = vmatpush1.xpose.msra.mxu0 0.0
    %885 = vmatprep.subr.mxu0 0.0
    %886 = vmatpush1.xpose.msra.mxu0 0.0
    %887 = vmatprep.subr.mxu0 0.0
    %888 = vmatpush1.xpose.msra.mxu0 0.0
    %889 = vmatprep.subr.mxu0 0.0
    %890 = vmatpush1.xpose.msra.mxu0 0.0
    %891 = vmatprep.subr.mxu0 0.0
    %892 = vmatpush1.xpose.msra.mxu0 %v859
    %893 = vmatprep.subr.mxu0 0.0
    %894 = vmatpush2.xpose.msra.mxu0 0.0
    %895 = vmatprep.subr.mxu0 0.0
    %896 = vmatpush2.xpose.msra.mxu0 0.0
    %897 = vmatprep.subr.mxu0 0.0
    %898 = vmatpush2.xpose.msra.mxu0 0.0
    %899 = vmatprep.subr.mxu0 0.0
    %900 = vmatpush2.xpose.msra.mxu0 0.0
    %901 = vmatprep.subr.mxu0 0.0
    %902 = vmatpush2.xpose.msra.mxu0 0.0
    %903 = vmatprep.subr.mxu0 0.0
    %904 = vmatpush2.xpose.msra.mxu0 0.0
    %905 = vmatprep.subr.mxu0 0.0
    %906 = vmatpush2.xpose.msra.mxu0 0.0
    %907 = vmatprep.subr.mxu0 0.0
    %908 = vmatpush2.xpose.msra.mxu0 0.0
    %909 = vmatprep.subr.mxu0 0.0
    %910 = vmatpush2.xpose.msra.mxu0 0.0
    %911 = vmatprep.subr.mxu0 0.0
    %912 = vmatpush2.xpose.msra.mxu0 0.0
    %913 = vmatprep.subr.mxu0 0.0
    %914 = vmatpush2.xpose.msra.mxu0 0.0
    %915 = vmatprep.subr.mxu0 0.0
    %916 = vmatpush2.xpose.msra.mxu0 0.0
    %917 = vmatprep.subr.mxu0 0.0
    %918 = vmatpush2.xpose.msra.mxu0 0.0
    %919 = vmatprep.subr.mxu0 0.0
    %920 = vmatpush2.xpose.msra.mxu0 0.0
    %921 = vmatprep.subr.mxu0 0.0
    %922 = vmatpush2.xpose.msra.mxu0 0.0
    %923 = vmatprep.subr.mxu0 0.0
    %924 = vmatpush2.xpose.msra.mxu0 0.0
    %925 = vmatprep.mubr.f32.mxu0 0.0
    %926 = vmatmul.mubr.f32.gmra.mxu0 %v857
    %v927 = vpop.f32.mrf.mxu0
    %v928 = vadd.f32 0.0, %v927
    %v929 = vpop.f32.mrf.mxu0
    %930 = vdwg.mxu0
    %v931 = vsel %vm175, %v928, -inf
    %932 = vmax.xlane.f32.xlu0 %v931
    %v933 = vpop.xlane.xlu0 %932
    %v934 = vsub.f32 %v928, %v933
    %v935 = vmul.f32 %v934, 1.442695
    %v936 = vpow.pop %v935
    %v937 = vsel %vm175, %v936, 0.0
    %938 = vadd.xlane.f32.xlu0 %v937
    %v939 = vpop.xlane.xlu0 %938
    %v940 = vrcp.pop %v939
    %v941 = vmul.f32 %v936, %v940
    %942 = vrot.lane.b32.xlu0 %v168, 64
    %v943 = vpop.permute.xlu0 %942
    %v946 = vsel %vm175, %v941, 0
    %948 = vmatprep.subr.mxu0 0.0
    %949 = vmatpush1.msra.mxu0 0.0
    %950 = vmatprep.subr.mxu0 0.0
    %951 = vmatpush1.msra.mxu0 0.0
    %952 = vmatprep.subr.mxu0 0.0
    %953 = vmatpush1.msra.mxu0 0.0
    %954 = vmatprep.subr.mxu0 0.0
    %955 = vmatpush1.msra.mxu0 0.0
    %956 = vmatprep.subr.mxu0 0.0
    %957 = vmatpush1.msra.mxu0 0.0
    %958 = vmatprep.subr.mxu0 0.0
    %959 = vmatpush1.msra.mxu0 0.0
    %960 = vmatprep.subr.mxu0 0.0
    %961 = vmatpush1.msra.mxu0 0.0
    %962 = vmatprep.subr.mxu0 0.0
    %963 = vmatpush1.msra.mxu0 0.0
    %964 = vmatprep.subr.mxu0 0.0
    %965 = vmatpush1.msra.mxu0 0.0
    %966 = vmatprep.subr.mxu0 0.0
    %967 = vmatpush1.msra.mxu0 0.0
    %968 = vmatprep.subr.mxu0 0.0
    %969 = vmatpush1.msra.mxu0 0.0
    %970 = vmatprep.subr.mxu0 0.0
    %971 = vmatpush1.msra.mxu0 0.0
    %972 = vmatprep.subr.mxu0 0.0
    %973 = vmatpush1.msra.mxu0 0.0
    %974 = vmatprep.subr.mxu0 0.0
    %975 = vmatpush1.msra.mxu0 0.0
    %976 = vmatprep.subr.mxu0 0.0
    %977 = vmatpush1.msra.mxu0 0.0
    %978 = vmatprep.subr.mxu0 0.0
    %979 = vmatpush1.msra.mxu0 %v943
    %980 = vmatprep.subr.mxu0 0.0
    %981 = vmatpush2.msra.mxu0 0.0
    %982 = vmatprep.subr.mxu0 0.0
    %983 = vmatpush2.msra.mxu0 0.0
    %984 = vmatprep.subr.mxu0 0.0
    %985 = vmatpush2.msra.mxu0 0.0
    %986 = vmatprep.subr.mxu0 0.0
    %987 = vmatpush2.msra.mxu0 0.0
    %988 = vmatprep.subr.mxu0 0.0
    %989 = vmatpush2.msra.mxu0 0.0
    %990 = vmatprep.subr.mxu0 0.0
    %991 = vmatpush2.msra.mxu0 0.0
    %992 = vmatprep.subr.mxu0 0.0
    %993 = vmatpush2.msra.mxu0 0.0
    %994 = vmatprep.subr.mxu0 0.0
    %995 = vmatpush2.msra.mxu0 0.0
    %996 = vmatprep.subr.mxu0 0.0
    %997 = vmatpush2.msra.mxu0 0.0
    %998 = vmatprep.subr.mxu0 0.0
    %999 = vmatpush2.msra.mxu0 0.0
    %1000 = vmatprep.subr.mxu0 0.0
    %1001 = vmatpush2.msra.mxu0 0.0
    %1002 = vmatprep.subr.mxu0 0.0
    %1003 = vmatpush2.msra.mxu0 0.0
    %1004 = vmatprep.subr.mxu0 0.0
    %1005 = vmatpush2.msra.mxu0 0.0
    %1006 = vmatprep.subr.mxu0 0.0
    %1007 = vmatpush2.msra.mxu0 0.0
    %1008 = vmatprep.subr.mxu0 0.0
    %1009 = vmatpush2.msra.mxu0 0.0
    %1010 = vmatprep.subr.mxu0 0.0
    %1011 = vmatpush2.msra.mxu0 0.0
    %1012 = vmatprep.mubr.f32.mxu0 0.0
    %1013 = vmatmul.mubr.f32.gmra.mxu0 %v946
    %v1014 = vpop.f32.mrf.mxu0
    %v1015 = vadd.f32 0.0, %v1014
    %v1016 = vpop.f32.mrf.mxu0
    %1017 = vdwg.mxu0
    %1018 = vst.msk [vmem:[#allocation2 + $0x8] sm:$0xff] %vm175, %v1015
    %1019 = vrot.lane.b32.xlu0 %v852, 120
    %v1020 = vpop.permute.xlu0 %1019
    %1021 = vrot.lane.b32.xlu0 %v168, 88
    %v1022 = vpop.permute.xlu0 %1021
    %v1023 = vsel %vm175, %v1020, 0
    %v1025 = vsel %vm175, %v1022, 0
    %1027 = vmatprep.subr.mxu0 0.0
    %1028 = vmatpush1.xpose.msra.mxu0 0.0
    %1029 = vmatprep.subr.mxu0 0.0
    %1030 = vmatpush1.xpose.msra.mxu0 0.0
    %1031 = vmatprep.subr.mxu0 0.0
    %1032 = vmatpush1.xpose.msra.mxu0 0.0
    %1033 = vmatprep.subr.mxu0 0.0
    %1034 = vmatpush1.xpose.msra.mxu0 0.0
    %1035 = vmatprep.subr.mxu0 0.0
    %1036 = vmatpush1.xpose.msra.mxu0 0.0
    %1037 = vmatprep.subr.mxu0 0.0
    %1038 = vmatpush1.xpose.msra.mxu0 0.0
    %1039 = vmatprep.subr.mxu0 0.0
    %1040 = vmatpush1.xpose.msra.mxu0 0.0
    %1041 = vmatprep.subr.mxu0 0.0
    %1042 = vmatpush1.xpose.msra.mxu0 0.0
    %1043 = vmatprep.subr.mxu0 0.0
    %1044 = vmatpush1.xpose.msra.mxu0 0.0
    %1045 = vmatprep.subr.mxu0 0.0
    %1046 = vmatpush1.xpose.msra.mxu0 0.0
    %1047 = vmatprep.subr.mxu0 0.0
    %1048 = vmatpush1.xpose.msra.mxu0 0.0
    %1049 = vmatprep.subr.mxu0 0.0
    %1050 = vmatpush1.xpose.msra.mxu0 0.0
    %1051 = vmatprep.subr.mxu0 0.0
    %1052 = vmatpush1.xpose.msra.mxu0 0.0
    %1053 = vmatprep.subr.mxu0 0.0
    %1054 = vmatpush1.xpose.msra.mxu0 0.0
    %1055 = vmatprep.subr.mxu0 0.0
    %1056 = vmatpush1.xpose.msra.mxu0 0.0
    %1057 = vmatprep.subr.mxu0 0.0
    %1058 = vmatpush1.xpose.msra.mxu0 %v1025
    %1059 = vmatprep.subr.mxu0 0.0
    %1060 = vmatpush2.xpose.msra.mxu0 0.0
    %1061 = vmatprep.subr.mxu0 0.0
    %1062 = vmatpush2.xpose.msra.mxu0 0.0
    %1063 = vmatprep.subr.mxu0 0.0
    %1064 = vmatpush2.xpose.msra.mxu0 0.0
    %1065 = vmatprep.subr.mxu0 0.0
    %1066 = vmatpush2.xpose.msra.mxu0 0.0
    %1067 = vmatprep.subr.mxu0 0.0
    %1068 = vmatpush2.xpose.msra.mxu0 0.0
    %1069 = vmatprep.subr.mxu0 0.0
    %1070 = vmatpush2.xpose.msra.mxu0 0.0
    %1071 = vmatprep.subr.mxu0 0.0
    %1072 = vmatpush2.xpose.msra.mxu0 0.0
    %1073 = vmatprep.subr.mxu0 0.0
    %1074 = vmatpush2.xpose.msra.mxu0 0.0
    %1075 = vmatprep.subr.mxu0 0.0
    %1076 = vmatpush2.xpose.msra.mxu0 0.0
    %1077 = vmatprep.subr.mxu0 0.0
    %1078 = vmatpush2.xpose.msra.mxu0 0.0
    %1079 = vmatprep.subr.mxu0 0.0
    %1080 = vmatpush2.xpose.msra.mxu0 0.0
    %1081 = vmatprep.subr.mxu0 0.0
    %1082 = vmatpush2.xpose.msra.mxu0 0.0
    %1083 = vmatprep.subr.mxu0 0.0
    %1084 = vmatpush2.xpose.msra.mxu0 0.0
    %1085 = vmatprep.subr.mxu0 0.0
    %1086 = vmatpush2.xpose.msra.mxu0 0.0
    %1087 = vmatprep.subr.mxu0 0.0
    %1088 = vmatpush2.xpose.msra.mxu0 0.0
    %1089 = vmatprep.subr.mxu0 0.0
    %1090 = vmatpush2.xpose.msra.mxu0 0.0
    %1091 = vmatprep.mubr.f32.mxu0 0.0
    %1092 = vmatmul.mubr.f32.gmra.mxu0 %v1023
    %v1093 = vpop.f32.mrf.mxu0
    %v1094 = vadd.f32 0.0, %v1093
    %v1095 = vpop.f32.mrf.mxu0
    %1096 = vdwg.mxu0
    %v1097 = vsel %vm175, %v1094, -inf
    %1098 = vmax.xlane.f32.xlu0 %v1097
    %v1099 = vpop.xlane.xlu0 %1098
    %v1100 = vsub.f32 %v1094, %v1099
    %v1101 = vmul.f32 %v1100, 1.442695
    %v1102 = vpow.pop %v1101
    %v1103 = vsel %vm175, %v1102, 0.0
    %1104 = vadd.xlane.f32.xlu0 %v1103
    %v1105 = vpop.xlane.xlu0 %1104
    %v1106 = vrcp.pop %v1105
    %v1107 = vmul.f32 %v1102, %v1106
    %1108 = vrot.lane.b32.xlu0 %v168, 56
    %v1109 = vpop.permute.xlu0 %1108
    %v1112 = vsel %vm175, %v1107, 0
    %1114 = vmatprep.subr.mxu0 0.0
    %1115 = vmatpush1.msra.mxu0 0.0
    %1116 = vmatprep.subr.mxu0 0.0
    %1117 = vmatpush1.msra.mxu0 0.0
    %1118 = vmatprep.subr.mxu0 0.0
    %1119 = vmatpush1.msra.mxu0 0.0
    %1120 = vmatprep.subr.mxu0 0.0
    %1121 = vmatpush1.msra.mxu0 0.0
    %1122 = vmatprep.subr.mxu0 0.0
    %1123 = vmatpush1.msra.mxu0 0.0
    %1124 = vmatprep.subr.mxu0 0.0
    %1125 = vmatpush1.msra.mxu0 0.0
    %1126 = vmatprep.subr.mxu0 0.0
    %1127 = vmatpush1.msra.mxu0 0.0
    %1128 = vmatprep.subr.mxu0 0.0
    %1129 = vmatpush1.msra.mxu0 0.0
    %1130 = vmatprep.subr.mxu0 0.0
    %1131 = vmatpush1.msra.mxu0 0.0
    %1132 = vmatprep.subr.mxu0 0.0
    %1133 = vmatpush1.msra.mxu0 0.0
    %1134 = vmatprep.subr.mxu0 0.0
    %1135 = vmatpush1.msra.mxu0 0.0
    %1136 = vmatprep.subr.mxu0 0.0
    %1137 = vmatpush1.msra.mxu0 0.0
    %1138 = vmatprep.subr.mxu0 0.0
    %1139 = vmatpush1.msra.mxu0 0.0
    %1140 = vmatprep.subr.mxu0 0.0
    %1141 = vmatpush1.msra.mxu0 0.0
    %1142 = vmatprep.subr.mxu0 0.0
    %1143 = vmatpush1.msra.mxu0 0.0
    %1144 = vmatprep.subr.mxu0 0.0
    %1145 = vmatpush1.msra.mxu0 %v1109
    %1146 = vmatprep.subr.mxu0 0.0
    %1147 = vmatpush2.msra.mxu0 0.0
    %1148 = vmatprep.subr.mxu0 0.0
    %1149 = vmatpush2.msra.mxu0 0.0
    %1150 = vmatprep.subr.mxu0 0.0
    %1151 = vmatpush2.msra.mxu0 0.0
    %1152 = vmatprep.subr.mxu0 0.0
    %1153 = vmatpush2.msra.mxu0 0.0
    %1154 = vmatprep.subr.mxu0 0.0
    %1155 = vmatpush2.msra.mxu0 0.0
    %1156 = vmatprep.subr.mxu0 0.0
    %1157 = vmatpush2.msra.mxu0 0.0
    %1158 = vmatprep.subr.mxu0 0.0
    %1159 = vmatpush2.msra.mxu0 0.0
    %1160 = vmatprep.subr.mxu0 0.0
    %1161 = vmatpush2.msra.mxu0 0.0
    %1162 = vmatprep.subr.mxu0 0.0
    %1163 = vmatpush2.msra.mxu0 0.0
    %1164 = vmatprep.subr.mxu0 0.0
    %1165 = vmatpush2.msra.mxu0 0.0
    %1166 = vmatprep.subr.mxu0 0.0
    %1167 = vmatpush2.msra.mxu0 0.0
    %1168 = vmatprep.subr.mxu0 0.0
    %1169 = vmatpush2.msra.mxu0 0.0
    %1170 = vmatprep.subr.mxu0 0.0
    %1171 = vmatpush2.msra.mxu0 0.0
    %1172 = vmatprep.subr.mxu0 0.0
    %1173 = vmatpush2.msra.mxu0 0.0
    %1174 = vmatprep.subr.mxu0 0.0
    %1175 = vmatpush2.msra.mxu0 0.0
    %1176 = vmatprep.subr.mxu0 0.0
    %1177 = vmatpush2.msra.mxu0 0.0
    %1178 = vmatprep.mubr.f32.mxu0 0.0
    %1179 = vmatmul.mubr.f32.gmra.mxu0 %v1112
    %v1180 = vpop.f32.mrf.mxu0
    %v1181 = vadd.f32 0.0, %v1180
    %v1182 = vpop.f32.mrf.mxu0
    %1183 = vdwg.mxu0
    %1185 = vrot.lane.b32.xlu0 %v1181, 8
    %v1186 = vpop.permute.xlu0 %1185
    %1188 = vst.msk [vmem:[#allocation2 + $0x8] sm:$0xff] %vm508, %v1186
    %1189 = vrot.lane.b32.xlu0 %v852, 112
    %v1190 = vpop.permute.xlu0 %1189
    %1191 = vrot.lane.b32.xlu0 %v168, 80
    %v1192 = vpop.permute.xlu0 %1191
    %v1193 = vsel %vm175, %v1190, 0
    %v1195 = vsel %vm175, %v1192, 0
    %1197 = vmatprep.subr.mxu0 0.0
    %1198 = vmatpush1.xpose.msra.mxu0 0.0
    %1199 = vmatprep.subr.mxu0 0.0
    %1200 = vmatpush1.xpose.msra.mxu0 0.0
    %1201 = vmatprep.subr.mxu0 0.0
    %1202 = vmatpush1.xpose.msra.mxu0 0.0
    %1203 = vmatprep.subr.mxu0 0.0
    %1204 = vmatpush1.xpose.msra.mxu0 0.0
    %1205 = vmatprep.subr.mxu0 0.0
    %1206 = vmatpush1.xpose.msra.mxu0 0.0
    %1207 = vmatprep.subr.mxu0 0.0
    %1208 = vmatpush1.xpose.msra.mxu0 0.0
    %1209 = vmatprep.subr.mxu0 0.0
    %1210 = vmatpush1.xpose.msra.mxu0 0.0
    %1211 = vmatprep.subr.mxu0 0.0
    %1212 = vmatpush1.xpose.msra.mxu0 0.0
    %1213 = vmatprep.subr.mxu0 0.0
    %1214 = vmatpush1.xpose.msra.mxu0 0.0
    %1215 = vmatprep.subr.mxu0 0.0
    %1216 = vmatpush1.xpose.msra.mxu0 0.0
    %1217 = vmatprep.subr.mxu0 0.0
    %1218 = vmatpush1.xpose.msra.mxu0 0.0
    %1219 = vmatprep.subr.mxu0 0.0
    %1220 = vmatpush1.xpose.msra.mxu0 0.0
    %1221 = vmatprep.subr.mxu0 0.0
    %1222 = vmatpush1.xpose.msra.mxu0 0.0
    %1223 = vmatprep.subr.mxu0 0.0
    %1224 = vmatpush1.xpose.msra.mxu0 0.0
    %1225 = vmatprep.subr.mxu0 0.0
    %1226 = vmatpush1.xpose.msra.mxu0 0.0
    %1227 = vmatprep.subr.mxu0 0.0
    %1228 = vmatpush1.xpose.msra.mxu0 %v1195
    %1229 = vmatprep.subr.mxu0 0.0
    %1230 = vmatpush2.xpose.msra.mxu0 0.0
    %1231 = vmatprep.subr.mxu0 0.0
    %1232 = vmatpush2.xpose.msra.mxu0 0.0
    %1233 = vmatprep.subr.mxu0 0.0
    %1234 = vmatpush2.xpose.msra.mxu0 0.0
    %1235 = vmatprep.subr.mxu0 0.0
    %1236 = vmatpush2.xpose.msra.mxu0 0.0
    %1237 = vmatprep.subr.mxu0 0.0
    %1238 = vmatpush2.xpose.msra.mxu0 0.0
    %1239 = vmatprep.subr.mxu0 0.0
    %1240 = vmatpush2.xpose.msra.mxu0 0.0
    %1241 = vmatprep.subr.mxu0 0.0
    %1242 = vmatpush2.xpose.msra.mxu0 0.0
    %1243 = vmatprep.subr.mxu0 0.0
    %1244 = vmatpush2.xpose.msra.mxu0 0.0
    %1245 = vmatprep.subr.mxu0 0.0
    %1246 = vmatpush2.xpose.msra.mxu0 0.0
    %1247 = vmatprep.subr.mxu0 0.0
    %1248 = vmatpush2.xpose.msra.mxu0 0.0
    %1249 = vmatprep.subr.mxu0 0.0
    %1250 = vmatpush2.xpose.msra.mxu0 0.0
    %1251 = vmatprep.subr.mxu0 0.0
    %1252 = vmatpush2.xpose.msra.mxu0 0.0
    %1253 = vmatprep.subr.mxu0 0.0
    %1254 = vmatpush2.xpose.msra.mxu0 0.0
    %1255 = vmatprep.subr.mxu0 0.0
    %1256 = vmatpush2.xpose.msra.mxu0 0.0
    %1257 = vmatprep.subr.mxu0 0.0
    %1258 = vmatpush2.xpose.msra.mxu0 0.0
    %1259 = vmatprep.subr.mxu0 0.0
    %1260 = vmatpush2.xpose.msra.mxu0 0.0
    %1261 = vmatprep.mubr.f32.mxu0 0.0
    %1262 = vmatmul.mubr.f32.gmra.mxu0 %v1193
    %v1263 = vpop.f32.mrf.mxu0
    %v1264 = vadd.f32 0.0, %v1263
    %v1265 = vpop.f32.mrf.mxu0
    %1266 = vdwg.mxu0
    %v1267 = vsel %vm175, %v1264, -inf
    %1268 = vmax.xlane.f32.xlu0 %v1267
    %v1269 = vpop.xlane.xlu0 %1268
    %v1270 = vsub.f32 %v1264, %v1269
    %v1271 = vmul.f32 %v1270, 1.442695
    %v1272 = vpow.pop %v1271
    %v1273 = vsel %vm175, %v1272, 0.0
    %1274 = vadd.xlane.f32.xlu0 %v1273
    %v1275 = vpop.xlane.xlu0 %1274
    %v1276 = vrcp.pop %v1275
    %v1277 = vmul.f32 %v1272, %v1276
    %1278 = vrot.lane.b32.xlu0 %v168, 48
    %v1279 = vpop.permute.xlu0 %1278
    %v1282 = vsel %vm175, %v1277, 0
    %1284 = vmatprep.subr.mxu0 0.0
    %1285 = vmatpush1.msra.mxu0 0.0
    %1286 = vmatprep.subr.mxu0 0.0
    %1287 = vmatpush1.msra.mxu0 0.0
    %1288 = vmatprep.subr.mxu0 0.0
    %1289 = vmatpush1.msra.mxu0 0.0
    %1290 = vmatprep.subr.mxu0 0.0
    %1291 = vmatpush1.msra.mxu0 0.0
    %1292 = vmatprep.subr.mxu0 0.0
    %1293 = vmatpush1.msra.mxu0 0.0
    %1294 = vmatprep.subr.mxu0 0.0
    %1295 = vmatpush1.msra.mxu0 0.0
    %1296 = vmatprep.subr.mxu0 0.0
    %1297 = vmatpush1.msra.mxu0 0.0
    %1298 = vmatprep.subr.mxu0 0.0
    %1299 = vmatpush1.msra.mxu0 0.0
    %1300 = vmatprep.subr.mxu0 0.0
    %1301 = vmatpush1.msra.mxu0 0.0
    %1302 = vmatprep.subr.mxu0 0.0
    %1303 = vmatpush1.msra.mxu0 0.0
    %1304 = vmatprep.subr.mxu0 0.0
    %1305 = vmatpush1.msra.mxu0 0.0
    %1306 = vmatprep.subr.mxu0 0.0
    %1307 = vmatpush1.msra.mxu0 0.0
    %1308 = vmatprep.subr.mxu0 0.0
    %1309 = vmatpush1.msra.mxu0 0.0
    %1310 = vmatprep.subr.mxu0 0.0
    %1311 = vmatpush1.msra.mxu0 0.0
    %1312 = vmatprep.subr.mxu0 0.0
    %1313 = vmatpush1.msra.mxu0 0.0
    %1314 = vmatprep.subr.mxu0 0.0
    %1315 = vmatpush1.msra.mxu0 %v1279
    %1316 = vmatprep.subr.mxu0 0.0
    %1317 = vmatpush2.msra.mxu0 0.0
    %1318 = vmatprep.subr.mxu0 0.0
    %1319 = vmatpush2.msra.mxu0 0.0
    %1320 = vmatprep.subr.mxu0 0.0
    %1321 = vmatpush2.msra.mxu0 0.0
    %1322 = vmatprep.subr.mxu0 0.0
    %1323 = vmatpush2.msra.mxu0 0.0
    %1324 = vmatprep.subr.mxu0 0.0
    %1325 = vmatpush2.msra.mxu0 0.0
    %1326 = vmatprep.subr.mxu0 0.0
    %1327 = vmatpush2.msra.mxu0 0.0
    %1328 = vmatprep.subr.mxu0 0.0
    %1329 = vmatpush2.msra.mxu0 0.0
    %1330 = vmatprep.subr.mxu0 0.0
    %1331 = vmatpush2.msra.mxu0 0.0
    %1332 = vmatprep.subr.mxu0 0.0
    %1333 = vmatpush2.msra.mxu0 0.0
    %1334 = vmatprep.subr.mxu0 0.0
    %1335 = vmatpush2.msra.mxu0 0.0
    %1336 = vmatprep.subr.mxu0 0.0
    %1337 = vmatpush2.msra.mxu0 0.0
    %1338 = vmatprep.subr.mxu0 0.0
    %1339 = vmatpush2.msra.mxu0 0.0
    %1340 = vmatprep.subr.mxu0 0.0
    %1341 = vmatpush2.msra.mxu0 0.0
    %1342 = vmatprep.subr.mxu0 0.0
    %1343 = vmatpush2.msra.mxu0 0.0
    %1344 = vmatprep.subr.mxu0 0.0
    %1345 = vmatpush2.msra.mxu0 0.0
    %1346 = vmatprep.subr.mxu0 0.0
    %1347 = vmatpush2.msra.mxu0 0.0
    %1348 = vmatprep.mubr.f32.mxu0 0.0
    %1349 = vmatmul.mubr.f32.gmra.mxu0 %v1282
    %v1350 = vpop.f32.mrf.mxu0
    %v1351 = vadd.f32 0.0, %v1350
    %v1352 = vpop.f32.mrf.mxu0
    %1353 = vdwg.mxu0
    %1355 = vrot.lane.b32.xlu0 %v1351, 16
    %v1356 = vpop.permute.xlu0 %1355
    %1358 = vst.msk [vmem:[#allocation2 + $0x8] sm:$0xff] %vm679, %v1356
    %1359 = vrot.lane.b32.xlu0 %v852, 104
    %v1360 = vpop.permute.xlu0 %1359
    %1361 = vrot.lane.b32.xlu0 %v168, 72
    %v1362 = vpop.permute.xlu0 %1361
    %v1363 = vsel %vm175, %v1360, 0
    %v1365 = vsel %vm175, %v1362, 0
    %1367 = vmatprep.subr.mxu0 0.0
    %1368 = vmatpush1.xpose.msra.mxu0 0.0
    %1369 = vmatprep.subr.mxu0 0.0
    %1370 = vmatpush1.xpose.msra.mxu0 0.0
    %1371 = vmatprep.subr.mxu0 0.0
    %1372 = vmatpush1.xpose.msra.mxu0 0.0
    %1373 = vmatprep.subr.mxu0 0.0
    %1374 = vmatpush1.xpose.msra.mxu0 0.0
    %1375 = vmatprep.subr.mxu0 0.0
    %1376 = vmatpush1.xpose.msra.mxu0 0.0
    %1377 = vmatprep.subr.mxu0 0.0
    %1378 = vmatpush1.xpose.msra.mxu0 0.0
    %1379 = vmatprep.subr.mxu0 0.0
    %1380 = vmatpush1.xpose.msra.mxu0 0.0
    %1381 = vmatprep.subr.mxu0 0.0
    %1382 = vmatpush1.xpose.msra.mxu0 0.0
    %1383 = vmatprep.subr.mxu0 0.0
    %1384 = vmatpush1.xpose.msra.mxu0 0.0
    %1385 = vmatprep.subr.mxu0 0.0
    %1386 = vmatpush1.xpose.msra.mxu0 0.0
    %1387 = vmatprep.subr.mxu0 0.0
    %1388 = vmatpush1.xpose.msra.mxu0 0.0
    %1389 = vmatprep.subr.mxu0 0.0
    %1390 = vmatpush1.xpose.msra.mxu0 0.0
    %1391 = vmatprep.subr.mxu0 0.0
    %1392 = vmatpush1.xpose.msra.mxu0 0.0
    %1393 = vmatprep.subr.mxu0 0.0
    %1394 = vmatpush1.xpose.msra.mxu0 0.0
    %1395 = vmatprep.subr.mxu0 0.0
    %1396 = vmatpush1.xpose.msra.mxu0 0.0
    %1397 = vmatprep.subr.mxu0 0.0
    %1398 = vmatpush1.xpose.msra.mxu0 %v1365
    %1399 = vmatprep.subr.mxu0 0.0
    %1400 = vmatpush2.xpose.msra.mxu0 0.0
    %1401 = vmatprep.subr.mxu0 0.0
    %1402 = vmatpush2.xpose.msra.mxu0 0.0
    %1403 = vmatprep.subr.mxu0 0.0
    %1404 = vmatpush2.xpose.msra.mxu0 0.0
    %1405 = vmatprep.subr.mxu0 0.0
    %1406 = vmatpush2.xpose.msra.mxu0 0.0
    %1407 = vmatprep.subr.mxu0 0.0
    %1408 = vmatpush2.xpose.msra.mxu0 0.0
    %1409 = vmatprep.subr.mxu0 0.0
    %1410 = vmatpush2.xpose.msra.mxu0 0.0
    %1411 = vmatprep.subr.mxu0 0.0
    %1412 = vmatpush2.xpose.msra.mxu0 0.0
    %1413 = vmatprep.subr.mxu0 0.0
    %1414 = vmatpush2.xpose.msra.mxu0 0.0
    %1415 = vmatprep.subr.mxu0 0.0
    %1416 = vmatpush2.xpose.msra.mxu0 0.0
    %1417 = vmatprep.subr.mxu0 0.0
    %1418 = vmatpush2.xpose.msra.mxu0 0.0
    %1419 = vmatprep.subr.mxu0 0.0
    %1420 = vmatpush2.xpose.msra.mxu0 0.0
    %1421 = vmatprep.subr.mxu0 0.0
    %1422 = vmatpush2.xpose.msra.mxu0 0.0
    %1423 = vmatprep.subr.mxu0 0.0
    %1424 = vmatpush2.xpose.msra.mxu0 0.0
    %1425 = vmatprep.subr.mxu0 0.0
    %1426 = vmatpush2.xpose.msra.mxu0 0.0
    %1427 = vmatprep.subr.mxu0 0.0
    %1428 = vmatpush2.xpose.msra.mxu0 0.0
    %1429 = vmatprep.subr.mxu0 0.0
    %1430 = vmatpush2.xpose.msra.mxu0 0.0
    %1431 = vmatprep.mubr.f32.mxu0 0.0
    %1432 = vmatmul.mubr.f32.gmra.mxu0 %v1363
    %v1433 = vpop.f32.mrf.mxu0
    %v1434 = vadd.f32 0.0, %v1433
    %v1435 = vpop.f32.mrf.mxu0
    %1436 = vdwg.mxu0
    %v1437 = vsel %vm175, %v1434, -inf
    %1438 = vmax.xlane.f32.xlu0 %v1437
    %v1439 = vpop.xlane.xlu0 %1438
    %v1440 = vsub.f32 %v1434, %v1439
    %v1441 = vmul.f32 %v1440, 1.442695
    %v1442 = vpow.pop %v1441
    %v1443 = vsel %vm175, %v1442, 0.0
    %1444 = vadd.xlane.f32.xlu0 %v1443
    %v1445 = vpop.xlane.xlu0 %1444
    %v1446 = vrcp.pop %v1445
    %v1447 = vmul.f32 %v1442, %v1446
    %1448 = vrot.lane.b32.xlu0 %v168, 40
    %v1449 = vpop.permute.xlu0 %1448
    %v1452 = vsel %vm175, %v1447, 0
    %1454 = vmatprep.subr.mxu0 0.0
    %1455 = vmatpush1.msra.mxu0 0.0
    %1456 = vmatprep.subr.mxu0 0.0
    %1457 = vmatpush1.msra.mxu0 0.0
    %1458 = vmatprep.subr.mxu0 0.0
    %1459 = vmatpush1.msra.mxu0 0.0
    %1460 = vmatprep.subr.mxu0 0.0
    %1461 = vmatpush1.msra.mxu0 0.0
    %1462 = vmatprep.subr.mxu0 0.0
    %1463 = vmatpush1.msra.mxu0 0.0
    %1464 = vmatprep.subr.mxu0 0.0
    %1465 = vmatpush1.msra.mxu0 0.0
    %1466 = vmatprep.subr.mxu0 0.0
    %1467 = vmatpush1.msra.mxu0 0.0
    %1468 = vmatprep.subr.mxu0 0.0
    %1469 = vmatpush1.msra.mxu0 0.0
    %1470 = vmatprep.subr.mxu0 0.0
    %1471 = vmatpush1.msra.mxu0 0.0
    %1472 = vmatprep.subr.mxu0 0.0
    %1473 = vmatpush1.msra.mxu0 0.0
    %1474 = vmatprep.subr.mxu0 0.0
    %1475 = vmatpush1.msra.mxu0 0.0
    %1476 = vmatprep.subr.mxu0 0.0
    %1477 = vmatpush1.msra.mxu0 0.0
    %1478 = vmatprep.subr.mxu0 0.0
    %1479 = vmatpush1.msra.mxu0 0.0
    %1480 = vmatprep.subr.mxu0 0.0
    %1481 = vmatpush1.msra.mxu0 0.0
    %1482 = vmatprep.subr.mxu0 0.0
    %1483 = vmatpush1.msra.mxu0 0.0
    %1484 = vmatprep.subr.mxu0 0.0
    %1485 = vmatpush1.msra.mxu0 %v1449
    %1486 = vmatprep.subr.mxu0 0.0
    %1487 = vmatpush2.msra.mxu0 0.0
    %1488 = vmatprep.subr.mxu0 0.0
    %1489 = vmatpush2.msra.mxu0 0.0
    %1490 = vmatprep.subr.mxu0 0.0
    %1491 = vmatpush2.msra.mxu0 0.0
    %1492 = vmatprep.subr.mxu0 0.0
    %1493 = vmatpush2.msra.mxu0 0.0
    %1494 = vmatprep.subr.mxu0 0.0
    %1495 = vmatpush2.msra.mxu0 0.0
    %1496 = vmatprep.subr.mxu0 0.0
    %1497 = vmatpush2.msra.mxu0 0.0
    %1498 = vmatprep.subr.mxu0 0.0
    %1499 = vmatpush2.msra.mxu0 0.0
    %1500 = vmatprep.subr.mxu0 0.0
    %1501 = vmatpush2.msra.mxu0 0.0
    %1502 = vmatprep.subr.mxu0 0.0
    %1503 = vmatpush2.msra.mxu0 0.0
    %1504 = vmatprep.subr.mxu0 0.0
    %1505 = vmatpush2.msra.mxu0 0.0
    %1506 = vmatprep.subr.mxu0 0.0
    %1507 = vmatpush2.msra.mxu0 0.0
    %1508 = vmatprep.subr.mxu0 0.0
    %1509 = vmatpush2.msra.mxu0 0.0
    %1510 = vmatprep.subr.mxu0 0.0
    %1511 = vmatpush2.msra.mxu0 0.0
    %1512 = vmatprep.subr.mxu0 0.0
    %1513 = vmatpush2.msra.mxu0 0.0
    %1514 = vmatprep.subr.mxu0 0.0
    %1515 = vmatpush2.msra.mxu0 0.0
    %1516 = vmatprep.subr.mxu0 0.0
    %1517 = vmatpush2.msra.mxu0 0.0
    %1518 = vmatprep.mubr.f32.mxu0 0.0
    %1519 = vmatmul.mubr.f32.gmra.mxu0 %v1452
    %v1520 = vpop.f32.mrf.mxu0
    %v1521 = vadd.f32 0.0, %v1520
    %v1522 = vpop.f32.mrf.mxu0
    %1523 = vdwg.mxu0
    %1525 = vrot.lane.b32.xlu0 %v1521, 24
    %v1526 = vpop.permute.xlu0 %1525
    %1528 = vst.msk [vmem:[#allocation2 + $0x8] sm:$0xff] %vm850, %v1526
    %v1529 = vld [vmem:[#allocation2] sm:$0xff]
    %v1530 = vld [vmem:[#allocation2 + $0x8] sm:$0xff]
    %v1531 = vld [vmem:[%s4] sm:$0xff]
    %v1532 = vld [vmem:[%s4 + $0x8] sm:$0xff]
    %v1533 = vld [vmem:[%s4 + $0x10] sm:$0xff]
    %v1534 = vld [vmem:[%s4 + $0x18] sm:$0xff]
    %v1535 = vld [vmem:[%s5] sm:$0x1]
    %v1537 = vlaneseq
    %v1538 = vshrl.u32 %v1537, 7
    %v1539 = vsub.s32 0, %v1538
    %v1540 = vrot.slane %v1535, %v1539
    %v1543 = vsel %vm89, %v1529, 0
    %v1546 = vsel %vm89, %v1530, 0
    %1548 = vmatprep.subr.mxu0 0.0
    %1549 = vmatpush1.msra.mxu0 0.0
    %1550 = vmatprep.subr.mxu0 0.0
    %1551 = vmatpush1.msra.mxu0 0.0
    %1552 = vmatprep.subr.mxu0 0.0
    %1553 = vmatpush1.msra.mxu0 0.0
    %1554 = vmatprep.subr.mxu0 0.0
    %1555 = vmatpush1.msra.mxu0 0.0
    %1556 = vmatprep.subr.mxu0 0.0
    %1557 = vmatpush1.msra.mxu0 0.0
    %1558 = vmatprep.subr.mxu0 0.0
    %1559 = vmatpush1.msra.mxu0 0.0
    %1560 = vmatprep.subr.mxu0 0.0
    %1561 = vmatpush1.msra.mxu0 0.0
    %1562 = vmatprep.subr.mxu0 0.0
    %1563 = vmatpush1.msra.mxu0 0.0
    %1564 = vmatprep.subr.mxu0 0.0
    %1565 = vmatpush1.msra.mxu0 0.0
    %1566 = vmatprep.subr.mxu0 0.0
    %1567 = vmatpush1.msra.mxu0 0.0
    %1568 = vmatprep.subr.mxu0 0.0
    %1569 = vmatpush1.msra.mxu0 0.0
    %1570 = vmatprep.subr.mxu0 0.0
    %1571 = vmatpush1.msra.mxu0 0.0
    %1572 = vmatprep.subr.mxu0 0.0
    %1573 = vmatpush1.msra.mxu0 %v1534
    %1574 = vmatprep.subr.mxu0 0.0
    %1575 = vmatpush1.msra.mxu0 %v1533
    %1576 = vmatprep.subr.mxu0 0.0
    %1577 = vmatpush1.msra.mxu0 %v1532
    %1578 = vmatprep.subr.mxu0 0.0
    %1579 = vmatpush1.msra.mxu0 %v1531
    %1580 = vmatprep.subr.mxu0 0.0
    %1581 = vmatpush2.msra.mxu0 0.0
    %1582 = vmatprep.subr.mxu0 0.0
    %1583 = vmatpush2.msra.mxu0 0.0
    %1584 = vmatprep.subr.mxu0 0.0
    %1585 = vmatpush2.msra.mxu0 0.0
    %1586 = vmatprep.subr.mxu0 0.0
    %1587 = vmatpush2.msra.mxu0 0.0
    %1588 = vmatprep.subr.mxu0 0.0
    %1589 = vmatpush2.msra.mxu0 0.0
    %1590 = vmatprep.subr.mxu0 0.0
    %1591 = vmatpush2.msra.mxu0 0.0
    %1592 = vmatprep.subr.mxu0 0.0
    %1593 = vmatpush2.msra.mxu0 0.0
    %1594 = vmatprep.subr.mxu0 0.0
    %1595 = vmatpush2.msra.mxu0 0.0
    %1596 = vmatprep.subr.mxu0 0.0
    %1597 = vmatpush2.msra.mxu0 0.0
    %1598 = vmatprep.subr.mxu0 0.0
    %1599 = vmatpush2.msra.mxu0 0.0
    %1600 = vmatprep.subr.mxu0 0.0
    %1601 = vmatpush2.msra.mxu0 0.0
    %1602 = vmatprep.subr.mxu0 0.0
    %1603 = vmatpush2.msra.mxu0 0.0
    %1604 = vmatprep.subr.mxu0 0.0
    %1605 = vmatpush2.msra.mxu0 0.0
    %1606 = vmatprep.subr.mxu0 0.0
    %1607 = vmatpush2.msra.mxu0 0.0
    %1608 = vmatprep.subr.mxu0 0.0
    %1609 = vmatpush2.msra.mxu0 0.0
    %1610 = vmatprep.subr.mxu0 0.0
    %1611 = vmatpush2.msra.mxu0 0.0
    %1612 = vmatprep.mubr.f32.mxu0 0.0
    %1613 = vmatmul.mubr.f32.gmra.mxu0 %v1543
    %v1614 = vpop.f32.mrf.mxu0
    %v1615 = vadd.f32 %v1540, %v1614
    %v1616 = vpop.f32.mrf.mxu0
    %1617 = vmatprep.mubr.f32.mxu0 0.0
    %1618 = vmatmul.mubr.f32.gmra.mxu0 %v1546
    %v1619 = vpop.f32.mrf.mxu0
    %v1620 = vadd.f32 %v1540, %v1619
    %v1621 = vpop.f32.mrf.mxu0
    %1622 = vdwg.mxu0
    %v1623 = vadd.f32 %v1615, %v74
    %v1624 = vadd.f32 %v1620, %v75
    %v1625 = vld [vmem:[%s6] sm:$0x1]
    %v1626 = vld [vmem:[%s7] sm:$0x1]
    %v1627 = vsel %vm89, %v1623, 0.0
    %1628 = vadd.xlane.f32.xlu0 %v1627
    %v1629 = vpop.xlane.xlu0 %1628
    %v1630 = vsel %vm89, %v1624, 0.0
    %1631 = vadd.xlane.f32.xlu0 %v1630
    %v1632 = vpop.xlane.xlu0 %1631
    %v1633 = vrcp.pop 32.0
    %v1634 = vmul.f32 %v1629, %v1633
    %v1635 = vmul.f32 %v1632, %v1633
    %v1636 = vsub.f32 %v1623, %v1634
    %v1637 = vsub.f32 %v1624, %v1635
    %v1638 = vmul.f32 %v1636, %v1636
    %v1639 = vmul.f32 %v1637, %v1637
    %v1640 = vsel %vm89, %v1638, 0.0
    %1641 = vadd.xlane.f32.xlu0 %v1640
    %v1642 = vpop.xlane.xlu0 %1641
    %v1643 = vsel %vm89, %v1639, 0.0
    %1644 = vadd.xlane.f32.xlu0 %v1643
    %v1645 = vpop.xlane.xlu0 %1644
    %v1646 = vmul.f32 %v1642, %v1633
    %v1647 = vmul.f32 %v1645, %v1633
    %v1648 = vadd.f32 %v1646, 1e-05
    %v1649 = vadd.f32 %v1647, 1e-05
    %v1650 = vrsqrt.pop %v1648
    %v1651 = vrsqrt.pop %v1649
    %v1652 = vmul.f32 %v1636, %v1650
    %v1653 = vmul.f32 %v1637, %v1651
    %v1655 = vlaneseq
    %v1656 = vshrl.u32 %v1655, 7
    %v1657 = vsub.s32 0, %v1656
    %v1658 = vrot.slane %v1625, %v1657
    %v1660 = vmul.f32 %v1652, %v1658
    %v1661 = vmul.f32 %v1653, %v1658
    %v1663 = vlaneseq
    %v1664 = vshrl.u32 %v1663, 7
    %v1665 = vsub.s32 0, %v1664
    %v1666 = vrot.slane %v1626, %v1665
    %v1668 = vadd.f32 %v1660, %v1666
    %v1669 = vadd.f32 %v1661, %v1666
    %v1670 = vld [vmem:[%s8] sm:$0xff]
    %v1671 = vld [vmem:[%s8 + $0x8] sm:$0xff]
    %v1672 = vld [vmem:[%s8 + $0x10] sm:$0xff]
    %v1673 = vld [vmem:[%s8 + $0x18] sm:$0xff]
    %v1674 = vld [vmem:[%s9] sm:$0x1]
    %v1676 = vlaneseq
    %v1677 = vshrl.u32 %v1676, 7
    %v1678 = vsub.s32 0, %v1677
    %v1679 = vrot.slane %v1674, %v1678
    %v1682 = vsel %vm89, %v1668, 0
    %v1685 = vsel %vm89, %v1669, 0
    %1687 = vmatprep.subr.mxu0 0.0
    %1688 = vmatpush1.msra.mxu0 0.0
    %1689 = vmatprep.subr.mxu0 0.0
    %1690 = vmatpush1.msra.mxu0 0.0
    %1691 = vmatprep.subr.mxu0 0.0
    %1692 = vmatpush1.msra.mxu0 0.0
    %1693 = vmatprep.subr.mxu0 0.0
    %1694 = vmatpush1.msra.mxu0 0.0
    %1695 = vmatprep.subr.mxu0 0.0
    %1696 = vmatpush1.msra.mxu0 0.0
    %1697 = vmatprep.subr.mxu0 0.0
    %1698 = vmatpush1.msra.mxu0 0.0
    %1699 = vmatprep.subr.mxu0 0.0
    %1700 = vmatpush1.msra.mxu0 0.0
    %1701 = vmatprep.subr.mxu0 0.0
    %1702 = vmatpush1.msra.mxu0 0.0
    %1703 = vmatprep.subr.mxu0 0.0
    %1704 = vmatpush1.msra.mxu0 0.0
    %1705 = vmatprep.subr.mxu0 0.0
    %1706 = vmatpush1.msra.mxu0 0.0
    %1707 = vmatprep.subr.mxu0 0.0
    %1708 = vmatpush1.msra.mxu0 0.0
    %1709 = vmatprep.subr.mxu0 0.0
    %1710 = vmatpush1.msra.mxu0 0.0
    %1711 = vmatprep.subr.mxu0 0.0
    %1712 = vmatpush1.msra.mxu0 %v1673
    %1713 = vmatprep.subr.mxu0 0.0
    %1714 = vmatpush1.msra.mxu0 %v1672
    %1715 = vmatprep.subr.mxu0 0.0
    %1716 = vmatpush1.msra.mxu0 %v1671
    %1717 = vmatprep.subr.mxu0 0.0
    %1718 = vmatpush1.msra.mxu0 %v1670
    %1719 = vmatprep.subr.mxu0 0.0
    %1720 = vmatpush2.msra.mxu0 0.0
    %1721 = vmatprep.subr.mxu0 0.0
    %1722 = vmatpush2.msra.mxu0 0.0
    %1723 = vmatprep.subr.mxu0 0.0
    %1724 = vmatpush2.msra.mxu0 0.0
    %1725 = vmatprep.subr.mxu0 0.0
    %1726 = vmatpush2.msra.mxu0 0.0
    %1727 = vmatprep.subr.mxu0 0.0
    %1728 = vmatpush2.msra.mxu0 0.0
    %1729 = vmatprep.subr.mxu0 0.0
    %1730 = vmatpush2.msra.mxu0 0.0
    %1731 = vmatprep.subr.mxu0 0.0
    %1732 = vmatpush2.msra.mxu0 0.0
    %1733 = vmatprep.subr.mxu0 0.0
    %1734 = vmatpush2.msra.mxu0 0.0
    %1735 = vmatprep.subr.mxu0 0.0
    %1736 = vmatpush2.msra.mxu0 0.0
    %1737 = vmatprep.subr.mxu0 0.0
    %1738 = vmatpush2.msra.mxu0 0.0
    %1739 = vmatprep.subr.mxu0 0.0
    %1740 = vmatpush2.msra.mxu0 0.0
    %1741 = vmatprep.subr.mxu0 0.0
    %1742 = vmatpush2.msra.mxu0 0.0
    %1743 = vmatprep.subr.mxu0 0.0
    %1744 = vmatpush2.msra.mxu0 0.0
    %1745 = vmatprep.subr.mxu0 0.0
    %1746 = vmatpush2.msra.mxu0 0.0
    %1747 = vmatprep.subr.mxu0 0.0
    %1748 = vmatpush2.msra.mxu0 0.0
    %1749 = vmatprep.subr.mxu0 0.0
    %1750 = vmatpush2.msra.mxu0 0.0
    %1751 = vmatprep.mubr.f32.mxu0 0.0
    %1752 = vmatmul.mubr.f32.gmra.mxu0 %v1682
    %v1753 = vpop.f32.mrf.mxu0
    %v1754 = vadd.f32 %v1679, %v1753
    %v1755 = vpop.f32.mrf.mxu0
    %1756 = vmatprep.mubr.f32.mxu0 0.0
    %1757 = vmatmul.mubr.f32.gmra.mxu0 %v1685
    %v1758 = vpop.f32.mrf.mxu0
    %v1759 = vadd.f32 %v1679, %v1758
    %v1760 = vpop.f32.mrf.mxu0
    %1761 = vdwg.mxu0
    %v1762 = vld [vmem:[%s10] sm:$0xff]
    %v1763 = vld [vmem:[%s10 + $0x8] sm:$0xff]
    %v1764 = vld [vmem:[%s10 + $0x10] sm:$0xff]
    %v1765 = vld [vmem:[%s10 + $0x18] sm:$0xff]
    %v1766 = vld [vmem:[%s11] sm:$0x1]
    %v1768 = vlaneseq
    %v1769 = vshrl.u32 %v1768, 7
    %v1770 = vsub.s32 0, %v1769
    %v1771 = vrot.slane %v1766, %v1770
    %v1774 = vsel %vm89, %v76, 0
    %v1777 = vsel %vm89, %v77, 0
    %1779 = vmatprep.subr.mxu0 0.0
    %1780 = vmatpush1.msra.mxu0 0.0
    %1781 = vmatprep.subr.mxu0 0.0
    %1782 = vmatpush1.msra.mxu0 0.0
    %1783 = vmatprep.subr.mxu0 0.0
    %1784 = vmatpush1.msra.mxu0 0.0
    %1785 = vmatprep.subr.mxu0 0.0
    %1786 = vmatpush1.msra.mxu0 0.0
    %1787 = vmatprep.subr.mxu0 0.0
    %1788 = vmatpush1.msra.mxu0 0.0
    %1789 = vmatprep.subr.mxu0 0.0
    %1790 = vmatpush1.msra.mxu0 0.0
    %1791 = vmatprep.subr.mxu0 0.0
    %1792 = vmatpush1.msra.mxu0 0.0
    %1793 = vmatprep.subr.mxu0 0.0
    %1794 = vmatpush1.msra.mxu0 0.0
    %1795 = vmatprep.subr.mxu0 0.0
    %1796 = vmatpush1.msra.mxu0 0.0
    %1797 = vmatprep.subr.mxu0 0.0
    %1798 = vmatpush1.msra.mxu0 0.0
    %1799 = vmatprep.subr.mxu0 0.0
    %1800 = vmatpush1.msra.mxu0 0.0
    %1801 = vmatprep.subr.mxu0 0.0
    %1802 = vmatpush1.msra.mxu0 0.0
    %1803 = vmatprep.subr.mxu0 0.0
    %1804 = vmatpush1.msra.mxu0 %v1765
    %1805 = vmatprep.subr.mxu0 0.0
    %1806 = vmatpush1.msra.mxu0 %v1764
    %1807 = vmatprep.subr.mxu0 0.0
    %1808 = vmatpush1.msra.mxu0 %v1763
    %1809 = vmatprep.subr.mxu0 0.0
    %1810 = vmatpush1.msra.mxu0 %v1762
    %1811 = vmatprep.subr.mxu0 0.0
    %1812 = vmatpush2.msra.mxu0 0.0
    %1813 = vmatprep.subr.mxu0 0.0
    %1814 = vmatpush2.msra.mxu0 0.0
    %1815 = vmatprep.subr.mxu0 0.0
    %1816 = vmatpush2.msra.mxu0 0.0
    %1817 = vmatprep.subr.mxu0 0.0
    %1818 = vmatpush2.msra.mxu0 0.0
    %1819 = vmatprep.subr.mxu0 0.0
    %1820 = vmatpush2.msra.mxu0 0.0
    %1821 = vmatprep.subr.mxu0 0.0
    %1822 = vmatpush2.msra.mxu0 0.0
    %1823 = vmatprep.subr.mxu0 0.0
    %1824 = vmatpush2.msra.mxu0 0.0
    %1825 = vmatprep.subr.mxu0 0.0
    %1826 = vmatpush2.msra.mxu0 0.0
    %1827 = vmatprep.subr.mxu0 0.0
    %1828 = vmatpush2.msra.mxu0 0.0
    %1829 = vmatprep.subr.mxu0 0.0
    %1830 = vmatpush2.msra.mxu0 0.0
    %1831 = vmatprep.subr.mxu0 0.0
    %1832 = vmatpush2.msra.mxu0 0.0
    %1833 = vmatprep.subr.mxu0 0.0
    %1834 = vmatpush2.msra.mxu0 0.0
    %1835 = vmatprep.subr.mxu0 0.0
    %1836 = vmatpush2.msra.mxu0 0.0
    %1837 = vmatprep.subr.mxu0 0.0
    %1838 = vmatpush2.msra.mxu0 0.0
    %1839 = vmatprep.subr.mxu0 0.0
    %1840 = vmatpush2.msra.mxu0 0.0
    %1841 = vmatprep.subr.mxu0 0.0
    %1842 = vmatpush2.msra.mxu0 0.0
    %1843 = vmatprep.mubr.f32.mxu0 0.0
    %1844 = vmatmul.mubr.f32.gmra.mxu0 %v1774
    %v1845 = vpop.f32.mrf.mxu0
    %v1846 = vadd.f32 %v1771, %v1845
    %v1847 = vpop.f32.mrf.mxu0
    %1848 = vmatprep.mubr.f32.mxu0 0.0
    %1849 = vmatmul.mubr.f32.gmra.mxu0 %v1777
    %v1850 = vpop.f32.mrf.mxu0
    %v1851 = vadd.f32 %v1771, %v1850
    %v1852 = vpop.f32.mrf.mxu0
    %1853 = vdwg.mxu0
    %v1854 = vmul.f32 %v1754, 0.35355338
    %v1856 = vsel %vm175, %v1854, 0
    %v1859 = vsel %vm175, %v1846, 0
    %1861 = vmatprep.subr.mxu0 0.0
    %1862 = vmatpush1.xpose.msra.mxu0 0.0
    %1863 = vmatprep.subr.mxu0 0.0
    %1864 = vmatpush1.xpose.msra.mxu0 0.0
    %1865 = vmatprep.subr.mxu0 0.0
    %1866 = vmatpush1.xpose.msra.mxu0 0.0
    %1867 = vmatprep.subr.mxu0 0.0
    %1868 = vmatpush1.xpose.msra.mxu0 0.0
    %1869 = vmatprep.subr.mxu0 0.0
    %1870 = vmatpush1.xpose.msra.mxu0 0.0
    %1871 = vmatprep.subr.mxu0 0.0
    %1872 = vmatpush1.xpose.msra.mxu0 0.0
    %1873 = vmatprep.subr.mxu0 0.0
    %1874 = vmatpush1.xpose.msra.mxu0 0.0
    %1875 = vmatprep.subr.mxu0 0.0
    %1876 = vmatpush1.xpose.msra.mxu0 0.0
    %1877 = vmatprep.subr.mxu0 0.0
    %1878 = vmatpush1.xpose.msra.mxu0 0.0
    %1879 = vmatprep.subr.mxu0 0.0
    %1880 = vmatpush1.xpose.msra.mxu0 0.0
    %1881 = vmatprep.subr.mxu0 0.0
    %1882 = vmatpush1.xpose.msra.mxu0 0.0
    %1883 = vmatprep.subr.mxu0 0.0
    %1884 = vmatpush1.xpose.msra.mxu0 0.0
    %1885 = vmatprep.subr.mxu0 0.0
    %1886 = vmatpush1.xpose.msra.mxu0 0.0
    %1887 = vmatprep.subr.mxu0 0.0
    %1888 = vmatpush1.xpose.msra.mxu0 0.0
    %1889 = vmatprep.subr.mxu0 0.0
    %1890 = vmatpush1.xpose.msra.mxu0 0.0
    %1891 = vmatprep.subr.mxu0 0.0
    %1892 = vmatpush1.xpose.msra.mxu0 %v1859
    %1893 = vmatprep.subr.mxu0 0.0
    %1894 = vmatpush2.xpose.msra.mxu0 0.0
    %1895 = vmatprep.subr.mxu0 0.0
    %1896 = vmatpush2.xpose.msra.mxu0 0.0
    %1897 = vmatprep.subr.mxu0 0.0
    %1898 = vmatpush2.xpose.msra.mxu0 0.0
    %1899 = vmatprep.subr.mxu0 0.0
    %1900 = vmatpush2.xpose.msra.mxu0 0.0
    %1901 = vmatprep.subr.mxu0 0.0
    %1902 = vmatpush2.xpose.msra.mxu0 0.0
    %1903 = vmatprep.subr.mxu0 0.0
    %1904 = vmatpush2.xpose.msra.mxu0 0.0
    %1905 = vmatprep.subr.mxu0 0.0
    %1906 = vmatpush2.xpose.msra.mxu0 0.0
    %1907 = vmatprep.subr.mxu0 0.0
    %1908 = vmatpush2.xpose.msra.mxu0 0.0
    %1909 = vmatprep.subr.mxu0 0.0
    %1910 = vmatpush2.xpose.msra.mxu0 0.0
    %1911 = vmatprep.subr.mxu0 0.0
    %1912 = vmatpush2.xpose.msra.mxu0 0.0
    %1913 = vmatprep.subr.mxu0 0.0
    %1914 = vmatpush2.xpose.msra.mxu0 0.0
    %1915 = vmatprep.subr.mxu0 0.0
    %1916 = vmatpush2.xpose.msra.mxu0 0.0
    %1917 = vmatprep.subr.mxu0 0.0
    %1918 = vmatpush2.xpose.msra.mxu0 0.0
    %1919 = vmatprep.subr.mxu0 0.0
    %1920 = vmatpush2.xpose.msra.mxu0 0.0
    %1921 = vmatprep.subr.mxu0 0.0
    %1922 = vmatpush2.xpose.msra.mxu0 0.0
    %1923 = vmatprep.subr.mxu0 0.0
    %1924 = vmatpush2.xpose.msra.mxu0 0.0
    %1925 = vmatprep.mubr.f32.mxu0 0.0
    %1926 = vmatmul.mubr.f32.gmra.mxu0 %v1856
    %v1927 = vpop.f32.mrf.mxu0
    %v1928 = vadd.f32 0.0, %v1927
    %v1929 = vpop.f32.mrf.mxu0
    %1930 = vdwg.mxu0
    %v1931 = vsel %vm175, %v1928, -inf
    %1932 = vmax.xlane.f32.xlu0 %v1931
    %v1933 = vpop.xlane.xlu0 %1932
    %v1934 = vsub.f32 %v1928, %v1933
    %v1935 = vmul.f32 %v1934, 1.442695
    %v1936 = vpow.pop %v1935
    %v1937 = vsel %vm175, %v1936, 0.0
    %1938 = vadd.xlane.f32.xlu0 %v1937
    %v1939 = vpop.xlane.xlu0 %1938
    %v1940 = vrcp.pop %v1939
    %v1941 = vmul.f32 %v1936, %v1940
    %v1942 = vadd.f32 %v1941, 0.0
    %1943 = vrot.lane.b32.xlu0 %v1846, 96
    %v1944 = vpop.permute.xlu0 %1943
    %v1947 = vsel %vm175, %v1941, 0
    %1949 = vmatprep.subr.mxu0 0.0
    %1950 = vmatpush1.msra.mxu0 0.0
    %1951 = vmatprep.subr.mxu0 0.0
    %1952 = vmatpush1.msra.mxu0 0.0
    %1953 = vmatprep.subr.mxu0 0.0
    %1954 = vmatpush1.msra.mxu0 0.0
    %1955 = vmatprep.subr.mxu0 0.0
    %1956 = vmatpush1.msra.mxu0 0.0
    %1957 = vmatprep.subr.mxu0 0.0
    %1958 = vmatpush1.msra.mxu0 0.0
    %1959 = vmatprep.subr.mxu0 0.0
    %1960 = vmatpush1.msra.mxu0 0.0
    %1961 = vmatprep.subr.mxu0 0.0
    %1962 = vmatpush1.msra.mxu0 0.0
    %1963 = vmatprep.subr.mxu0 0.0
    %1964 = vmatpush1.msra.mxu0 0.0
    %1965 = vmatprep.subr.mxu0 0.0
    %1966 = vmatpush1.msra.mxu0 0.0
    %1967 = vmatprep.subr.mxu0 0.0
    %1968 = vmatpush1.msra.mxu0 0.0
    %1969 = vmatprep.subr.mxu0 0.0
    %1970 = vmatpush1.msra.mxu0 0.0
    %1971 = vmatprep.subr.mxu0 0.0
    %1972 = vmatpush1.msra.mxu0 0.0
    %1973 = vmatprep.subr.mxu0 0.0
    %1974 = vmatpush1.msra.mxu0 0.0
    %1975 = vmatprep.subr.mxu0 0.0
    %1976 = vmatpush1.msra.mxu0 0.0
    %1977 = vmatprep.subr.mxu0 0.0
    %1978 = vmatpush1.msra.mxu0 0.0
    %1979 = vmatprep.subr.mxu0 0.0
    %1980 = vmatpush1.msra.mxu0 %v1944
    %1981 = vmatprep.subr.mxu0 0.0
    %1982 = vmatpush2.msra.mxu0 0.0
    %1983 = vmatprep.subr.mxu0 0.0
    %1984 = vmatpush2.msra.mxu0 0.0
    %1985 = vmatprep.subr.mxu0 0.0
    %1986 = vmatpush2.msra.mxu0 0.0
    %1987 = vmatprep.subr.mxu0 0.0
    %1988 = vmatpush2.msra.mxu0 0.0
    %1989 = vmatprep.subr.mxu0 0.0
    %1990 = vmatpush2.msra.mxu0 0.0
    %1991 = vmatprep.subr.mxu0 0.0
    %1992 = vmatpush2.msra.mxu0 0.0
    %1993 = vmatprep.subr.mxu0 0.0
    %1994 = vmatpush2.msra.mxu0 0.0
    %1995 = vmatprep.subr.mxu0 0.0
    %1996 = vmatpush2.msra.mxu0 0.0
    %1997 = vmatprep.subr.mxu0 0.0
    %1998 = vmatpush2.msra.mxu0 0.0
    %1999 = vmatprep.subr.mxu0 0.0
    %2000 = vmatpush2.msra.mxu0 0.0
    %2001 = vmatprep.subr.mxu0 0.0
    %2002 = vmatpush2.msra.mxu0 0.0
    %2003 = vmatprep.subr.mxu0 0.0
    %2004 = vmatpush2.msra.mxu0 0.0
    %2005 = vmatprep.subr.mxu0 0.0
    %2006 = vmatpush2.msra.mxu0 0.0
    %2007 = vmatprep.subr.mxu0 0.0
    %2008 = vmatpush2.msra.mxu0 0.0
    %2009 = vmatprep.subr.mxu0 0.0
    %2010 = vmatpush2.msra.mxu0 0.0
    %2011 = vmatprep.subr.mxu0 0.0
    %2012 = vmatpush2.msra.mxu0 0.0
    %2013 = vmatprep.mubr.f32.mxu0 0.0
    %2014 = vmatmul.mubr.f32.gmra.mxu0 %v1947
    %v2015 = vpop.f32.mrf.mxu0
    %v2016 = vadd.f32 0.0, %v2015
    %v2017 = vpop.f32.mrf.mxu0
    %2018 = vdwg.mxu0
    %2019 = vst.msk [vmem:[#allocation2] sm:$0xff] %vm175, %v2016
    %2020 = vrot.lane.b32.xlu0 %v1854, 120
    %v2021 = vpop.permute.xlu0 %2020
    %2022 = vrot.lane.b32.xlu0 %v1846, 120
    %v2023 = vpop.permute.xlu0 %2022
    %v2024 = vsel %vm175, %v2021, 0
    %v2026 = vsel %vm175, %v2023, 0
    %2028 = vmatprep.subr.mxu0 0.0
    %2029 = vmatpush1.xpose.msra.mxu0 0.0
    %2030 = vmatprep.subr.mxu0 0.0
    %2031 = vmatpush1.xpose.msra.mxu0 0.0
    %2032 = vmatprep.subr.mxu0 0.0
    %2033 = vmatpush1.xpose.msra.mxu0 0.0
    %2034 = vmatprep.subr.mxu0 0.0
    %2035 = vmatpush1.xpose.msra.mxu0 0.0
    %2036 = vmatprep.subr.mxu0 0.0
    %2037 = vmatpush1.xpose.msra.mxu0 0.0
    %2038 = vmatprep.subr.mxu0 0.0
    %2039 = vmatpush1.xpose.msra.mxu0 0.0
    %2040 = vmatprep.subr.mxu0 0.0
    %2041 = vmatpush1.xpose.msra.mxu0 0.0
    %2042 = vmatprep.subr.mxu0 0.0
    %2043 = vmatpush1.xpose.msra.mxu0 0.0
    %2044 = vmatprep.subr.mxu0 0.0
    %2045 = vmatpush1.xpose.msra.mxu0 0.0
    %2046 = vmatprep.subr.mxu0 0.0
    %2047 = vmatpush1.xpose.msra.mxu0 0.0
    %2048 = vmatprep.subr.mxu0 0.0
    %2049 = vmatpush1.xpose.msra.mxu0 0.0
    %2050 = vmatprep.subr.mxu0 0.0
    %2051 = vmatpush1.xpose.msra.mxu0 0.0
    %2052 = vmatprep.subr.mxu0 0.0
    %2053 = vmatpush1.xpose.msra.mxu0 0.0
    %2054 = vmatprep.subr.mxu0 0.0
    %2055 = vmatpush1.xpose.msra.mxu0 0.0
    %2056 = vmatprep.subr.mxu0 0.0
    %2057 = vmatpush1.xpose.msra.mxu0 0.0
    %2058 = vmatprep.subr.mxu0 0.0
    %2059 = vmatpush1.xpose.msra.mxu0 %v2026
    %2060 = vmatprep.subr.mxu0 0.0
    %2061 = vmatpush2.xpose.msra.mxu0 0.0
    %2062 = vmatprep.subr.mxu0 0.0
    %2063 = vmatpush2.xpose.msra.mxu0 0.0
    %2064 = vmatprep.subr.mxu0 0.0
    %2065 = vmatpush2.xpose.msra.mxu0 0.0
    %2066 = vmatprep.subr.mxu0 0.0
    %2067 = vmatpush2.xpose.msra.mxu0 0.0
    %2068 = vmatprep.subr.mxu0 0.0
    %2069 = vmatpush2.xpose.msra.mxu0 0.0
    %2070 = vmatprep.subr.mxu0 0.0
    %2071 = vmatpush2.xpose.msra.mxu0 0.0
    %2072 = vmatprep.subr.mxu0 0.0
    %2073 = vmatpush2.xpose.msra.mxu0 0.0
    %2074 = vmatprep.subr.mxu0 0.0
    %2075 = vmatpush2.xpose.msra.mxu0 0.0
    %2076 = vmatprep.subr.mxu0 0.0
    %2077 = vmatpush2.xpose.msra.mxu0 0.0
    %2078 = vmatprep.subr.mxu0 0.0
    %2079 = vmatpush2.xpose.msra.mxu0 0.0
    %2080 = vmatprep.subr.mxu0 0.0
    %2081 = vmatpush2.xpose.msra.mxu0 0.0
    %2082 = vmatprep.subr.mxu0 0.0
    %2083 = vmatpush2.xpose.msra.mxu0 0.0
    %2084 = vmatprep.subr.mxu0 0.0
    %2085 = vmatpush2.xpose.msra.mxu0 0.0
    %2086 = vmatprep.subr.mxu0 0.0
    %2087 = vmatpush2.xpose.msra.mxu0 0.0
    %2088 = vmatprep.subr.mxu0 0.0
    %2089 = vmatpush2.xpose.msra.mxu0 0.0
    %2090 = vmatprep.subr.mxu0 0.0
    %2091 = vmatpush2.xpose.msra.mxu0 0.0
    %2092 = vmatprep.mubr.f32.mxu0 0.0
    %2093 = vmatmul.mubr.f32.gmra.mxu0 %v2024
    %v2094 = vpop.f32.mrf.mxu0
    %v2095 = vadd.f32 0.0, %v2094
    %v2096 = vpop.f32.mrf.mxu0
    %2097 = vdwg.mxu0
    %v2098 = vsel %vm175, %v2095, -inf
    %2099 = vmax.xlane.f32.xlu0 %v2098
    %v2100 = vpop.xlane.xlu0 %2099
    %v2101 = vsub.f32 %v2095, %v2100
    %v2102 = vmul.f32 %v2101, 1.442695
    %v2103 = vpow.pop %v2102
    %v2104 = vsel %vm175, %v2103, 0.0
    %2105 = vadd.xlane.f32.xlu0 %v2104
    %v2106 = vpop.xlane.xlu0 %2105
    %v2107 = vrcp.pop %v2106
    %v2108 = vmul.f32 %v2103, %v2107
    %v2109 = vadd.f32 %v1942, %v2108
    %2110 = vrot.lane.b32.xlu0 %v1846, 88
    %v2111 = vpop.permute.xlu0 %2110
    %v2114 = vsel %vm175, %v2108, 0
    %2116 = vmatprep.subr.mxu0 0.0
    %2117 = vmatpush1.msra.mxu0 0.0
    %2118 = vmatprep.subr.mxu0 0.0
    %2119 = vmatpush1.msra.mxu0 0.0
    %2120 = vmatprep.subr.mxu0 0.0
    %2121 = vmatpush1.msra.mxu0 0.0
    %2122 = vmatprep.subr.mxu0 0.0
    %2123 = vmatpush1.msra.mxu0 0.0
    %2124 = vmatprep.subr.mxu0 0.0
    %2125 = vmatpush1.msra.mxu0 0.0
    %2126 = vmatprep.subr.mxu0 0.0
    %2127 = vmatpush1.msra.mxu0 0.0
    %2128 = vmatprep.subr.mxu0 0.0
    %2129 = vmatpush1.msra.mxu0 0.0
    %2130 = vmatprep.subr.mxu0 0.0
    %2131 = vmatpush1.msra.mxu0 0.0
    %2132 = vmatprep.subr.mxu0 0.0
    %2133 = vmatpush1.msra.mxu0 0.0
    %2134 = vmatprep.subr.mxu0 0.0
    %2135 = vmatpush1.msra.mxu0 0.0
    %2136 = vmatprep.subr.mxu0 0.0
    %2137 = vmatpush1.msra.mxu0 0.0
    %2138 = vmatprep.subr.mxu0 0.0
    %2139 = vmatpush1.msra.mxu0 0.0
    %2140 = vmatprep.subr.mxu0 0.0
    %2141 = vmatpush1.msra.mxu0 0.0
    %2142 = vmatprep.subr.mxu0 0.0
    %2143 = vmatpush1.msra.mxu0 0.0
    %2144 = vmatprep.subr.mxu0 0.0
    %2145 = vmatpush1.msra.mxu0 0.0
    %2146 = vmatprep.subr.mxu0 0.0
    %2147 = vmatpush1.msra.mxu0 %v2111
    %2148 = vmatprep.subr.mxu0 0.0
    %2149 = vmatpush2.msra.mxu0 0.0
    %2150 = vmatprep.subr.mxu0 0.0
    %2151 = vmatpush2.msra.mxu0 0.0
    %2152 = vmatprep.subr.mxu0 0.0
    %2153 = vmatpush2.msra.mxu0 0.0
    %2154 = vmatprep.subr.mxu0 0.0
    %2155 = vmatpush2.msra.mxu0 0.0
    %2156 = vmatprep.subr.mxu0 0.0
    %2157 = vmatpush2.msra.mxu0 0.0
    %2158 = vmatprep.subr.mxu0 0.0
    %2159 = vmatpush2.msra.mxu0 0.0
    %2160 = vmatprep.subr.mxu0 0.0
    %2161 = vmatpush2.msra.mxu0 0.0
    %2162 = vmatprep.subr.mxu0 0.0
    %2163 = vmatpush2.msra.mxu0 0.0
    %2164 = vmatprep.subr.mxu0 0.0
    %2165 = vmatpush2.msra.mxu0 0.0
    %2166 = vmatprep.subr.mxu0 0.0
    %2167 = vmatpush2.msra.mxu0 0.0
    %2168 = vmatprep.subr.mxu0 0.0
    %2169 = vmatpush2.msra.mxu0 0.0
    %2170 = vmatprep.subr.mxu0 0.0
    %2171 = vmatpush2.msra.mxu0 0.0
    %2172 = vmatprep.subr.mxu0 0.0
    %2173 = vmatpush2.msra.mxu0 0.0
    %2174 = vmatprep.subr.mxu0 0.0
    %2175 = vmatpush2.msra.mxu0 0.0
    %2176 = vmatprep.subr.mxu0 0.0
    %2177 = vmatpush2.msra.mxu0 0.0
    %2178 = vmatprep.subr.mxu0 0.0
    %2179 = vmatpush2.msra.mxu0 0.0
    %2180 = vmatprep.mubr.f32.mxu0 0.0
    %2181 = vmatmul.mubr.f32.gmra.mxu0 %v2114
    %v2182 = vpop.f32.mrf.mxu0
    %v2183 = vadd.f32 0.0, %v2182
    %v2184 = vpop.f32.mrf.mxu0
    %2185 = vdwg.mxu0
    %2187 = vrot.lane.b32.xlu0 %v2183, 8
    %v2188 = vpop.permute.xlu0 %2187
    %2190 = vst.msk [vmem:[#allocation2] sm:$0xff] %vm508, %v2188
    %2191 = vrot.lane.b32.xlu0 %v1854, 112
    %v2192 = vpop.permute.xlu0 %2191
    %2193 = vrot.lane.b32.xlu0 %v1846, 112
    %v2194 = vpop.permute.xlu0 %2193
    %v2195 = vsel %vm175, %v2192, 0
    %v2197 = vsel %vm175, %v2194, 0
    %2199 = vmatprep.subr.mxu0 0.0
    %2200 = vmatpush1.xpose.msra.mxu0 0.0
    %2201 = vmatprep.subr.mxu0 0.0
    %2202 = vmatpush1.xpose.msra.mxu0 0.0
    %2203 = vmatprep.subr.mxu0 0.0
    %2204 = vmatpush1.xpose.msra.mxu0 0.0
    %2205 = vmatprep.subr.mxu0 0.0
    %2206 = vmatpush1.xpose.msra.mxu0 0.0
    %2207 = vmatprep.subr.mxu0 0.0
    %2208 = vmatpush1.xpose.msra.mxu0 0.0
    %2209 = vmatprep.subr.mxu0 0.0
    %2210 = vmatpush1.xpose.msra.mxu0 0.0
    %2211 = vmatprep.subr.mxu0 0.0
    %2212 = vmatpush1.xpose.msra.mxu0 0.0
    %2213 = vmatprep.subr.mxu0 0.0
    %2214 = vmatpush1.xpose.msra.mxu0 0.0
    %2215 = vmatprep.subr.mxu0 0.0
    %2216 = vmatpush1.xpose.msra.mxu0 0.0
    %2217 = vmatprep.subr.mxu0 0.0
    %2218 = vmatpush1.xpose.msra.mxu0 0.0
    %2219 = vmatprep.subr.mxu0 0.0
    %2220 = vmatpush1.xpose.msra.mxu0 0.0
    %2221 = vmatprep.subr.mxu0 0.0
    %2222 = vmatpush1.xpose.msra.mxu0 0.0
    %2223 = vmatprep.subr.mxu0 0.0
    %2224 = vmatpush1.xpose.msra.mxu0 0.0
    %2225 = vmatprep.subr.mxu0 0.0
    %2226 = vmatpush1.xpose.msra.mxu0 0.0
    %2227 = vmatprep.subr.mxu0 0.0
    %2228 = vmatpush1.xpose.msra.mxu0 0.0
    %2229 = vmatprep.subr.mxu0 0.0
    %2230 = vmatpush1.xpose.msra.mxu0 %v2197
    %2231 = vmatprep.subr.mxu0 0.0
    %2232 = vmatpush2.xpose.msra.mxu0 0.0
    %2233 = vmatprep.subr.mxu0 0.0
    %2234 = vmatpush2.xpose.msra.mxu0 0.0
    %2235 = vmatprep.subr.mxu0 0.0
    %2236 = vmatpush2.xpose.msra.mxu0 0.0
    %2237 = vmatprep.subr.mxu0 0.0
    %2238 = vmatpush2.xpose.msra.mxu0 0.0
    %2239 = vmatprep.subr.mxu0 0.0
    %2240 = vmatpush2.xpose.msra.mxu0 0.0
    %2241 = vmatprep.subr.mxu0 0.0
    %2242 = vmatpush2.xpose.msra.mxu0 0.0
    %2243 = vmatprep.subr.mxu0 0.0
    %2244 = vmatpush2.xpose.msra.mxu0 0.0
    %2245 = vmatprep.subr.mxu0 0.0
    %2246 = vmatpush2.xpose.msra.mxu0 0.0
    %2247 = vmatprep.subr.mxu0 0.0
    %2248 = vmatpush2.xpose.msra.mxu0 0.0
    %2249 = vmatprep.subr.mxu0 0.0
    %2250 = vmatpush2.xpose.msra.mxu0 0.0
    %2251 = vmatprep.subr.mxu0 0.0
    %2252 = vmatpush2.xpose.msra.mxu0 0.0
    %2253 = vmatprep.subr.mxu0 0.0
    %2254 = vmatpush2.xpose.msra.mxu0 0.0
    %2255 = vmatprep.subr.mxu0 0.0
    %2256 = vmatpush2.xpose.msra.mxu0 0.0
    %2257 = vmatprep.subr.mxu0 0.0
    %2258 = vmatpush2.xpose.msra.mxu0 0.0
    %2259 = vmatprep.subr.mxu0 0.0
    %2260 = vmatpush2.xpose.msra.mxu0 0.0
    %2261 = vmatprep.subr.mxu0 0.0
    %2262 = vmatpush2.xpose.msra.mxu0 0.0
    %2263 = vmatprep.mubr.f32.mxu0 0.0
    %2264 = vmatmul.mubr.f32.gmra.mxu0 %v2195
    %v2265 = vpop.f32.mrf.mxu0
    %v2266 = vadd.f32 0.0, %v2265
    %v2267 = vpop.f32.mrf.mxu0
    %2268 = vdwg.mxu0
    %v2269 = vsel %vm175, %v2266, -inf
    %2270 = vmax.xlane.f32.xlu0 %v2269
    %v2271 = vpop.xlane.xlu0 %2270
    %v2272 = vsub.f32 %v2266, %v2271
    %v2273 = vmul.f32 %v2272, 1.442695
    %v2274 = vpow.pop %v2273
    %v2275 = vsel %vm175, %v2274, 0.0
    %2276 = vadd.xlane.f32.xlu0 %v2275
    %v2277 = vpop.xlane.xlu0 %2276
    %v2278 = vrcp.pop %v2277
    %v2279 = vmul.f32 %v2274, %v2278
    %v2280 = vadd.f32 %v2109, %v2279
    %2281 = vrot.lane.b32.xlu0 %v1846, 80
    %v2282 = vpop.permute.xlu0 %2281
    %v2285 = vsel %vm175, %v2279, 0
    %2287 = vmatprep.subr.mxu0 0.0
    %2288 = vmatpush1.msra.mxu0 0.0
    %2289 = vmatprep.subr.mxu0 0.0
    %2290 = vmatpush1.msra.mxu0 0.0
    %2291 = vmatprep.subr.mxu0 0.0
    %2292 = vmatpush1.msra.mxu0 0.0
    %2293 = vmatprep.subr.mxu0 0.0
    %2294 = vmatpush1.msra.mxu0 0.0
    %2295 = vmatprep.subr.mxu0 0.0
    %2296 = vmatpush1.msra.mxu0 0.0
    %2297 = vmatprep.subr.mxu0 0.0
    %2298 = vmatpush1.msra.mxu0 0.0
    %2299 = vmatprep.subr.mxu0 0.0
    %2300 = vmatpush1.msra.mxu0 0.0
    %2301 = vmatprep.subr.mxu0 0.0
    %2302 = vmatpush1.msra.mxu0 0.0
    %2303 = vmatprep.subr.mxu0 0.0
    %2304 = vmatpush1.msra.mxu0 0.0
    %2305 = vmatprep.subr.mxu0 0.0
    %2306 = vmatpush1.msra.mxu0 0.0
    %2307 = vmatprep.subr.mxu0 0.0
    %2308 = vmatpush1.msra.mxu0 0.0
    %2309 = vmatprep.subr.mxu0 0.0
    %2310 = vmatpush1.msra.mxu0 0.0
    %2311 = vmatprep.subr.mxu0 0.0
    %2312 = vmatpush1.msra.mxu0 0.0
    %2313 = vmatprep.subr.mxu0 0.0
    %2314 = vmatpush1.msra.mxu0 0.0
    %2315 = vmatprep.subr.mxu0 0.0
    %2316 = vmatpush1.msra.mxu0 0.0
    %2317 = vmatprep.subr.mxu0 0.0
    %2318 = vmatpush1.msra.mxu0 %v2282
    %2319 = vmatprep.subr.mxu0 0.0
    %2320 = vmatpush2.msra.mxu0 0.0
    %2321 = vmatprep.subr.mxu0 0.0
    %2322 = vmatpush2.msra.mxu0 0.0
    %2323 = vmatprep.subr.mxu0 0.0
    %2324 = vmatpush2.msra.mxu0 0.0
    %2325 = vmatprep.subr.mxu0 0.0
    %2326 = vmatpush2.msra.mxu0 0.0
    %2327 = vmatprep.subr.mxu0 0.0
    %2328 = vmatpush2.msra.mxu0 0.0
    %2329 = vmatprep.subr.mxu0 0.0
    %2330 = vmatpush2.msra.mxu0 0.0
    %2331 = vmatprep.subr.mxu0 0.0
    %2332 = vmatpush2.msra.mxu0 0.0
    %2333 = vmatprep.subr.mxu0 0.0
    %2334 = vmatpush2.msra.mxu0 0.0
    %2335 = vmatprep.subr.mxu0 0.0
    %2336 = vmatpush2.msra.mxu0 0.0
    %2337 = vmatprep.subr.mxu0 0.0
    %2338 = vmatpush2.msra.mxu0 0.0
    %2339 = vmatprep.subr.mxu0 0.0
    %2340 = vmatpush2.msra.mxu0 0.0
    %2341 = vmatprep.subr.mxu0 0.0
    %2342 = vmatpush2.msra.mxu0 0.0
    %2343 = vmatprep.subr.mxu0 0.0
    %2344 = vmatpush2.msra.mxu0 0.0
    %2345 = vmatprep.subr.mxu0 0.0
    %2346 = vmatpush2.msra.mxu0 0.0
    %2347 = vmatprep.subr.mxu0 0.0
    %2348 = vmatpush2.msra.mxu0 0.0
    %2349 = vmatprep.subr.mxu0 0.0
    %2350 = vmatpush2.msra.mxu0 0.0
    %2351 = vmatprep.mubr.f32.mxu0 0.0
    %2352 = vmatmul.mubr.f32.gmra.mxu0 %v2285
    %v2353 = vpop.f32.mrf.mxu0
    %v2354 = vadd.f32 0.0, %v2353
    %v2355 = vpop.f32.mrf.mxu0
    %2356 = vdwg.mxu0
    %2358 = vrot.lane.b32.xlu0 %v2354, 16
    %v2359 = vpop.permute.xlu0 %2358
    %2361 = vst.msk [vmem:[#allocation2] sm:$0xff] %vm679, %v2359
    %2362 = vrot.lane.b32.xlu0 %v1854, 104
    %v2363 = vpop.permute.xlu0 %2362
    %2364 = vrot.lane.b32.xlu0 %v1846, 104
    %v2365 = vpop.permute.xlu0 %2364
    %v2366 = vsel %vm175, %v2363, 0
    %v2368 = vsel %vm175, %v2365, 0
    %2370 = vmatprep.subr.mxu0 0.0
    %2371 = vmatpush1.xpose.msra.mxu0 0.0
    %2372 = vmatprep.subr.mxu0 0.0
    %2373 = vmatpush1.xpose.msra.mxu0 0.0
    %2374 = vmatprep.subr.mxu0 0.0
    %2375 = vmatpush1.xpose.msra.mxu0 0.0
    %2376 = vmatprep.subr.mxu0 0.0
    %2377 = vmatpush1.xpose.msra.mxu0 0.0
    %2378 = vmatprep.subr.mxu0 0.0
    %2379 = vmatpush1.xpose.msra.mxu0 0.0
    %2380 = vmatprep.subr.mxu0 0.0
    %2381 = vmatpush1.xpose.msra.mxu0 0.0
    %2382 = vmatprep.subr.mxu0 0.0
    %2383 = vmatpush1.xpose.msra.mxu0 0.0
    %2384 = vmatprep.subr.mxu0 0.0
    %2385 = vmatpush1.xpose.msra.mxu0 0.0
    %2386 = vmatprep.subr.mxu0 0.0
    %2387 = vmatpush1.xpose.msra.mxu0 0.0
    %2388 = vmatprep.subr.mxu0 0.0
    %2389 = vmatpush1.xpose.msra.mxu0 0.0
    %2390 = vmatprep.subr.mxu0 0.0
    %2391 = vmatpush1.xpose.msra.mxu0 0.0
    %2392 = vmatprep.subr.mxu0 0.0
    %2393 = vmatpush1.xpose.msra.mxu0 0.0
    %2394 = vmatprep.subr.mxu0 0.0
    %2395 = vmatpush1.xpose.msra.mxu0 0.0
    %2396 = vmatprep.subr.mxu0 0.0
    %2397 = vmatpush1.xpose.msra.mxu0 0.0
    %2398 = vmatprep.subr.mxu0 0.0
    %2399 = vmatpush1.xpose.msra.mxu0 0.0
    %2400 = vmatprep.subr.mxu0 0.0
    %2401 = vmatpush1.xpose.msra.mxu0 %v2368
    %2402 = vmatprep.subr.mxu0 0.0
    %2403 = vmatpush2.xpose.msra.mxu0 0.0
    %2404 = vmatprep.subr.mxu0 0.0
    %2405 = vmatpush2.xpose.msra.mxu0 0.0
    %2406 = vmatprep.subr.mxu0 0.0
    %2407 = vmatpush2.xpose.msra.mxu0 0.0
    %2408 = vmatprep.subr.mxu0 0.0
    %2409 = vmatpush2.xpose.msra.mxu0 0.0
    %2410 = vmatprep.subr.mxu0 0.0
    %2411 = vmatpush2.xpose.msra.mxu0 0.0
    %2412 = vmatprep.subr.mxu0 0.0
    %2413 = vmatpush2.xpose.msra.mxu0 0.0
    %2414 = vmatprep.subr.mxu0 0.0
    %2415 = vmatpush2.xpose.msra.mxu0 0.0
    %2416 = vmatprep.subr.mxu0 0.0
    %2417 = vmatpush2.xpose.msra.mxu0 0.0
    %2418 = vmatprep.subr.mxu0 0.0
    %2419 = vmatpush2.xpose.msra.mxu0 0.0
    %2420 = vmatprep.subr.mxu0 0.0
    %2421 = vmatpush2.xpose.msra.mxu0 0.0
    %2422 = vmatprep.subr.mxu0 0.0
    %2423 = vmatpush2.xpose.msra.mxu0 0.0
    %2424 = vmatprep.subr.mxu0 0.0
    %2425 = vmatpush2.xpose.msra.mxu0 0.0
    %2426 = vmatprep.subr.mxu0 0.0
    %2427 = vmatpush2.xpose.msra.mxu0 0.0
    %2428 = vmatprep.subr.mxu0 0.0
    %2429 = vmatpush2.xpose.msra.mxu0 0.0
    %2430 = vmatprep.subr.mxu0 0.0
    %2431 = vmatpush2.xpose.msra.mxu0 0.0
    %2432 = vmatprep.subr.mxu0 0.0
    %2433 = vmatpush2.xpose.msra.mxu0 0.0
    %2434 = vmatprep.mubr.f32.mxu0 0.0
    %2435 = vmatmul.mubr.f32.gmra.mxu0 %v2366
    %v2436 = vpop.f32.mrf.mxu0
    %v2437 = vadd.f32 0.0, %v2436
    %v2438 = vpop.f32.mrf.mxu0
    %2439 = vdwg.mxu0
    %v2440 = vsel %vm175, %v2437, -inf
    %2441 = vmax.xlane.f32.xlu0 %v2440
    %v2442 = vpop.xlane.xlu0 %2441
    %v2443 = vsub.f32 %v2437, %v2442
    %v2444 = vmul.f32 %v2443, 1.442695
    %v2445 = vpow.pop %v2444
    %v2446 = vsel %vm175, %v2445, 0.0
    %2447 = vadd.xlane.f32.xlu0 %v2446
    %v2448 = vpop.xlane.xlu0 %2447
    %v2449 = vrcp.pop %v2448
    %v2450 = vmul.f32 %v2445, %v2449
    %v2451 = vadd.f32 %v2280, %v2450
    %2452 = vrot.lane.b32.xlu0 %v1846, 72
    %v2453 = vpop.permute.xlu0 %2452
    %v2456 = vsel %vm175, %v2450, 0
    %2458 = vmatprep.subr.mxu0 0.0
    %2459 = vmatpush1.msra.mxu0 0.0
    %2460 = vmatprep.subr.mxu0 0.0
    %2461 = vmatpush1.msra.mxu0 0.0
    %2462 = vmatprep.subr.mxu0 0.0
    %2463 = vmatpush1.msra.mxu0 0.0
    %2464 = vmatprep.subr.mxu0 0.0
    %2465 = vmatpush1.msra.mxu0 0.0
    %2466 = vmatprep.subr.mxu0 0.0
    %2467 = vmatpush1.msra.mxu0 0.0
    %2468 = vmatprep.subr.mxu0 0.0
    %2469 = vmatpush1.msra.mxu0 0.0
    %2470 = vmatprep.subr.mxu0 0.0
    %2471 = vmatpush1.msra.mxu0 0.0
    %2472 = vmatprep.subr.mxu0 0.0
    %2473 = vmatpush1.msra.mxu0 0.0
    %2474 = vmatprep.subr.mxu0 0.0
    %2475 = vmatpush1.msra.mxu0 0.0
    %2476 = vmatprep.subr.mxu0 0.0
    %2477 = vmatpush1.msra.mxu0 0.0
    %2478 = vmatprep.subr.mxu0 0.0
    %2479 = vmatpush1.msra.mxu0 0.0
    %2480 = vmatprep.subr.mxu0 0.0
    %2481 = vmatpush1.msra.mxu0 0.0
    %2482 = vmatprep.subr.mxu0 0.0
    %2483 = vmatpush1.msra.mxu0 0.0
    %2484 = vmatprep.subr.mxu0 0.0
    %2485 = vmatpush1.msra.mxu0 0.0
    %2486 = vmatprep.subr.mxu0 0.0
    %2487 = vmatpush1.msra.mxu0 0.0
    %2488 = vmatprep.subr.mxu0 0.0
    %2489 = vmatpush1.msra.mxu0 %v2453
    %2490 = vmatprep.subr.mxu0 0.0
    %2491 = vmatpush2.msra.mxu0 0.0
    %2492 = vmatprep.subr.mxu0 0.0
    %2493 = vmatpush2.msra.mxu0 0.0
    %2494 = vmatprep.subr.mxu0 0.0
    %2495 = vmatpush2.msra.mxu0 0.0
    %2496 = vmatprep.subr.mxu0 0.0
    %2497 = vmatpush2.msra.mxu0 0.0
    %2498 = vmatprep.subr.mxu0 0.0
    %2499 = vmatpush2.msra.mxu0 0.0
    %2500 = vmatprep.subr.mxu0 0.0
    %2501 = vmatpush2.msra.mxu0 0.0
    %2502 = vmatprep.subr.mxu0 0.0
    %2503 = vmatpush2.msra.mxu0 0.0
    %2504 = vmatprep.subr.mxu0 0.0
    %2505 = vmatpush2.msra.mxu0 0.0
    %2506 = vmatprep.subr.mxu0 0.0
    %2507 = vmatpush2.msra.mxu0 0.0
    %2508 = vmatprep.subr.mxu0 0.0
    %2509 = vmatpush2.msra.mxu0 0.0
    %2510 = vmatprep.subr.mxu0 0.0
    %2511 = vmatpush2.msra.mxu0 0.0
    %2512 = vmatprep.subr.mxu0 0.0
    %2513 = vmatpush2.msra.mxu0 0.0
    %2514 = vmatprep.subr.mxu0 0.0
    %2515 = vmatpush2.msra.mxu0 0.0
    %2516 = vmatprep.subr.mxu0 0.0
    %2517 = vmatpush2.msra.mxu0 0.0
    %2518 = vmatprep.subr.mxu0 0.0
    %2519 = vmatpush2.msra.mxu0 0.0
    %2520 = vmatprep.subr.mxu0 0.0
    %2521 = vmatpush2.msra.mxu0 0.0
    %2522 = vmatprep.mubr.f32.mxu0 0.0
    %2523 = vmatmul.mubr.f32.gmra.mxu0 %v2456
    %v2524 = vpop.f32.mrf.mxu0
    %v2525 = vadd.f32 0.0, %v2524
    %v2526 = vpop.f32.mrf.mxu0
    %2527 = vdwg.mxu0
    %2529 = vrot.lane.b32.xlu0 %v2525, 24
    %v2530 = vpop.permute.xlu0 %2529
    %2532 = vst.msk [vmem:[#allocation2] sm:$0xff] %vm850, %v2530
    %v2533 = vmul.f32 %v2451, 0.25
    %2534 = vst.msk [vmem:[#allocation3] sm:$0xff] %vm175, %v2533
    %v2535 = vmul.f32 %v1759, 0.35355338
    %v2537 = vsel %vm175, %v2535, 0
    %v2540 = vsel %vm175, %v1851, 0
    %2542 = vmatprep.subr.mxu0 0.0
    %2543 = vmatpush1.xpose.msra.mxu0 0.0
    %2544 = vmatprep.subr.mxu0 0.0
    %2545 = vmatpush1.xpose.msra.mxu0 0.0
    %2546 = vmatprep.subr.mxu0 0.0
    %2547 = vmatpush1.xpose.msra.mxu0 0.0
    %2548 = vmatprep.subr.mxu0 0.0
    %2549 = vmatpush1.xpose.msra.mxu0 0.0
    %2550 = vmatprep.subr.mxu0 0.0
    %2551 = vmatpush1.xpose.msra.mxu0 0.0
    %2552 = vmatprep.subr.mxu0 0.0
    %2553 = vmatpush1.xpose.msra.mxu0 0.0
    %2554 = vmatprep.subr.mxu0 0.0
    %2555 = vmatpush1.xpose.msra.mxu0 0.0
    %2556 = vmatprep.subr.mxu0 0.0
    %2557 = vmatpush1.xpose.msra.mxu0 0.0
    %2558 = vmatprep.subr.mxu0 0.0
    %2559 = vmatpush1.xpose.msra.mxu0 0.0
    %2560 = vmatprep.subr.mxu0 0.0
    %2561 = vmatpush1.xpose.msra.mxu0 0.0
    %2562 = vmatprep.subr.mxu0 0.0
    %2563 = vmatpush1.xpose.msra.mxu0 0.0
    %2564 = vmatprep.subr.mxu0 0.0
    %2565 = vmatpush1.xpose.msra.mxu0 0.0
    %2566 = vmatprep.subr.mxu0 0.0
    %2567 = vmatpush1.xpose.msra.mxu0 0.0
    %2568 = vmatprep.subr.mxu0 0.0
    %2569 = vmatpush1.xpose.msra.mxu0 0.0
    %2570 = vmatprep.subr.mxu0 0.0
    %2571 = vmatpush1.xpose.msra.mxu0 0.0
    %2572 = vmatprep.subr.mxu0 0.0
    %2573 = vmatpush1.xpose.msra.mxu0 %v2540
    %2574 = vmatprep.subr.mxu0 0.0
    %2575 = vmatpush2.xpose.msra.mxu0 0.0
    %2576 = vmatprep.subr.mxu0 0.0
    %2577 = vmatpush2.xpose.msra.mxu0 0.0
    %2578 = vmatprep.subr.mxu0 0.0
    %2579 = vmatpush2.xpose.msra.mxu0 0.0
    %2580 = vmatprep.subr.mxu0 0.0
    %2581 = vmatpush2.xpose.msra.mxu0 0.0
    %2582 = vmatprep.subr.mxu0 0.0
    %2583 = vmatpush2.xpose.msra.mxu0 0.0
    %2584 = vmatprep.subr.mxu0 0.0
    %2585 = vmatpush2.xpose.msra.mxu0 0.0
    %2586 = vmatprep.subr.mxu0 0.0
    %2587 = vmatpush2.xpose.msra.mxu0 0.0
    %2588 = vmatprep.subr.mxu0 0.0
    %2589 = vmatpush2.xpose.msra.mxu0 0.0
    %2590 = vmatprep.subr.mxu0 0.0
    %2591 = vmatpush2.xpose.msra.mxu0 0.0
    %2592 = vmatprep.subr.mxu0 0.0
    %2593 = vmatpush2.xpose.msra.mxu0 0.0
    %2594 = vmatprep.subr.mxu0 0.0
    %2595 = vmatpush2.xpose.msra.mxu0 0.0
    %2596 = vmatprep.subr.mxu0 0.0
    %2597 = vmatpush2.xpose.msra.mxu0 0.0
    %2598 = vmatprep.subr.mxu0 0.0
    %2599 = vmatpush2.xpose.msra.mxu0 0.0
    %2600 = vmatprep.subr.mxu0 0.0
    %2601 = vmatpush2.xpose.msra.mxu0 0.0
    %2602 = vmatprep.subr.mxu0 0.0
    %2603 = vmatpush2.xpose.msra.mxu0 0.0
    %2604 = vmatprep.subr.mxu0 0.0
    %2605 = vmatpush2.xpose.msra.mxu0 0.0
    %2606 = vmatprep.mubr.f32.mxu0 0.0
    %2607 = vmatmul.mubr.f32.gmra.mxu0 %v2537
    %v2608 = vpop.f32.mrf.mxu0
    %v2609 = vadd.f32 0.0, %v2608
    %v2610 = vpop.f32.mrf.mxu0
    %2611 = vdwg.mxu0
    %v2612 = vsel %vm175, %v2609, -inf
    %2613 = vmax.xlane.f32.xlu0 %v2612
    %v2614 = vpop.xlane.xlu0 %2613
    %v2615 = vsub.f32 %v2609, %v2614
    %v2616 = vmul.f32 %v2615, 1.442695
    %v2617 = vpow.pop %v2616
    %v2618 = vsel %vm175, %v2617, 0.0
    %2619 = vadd.xlane.f32.xlu0 %v2618
    %v2620 = vpop.xlane.xlu0 %2619
    %v2621 = vrcp.pop %v2620
    %v2622 = vmul.f32 %v2617, %v2621
    %v2623 = vadd.f32 %v2622, 0.0
    %2624 = vrot.lane.b32.xlu0 %v1851, 96
    %v2625 = vpop.permute.xlu0 %2624
    %v2628 = vsel %vm175, %v2622, 0
    %2630 = vmatprep.subr.mxu0 0.0
    %2631 = vmatpush1.msra.mxu0 0.0
    %2632 = vmatprep.subr.mxu0 0.0
    %2633 = vmatpush1.msra.mxu0 0.0
    %2634 = vmatprep.subr.mxu0 0.0
    %2635 = vmatpush1.msra.mxu0 0.0
    %2636 = vmatprep.subr.mxu0 0.0
    %2637 = vmatpush1.msra.mxu0 0.0
    %2638 = vmatprep.subr.mxu0 0.0
    %2639 = vmatpush1.msra.mxu0 0.0
    %2640 = vmatprep.subr.mxu0 0.0
    %2641 = vmatpush1.msra.mxu0 0.0
    %2642 = vmatprep.subr.mxu0 0.0
    %2643 = vmatpush1.msra.mxu0 0.0
    %2644 = vmatprep.subr.mxu0 0.0
    %2645 = vmatpush1.msra.mxu0 0.0
    %2646 = vmatprep.subr.mxu0 0.0
    %2647 = vmatpush1.msra.mxu0 0.0
    %2648 = vmatprep.subr.mxu0 0.0
    %2649 = vmatpush1.msra.mxu0 0.0
    %2650 = vmatprep.subr.mxu0 0.0
    %2651 = vmatpush1.msra.mxu0 0.0
    %2652 = vmatprep.subr.mxu0 0.0
    %2653 = vmatpush1.msra.mxu0 0.0
    %2654 = vmatprep.subr.mxu0 0.0
    %2655 = vmatpush1.msra.mxu0 0.0
    %2656 = vmatprep.subr.mxu0 0.0
    %2657 = vmatpush1.msra.mxu0 0.0
    %2658 = vmatprep.subr.mxu0 0.0
    %2659 = vmatpush1.msra.mxu0 0.0
    %2660 = vmatprep.subr.mxu0 0.0
    %2661 = vmatpush1.msra.mxu0 %v2625
    %2662 = vmatprep.subr.mxu0 0.0
    %2663 = vmatpush2.msra.mxu0 0.0
    %2664 = vmatprep.subr.mxu0 0.0
    %2665 = vmatpush2.msra.mxu0 0.0
    %2666 = vmatprep.subr.mxu0 0.0
    %2667 = vmatpush2.msra.mxu0 0.0
    %2668 = vmatprep.subr.mxu0 0.0
    %2669 = vmatpush2.msra.mxu0 0.0
    %2670 = vmatprep.subr.mxu0 0.0
    %2671 = vmatpush2.msra.mxu0 0.0
    %2672 = vmatprep.subr.mxu0 0.0
    %2673 = vmatpush2.msra.mxu0 0.0
    %2674 = vmatprep.subr.mxu0 0.0
    %2675 = vmatpush2.msra.mxu0 0.0
    %2676 = vmatprep.subr.mxu0 0.0
    %2677 = vmatpush2.msra.mxu0 0.0
    %2678 = vmatprep.subr.mxu0 0.0
    %2679 = vmatpush2.msra.mxu0 0.0
    %2680 = vmatprep.subr.mxu0 0.0
    %2681 = vmatpush2.msra.mxu0 0.0
    %2682 = vmatprep.subr.mxu0 0.0
    %2683 = vmatpush2.msra.mxu0 0.0
    %2684 = vmatprep.subr.mxu0 0.0
    %2685 = vmatpush2.msra.mxu0 0.0
    %2686 = vmatprep.subr.mxu0 0.0
    %2687 = vmatpush2.msra.mxu0 0.0
    %2688 = vmatprep.subr.mxu0 0.0
    %2689 = vmatpush2.msra.mxu0 0.0
    %2690 = vmatprep.subr.mxu0 0.0
    %2691 = vmatpush2.msra.mxu0 0.0
    %2692 = vmatprep.subr.mxu0 0.0
    %2693 = vmatpush2.msra.mxu0 0.0
    %2694 = vmatprep.mubr.f32.mxu0 0.0
    %2695 = vmatmul.mubr.f32.gmra.mxu0 %v2628
    %v2696 = vpop.f32.mrf.mxu0
    %v2697 = vadd.f32 0.0, %v2696
    %v2698 = vpop.f32.mrf.mxu0
    %2699 = vdwg.mxu0
    %2700 = vst.msk [vmem:[#allocation2 + $0x8] sm:$0xff] %vm175, %v2697
    %2701 = vrot.lane.b32.xlu0 %v2535, 120
    %v2702 = vpop.permute.xlu0 %2701
    %2703 = vrot.lane.b32.xlu0 %v1851, 120
    %v2704 = vpop.permute.xlu0 %2703
    %v2705 = vsel %vm175, %v2702, 0
    %v2707 = vsel %vm175, %v2704, 0
    %2709 = vmatprep.subr.mxu0 0.0
    %2710 = vmatpush1.xpose.msra.mxu0 0.0
    %2711 = vmatprep.subr.mxu0 0.0
    %2712 = vmatpush1.xpose.msra.mxu0 0.0
    %2713 = vmatprep.subr.mxu0 0.0
    %2714 = vmatpush1.xpose.msra.mxu0 0.0
    %2715 = vmatprep.subr.mxu0 0.0
    %2716 = vmatpush1.xpose.msra.mxu0 0.0
    %2717 = vmatprep.subr.mxu0 0.0
    %2718 = vmatpush1.xpose.msra.mxu0 0.0
    %2719 = vmatprep.subr.mxu0 0.0
    %2720 = vmatpush1.xpose.msra.mxu0 0.0
    %2721 = vmatprep.subr.mxu0 0.0
    %2722 = vmatpush1.xpose.msra.mxu0 0.0
    %2723 = vmatprep.subr.mxu0 0.0
    %2724 = vmatpush1.xpose.msra.mxu0 0.0
    %2725 = vmatprep.subr.mxu0 0.0
    %2726 = vmatpush1.xpose.msra.mxu0 0.0
    %2727 = vmatprep.subr.mxu0 0.0
    %2728 = vmatpush1.xpose.msra.mxu0 0.0
    %2729 = vmatprep.subr.mxu0 0.0
    %2730 = vmatpush1.xpose.msra.mxu0 0.0
    %2731 = vmatprep.subr.mxu0 0.0
    %2732 = vmatpush1.xpose.msra.mxu0 0.0
    %2733 = vmatprep.subr.mxu0 0.0
    %2734 = vmatpush1.xpose.msra.mxu0 0.0
    %2735 = vmatprep.subr.mxu0 0.0
    %2736 = vmatpush1.xpose.msra.mxu0 0.0
    %2737 = vmatprep.subr.mxu0 0.0
    %2738 = vmatpush1.xpose.msra.mxu0 0.0
    %2739 = vmatprep.subr.mxu0 0.0
    %2740 = vmatpush1.xpose.msra.mxu0 %v2707
    %2741 = vmatprep.subr.mxu0 0.0
    %2742 = vmatpush2.xpose.msra.mxu0 0.0
    %2743 = vmatprep.subr.mxu0 0.0
    %2744 = vmatpush2.xpose.msra.mxu0 0.0
    %2745 = vmatprep.subr.mxu0 0.0
    %2746 = vmatpush2.xpose.msra.mxu0 0.0
    %2747 = vmatprep.subr.mxu0 0.0
    %2748 = vmatpush2.xpose.msra.mxu0 0.0
    %2749 = vmatprep.subr.mxu0 0.0
    %2750 = vmatpush2.xpose.msra.mxu0 0.0
    %2751 = vmatprep.subr.mxu0 0.0
    %2752 = vmatpush2.xpose.msra.mxu0 0.0
    %2753 = vmatprep.subr.mxu0 0.0
    %2754 = vmatpush2.xpose.msra.mxu0 0.0
    %2755 = vmatprep.subr.mxu0 0.0
    %2756 = vmatpush2.xpose.msra.mxu0 0.0
    %2757 = vmatprep.subr.mxu0 0.0
    %2758 = vmatpush2.xpose.msra.mxu0 0.0
    %2759 = vmatprep.subr.mxu0 0.0
    %2760 = vmatpush2.xpose.msra.mxu0 0.0
    %2761 = vmatprep.subr.mxu0 0.0
    %2762 = vmatpush2.xpose.msra.mxu0 0.0
    %2763 = vmatprep.subr.mxu0 0.0
    %2764 = vmatpush2.xpose.msra.mxu0 0.0
    %2765 = vmatprep.subr.mxu0 0.0
    %2766 = vmatpush2.xpose.msra.mxu0 0.0
    %2767 = vmatprep.subr.mxu0 0.0
    %2768 = vmatpush2.xpose.msra.mxu0 0.0
    %2769 = vmatprep.subr.mxu0 0.0
    %2770 = vmatpush2.xpose.msra.mxu0 0.0
    %2771 = vmatprep.subr.mxu0 0.0
    %2772 = vmatpush2.xpose.msra.mxu0 0.0
    %2773 = vmatprep.mubr.f32.mxu0 0.0
    %2774 = vmatmul.mubr.f32.gmra.mxu0 %v2705
    %v2775 = vpop.f32.mrf.mxu0
    %v2776 = vadd.f32 0.0, %v2775
    %v2777 = vpop.f32.mrf.mxu0
    %2778 = vdwg.mxu0
    %v2779 = vsel %vm175, %v2776, -inf
    %2780 = vmax.xlane.f32.xlu0 %v2779
    %v2781 = vpop.xlane.xlu0 %2780
    %v2782 = vsub.f32 %v2776, %v2781
    %v2783 = vmul.f32 %v2782, 1.442695
    %v2784 = vpow.pop %v2783
    %v2785 = vsel %vm175, %v2784, 0.0
    %2786 = vadd.xlane.f32.xlu0 %v2785
    %v2787 = vpop.xlane.xlu0 %2786
    %v2788 = vrcp.pop %v2787
    %v2789 = vmul.f32 %v2784, %v2788
    %v2790 = vadd.f32 %v2623, %v2789
    %2791 = vrot.lane.b32.xlu0 %v1851, 88
    %v2792 = vpop.permute.xlu0 %2791
    %v2795 = vsel %vm175, %v2789, 0
    %2797 = vmatprep.subr.mxu0 0.0
    %2798 = vmatpush1.msra.mxu0 0.0
    %2799 = vmatprep.subr.mxu0 0.0
    %2800 = vmatpush1.msra.mxu0 0.0
    %2801 = vmatprep.subr.mxu0 0.0
    %2802 = vmatpush1.msra.mxu0 0.0
    %2803 = vmatprep.subr.mxu0 0.0
    %2804 = vmatpush1.msra.mxu0 0.0
    %2805 = vmatprep.subr.mxu0 0.0
    %2806 = vmatpush1.msra.mxu0 0.0
    %2807 = vmatprep.subr.mxu0 0.0
    %2808 = vmatpush1.msra.mxu0 0.0
    %2809 = vmatprep.subr.mxu0 0.0
    %2810 = vmatpush1.msra.mxu0 0.0
    %2811 = vmatprep.subr.mxu0 0.0
    %2812 = vmatpush1.msra.mxu0 0.0
    %2813 = vmatprep.subr.mxu0 0.0
    %2814 = vmatpush1.msra.mxu0 0.0
    %2815 = vmatprep.subr.mxu0 0.0
    %2816 = vmatpush1.msra.mxu0 0.0
    %2817 = vmatprep.subr.mxu0 0.0
    %2818 = vmatpush1.msra.mxu0 0.0
    %2819 = vmatprep.subr.mxu0 0.0
    %2820 = vmatpush1.msra.mxu0 0.0
    %2821 = vmatprep.subr.mxu0 0.0
    %2822 = vmatpush1.msra.mxu0 0.0
    %2823 = vmatprep.subr.mxu0 0.0
    %2824 = vmatpush1.msra.mxu0 0.0
    %2825 = vmatprep.subr.mxu0 0.0
    %2826 = vmatpush1.msra.mxu0 0.0
    %2827 = vmatprep.subr.mxu0 0.0
    %2828 = vmatpush1.msra.mxu0 %v2792
    %2829 = vmatprep.subr.mxu0 0.0
    %2830 = vmatpush2.msra.mxu0 0.0
    %2831 = vmatprep.subr.mxu0 0.0
    %2832 = vmatpush2.msra.mxu0 0.0
    %2833 = vmatprep.subr.mxu0 0.0
    %2834 = vmatpush2.msra.mxu0 0.0
    %2835 = vmatprep.subr.mxu0 0.0
    %2836 = vmatpush2.msra.mxu0 0.0
    %2837 = vmatprep.subr.mxu0 0.0
    %2838 = vmatpush2.msra.mxu0 0.0
    %2839 = vmatprep.subr.mxu0 0.0
    %2840 = vmatpush2.msra.mxu0 0.0
    %2841 = vmatprep.subr.mxu0 0.0
    %2842 = vmatpush2.msra.mxu0 0.0
    %2843 = vmatprep.subr.mxu0 0.0
    %2844 = vmatpush2.msra.mxu0 0.0
    %2845 = vmatprep.subr.mxu0 0.0
    %2846 = vmatpush2.msra.mxu0 0.0
    %2847 = vmatprep.subr.mxu0 0.0
    %2848 = vmatpush2.msra.mxu0 0.0
    %2849 = vmatprep.subr.mxu0 0.0
    %2850 = vmatpush2.msra.mxu0 0.0
    %2851 = vmatprep.subr.mxu0 0.0
    %2852 = vmatpush2.msra.mxu0 0.0
    %2853 = vmatprep.subr.mxu0 0.0
    %2854 = vmatpush2.msra.mxu0 0.0
    %2855 = vmatprep.subr.mxu0 0.0
    %2856 = vmatpush2.msra.mxu0 0.0
    %2857 = vmatprep.subr.mxu0 0.0
    %2858 = vmatpush2.msra.mxu0 0.0
    %2859 = vmatprep.subr.mxu0 0.0
    %2860 = vmatpush2.msra.mxu0 0.0
    %2861 = vmatprep.mubr.f32.mxu0 0.0
    %2862 = vmatmul.mubr.f32.gmra.mxu0 %v2795
    %v2863 = vpop.f32.mrf.mxu0
    %v2864 = vadd.f32 0.0, %v2863
    %v2865 = vpop.f32.mrf.mxu0
    %2866 = vdwg.mxu0
    %2868 = vrot.lane.b32.xlu0 %v2864, 8
    %v2869 = vpop.permute.xlu0 %2868
    %2871 = vst.msk [vmem:[#allocation2 + $0x8] sm:$0xff] %vm508, %v2869
    %2872 = vrot.lane.b32.xlu0 %v2535, 112
    %v2873 = vpop.permute.xlu0 %2872
    %2874 = vrot.lane.b32.xlu0 %v1851, 112
    %v2875 = vpop.permute.xlu0 %2874
    %v2876 = vsel %vm175, %v2873, 0
    %v2878 = vsel %vm175, %v2875, 0
    %2880 = vmatprep.subr.mxu0 0.0
    %2881 = vmatpush1.xpose.msra.mxu0 0.0
    %2882 = vmatprep.subr.mxu0 0.0
    %2883 = vmatpush1.xpose.msra.mxu0 0.0
    %2884 = vmatprep.subr.mxu0 0.0
    %2885 = vmatpush1.xpose.msra.mxu0 0.0
    %2886 = vmatprep.subr.mxu0 0.0
    %2887 = vmatpush1.xpose.msra.mxu0 0.0
    %2888 = vmatprep.subr.mxu0 0.0
    %2889 = vmatpush1.xpose.msra.mxu0 0.0
    %2890 = vmatprep.subr.mxu0 0.0
    %2891 = vmatpush1.xpose.msra.mxu0 0.0
    %2892 = vmatprep.subr.mxu0 0.0
    %2893 = vmatpush1.xpose.msra.mxu0 0.0
    %2894 = vmatprep.subr.mxu0 0.0
    %2895 = vmatpush1.xpose.msra.mxu0 0.0
    %2896 = vmatprep.subr.mxu0 0.0
    %2897 = vmatpush1.xpose.msra.mxu0 0.0
    %2898 = vmatprep.subr.mxu0 0.0
    %2899 = vmatpush1.xpose.msra.mxu0 0.0
    %2900 = vmatprep.subr.mxu0 0.0
    %2901 = vmatpush1.xpose.msra.mxu0 0.0
    %2902 = vmatprep.subr.mxu0 0.0
    %2903 = vmatpush1.xpose.msra.mxu0 0.0
    %2904 = vmatprep.subr.mxu0 0.0
    %2905 = vmatpush1.xpose.msra.mxu0 0.0
    %2906 = vmatprep.subr.mxu0 0.0
    %2907 = vmatpush1.xpose.msra.mxu0 0.0
    %2908 = vmatprep.subr.mxu0 0.0
    %2909 = vmatpush1.xpose.msra.mxu0 0.0
    %2910 = vmatprep.subr.mxu0 0.0
    %2911 = vmatpush1.xpose.msra.mxu0 %v2878
    %2912 = vmatprep.subr.mxu0 0.0
    %2913 = vmatpush2.xpose.msra.mxu0 0.0
    %2914 = vmatprep.subr.mxu0 0.0
    %2915 = vmatpush2.xpose.msra.mxu0 0.0
    %2916 = vmatprep.subr.mxu0 0.0
    %2917 = vmatpush2.xpose.msra.mxu0 0.0
    %2918 = vmatprep.subr.mxu0 0.0
    %2919 = vmatpush2.xpose.msra.mxu0 0.0
    %2920 = vmatprep.subr.mxu0 0.0
    %2921 = vmatpush2.xpose.msra.mxu0 0.0
    %2922 = vmatprep.subr.mxu0 0.0
    %2923 = vmatpush2.xpose.msra.mxu0 0.0
    %2924 = vmatprep.subr.mxu0 0.0
    %2925 = vmatpush2.xpose.msra.mxu0 0.0
    %2926 = vmatprep.subr.mxu0 0.0
    %2927 = vmatpush2.xpose.msra.mxu0 0.0
    %2928 = vmatprep.subr.mxu0 0.0
    %2929 = vmatpush2.xpose.msra.mxu0 0.0
    %2930 = vmatprep.subr.mxu0 0.0
    %2931 = vmatpush2.xpose.msra.mxu0 0.0
    %2932 = vmatprep.subr.mxu0 0.0
    %2933 = vmatpush2.xpose.msra.mxu0 0.0
    %2934 = vmatprep.subr.mxu0 0.0
    %2935 = vmatpush2.xpose.msra.mxu0 0.0
    %2936 = vmatprep.subr.mxu0 0.0
    %2937 = vmatpush2.xpose.msra.mxu0 0.0
    %2938 = vmatprep.subr.mxu0 0.0
    %2939 = vmatpush2.xpose.msra.mxu0 0.0
    %2940 = vmatprep.subr.mxu0 0.0
    %2941 = vmatpush2.xpose.msra.mxu0 0.0
    %2942 = vmatprep.subr.mxu0 0.0
    %2943 = vmatpush2.xpose.msra.mxu0 0.0
    %2944 = vmatprep.mubr.f32.mxu0 0.0
    %2945 = vmatmul.mubr.f32.gmra.mxu0 %v2876
    %v2946 = vpop.f32.mrf.mxu0
    %v2947 = vadd.f32 0.0, %v2946
    %v2948 = vpop.f32.mrf.mxu0
    %2949 = vdwg.mxu0
    %v2950 = vsel %vm175, %v2947, -inf
    %2951 = vmax.xlane.f32.xlu0 %v2950
    %v2952 = vpop.xlane.xlu0 %2951
    %v2953 = vsub.f32 %v2947, %v2952
    %v2954 = vmul.f32 %v2953, 1.442695
    %v2955 = vpow.pop %v2954
    %v2956 = vsel %vm175, %v2955, 0.0
    %2957 = vadd.xlane.f32.xlu0 %v2956
    %v2958 = vpop.xlane.xlu0 %2957
    %v2959 = vrcp.pop %v2958
    %v2960 = vmul.f32 %v2955, %v2959
    %v2961 = vadd.f32 %v2790, %v2960
    %2962 = vrot.lane.b32.xlu0 %v1851, 80
    %v2963 = vpop.permute.xlu0 %2962
    %v2966 = vsel %vm175, %v2960, 0
    %2968 = vmatprep.subr.mxu0 0.0
    %2969 = vmatpush1.msra.mxu0 0.0
    %2970 = vmatprep.subr.mxu0 0.0
    %2971 = vmatpush1.msra.mxu0 0.0
    %2972 = vmatprep.subr.mxu0 0.0
    %2973 = vmatpush1.msra.mxu0 0.0
    %2974 = vmatprep.subr.mxu0 0.0
    %2975 = vmatpush1.msra.mxu0 0.0
    %2976 = vmatprep.subr.mxu0 0.0
    %2977 = vmatpush1.msra.mxu0 0.0
    %2978 = vmatprep.subr.mxu0 0.0
    %2979 = vmatpush1.msra.mxu0 0.0
    %2980 = vmatprep.subr.mxu0 0.0
    %2981 = vmatpush1.msra.mxu0 0.0
    %2982 = vmatprep.subr.mxu0 0.0
    %2983 = vmatpush1.msra.mxu0 0.0
    %2984 = vmatprep.subr.mxu0 0.0
    %2985 = vmatpush1.msra.mxu0 0.0
    %2986 = vmatprep.subr.mxu0 0.0
    %2987 = vmatpush1.msra.mxu0 0.0
    %2988 = vmatprep.subr.mxu0 0.0
    %2989 = vmatpush1.msra.mxu0 0.0
    %2990 = vmatprep.subr.mxu0 0.0
    %2991 = vmatpush1.msra.mxu0 0.0
    %2992 = vmatprep.subr.mxu0 0.0
    %2993 = vmatpush1.msra.mxu0 0.0
    %2994 = vmatprep.subr.mxu0 0.0
    %2995 = vmatpush1.msra.mxu0 0.0
    %2996 = vmatprep.subr.mxu0 0.0
    %2997 = vmatpush1.msra.mxu0 0.0
    %2998 = vmatprep.subr.mxu0 0.0
    %2999 = vmatpush1.msra.mxu0 %v2963
    %3000 = vmatprep.subr.mxu0 0.0
    %3001 = vmatpush2.msra.mxu0 0.0
    %3002 = vmatprep.subr.mxu0 0.0
    %3003 = vmatpush2.msra.mxu0 0.0
    %3004 = vmatprep.subr.mxu0 0.0
    %3005 = vmatpush2.msra.mxu0 0.0
    %3006 = vmatprep.subr.mxu0 0.0
    %3007 = vmatpush2.msra.mxu0 0.0
    %3008 = vmatprep.subr.mxu0 0.0
    %3009 = vmatpush2.msra.mxu0 0.0
    %3010 = vmatprep.subr.mxu0 0.0
    %3011 = vmatpush2.msra.mxu0 0.0
    %3012 = vmatprep.subr.mxu0 0.0
    %3013 = vmatpush2.msra.mxu0 0.0
    %3014 = vmatprep.subr.mxu0 0.0
    %3015 = vmatpush2.msra.mxu0 0.0
    %3016 = vmatprep.subr.mxu0 0.0
    %3017 = vmatpush2.msra.mxu0 0.0
    %3018 = vmatprep.subr.mxu0 0.0
    %3019 = vmatpush2.msra.mxu0 0.0
    %3020 = vmatprep.subr.mxu0 0.0
    %3021 = vmatpush2.msra.mxu0 0.0
    %3022 = vmatprep.subr.mxu0 0.0
    %3023 = vmatpush2.msra.mxu0 0.0
    %3024 = vmatprep.subr.mxu0 0.0
    %3025 = vmatpush2.msra.mxu0 0.0
    %3026 = vmatprep.subr.mxu0 0.0
    %3027 = vmatpush2.msra.mxu0 0.0
    %3028 = vmatprep.subr.mxu0 0.0
    %3029 = vmatpush2.msra.mxu0 0.0
    %3030 = vmatprep.subr.mxu0 0.0
    %3031 = vmatpush2.msra.mxu0 0.0
    %3032 = vmatprep.mubr.f32.mxu0 0.0
    %3033 = vmatmul.mubr.f32.gmra.mxu0 %v2966
    %v3034 = vpop.f32.mrf.mxu0
    %v3035 = vadd.f32 0.0, %v3034
    %v3036 = vpop.f32.mrf.mxu0
    %3037 = vdwg.mxu0
    %3039 = vrot.lane.b32.xlu0 %v3035, 16
    %v3040 = vpop.permute.xlu0 %3039
    %3042 = vst.msk [vmem:[#allocation2 + $0x8] sm:$0xff] %vm679, %v3040
    %3043 = vrot.lane.b32.xlu0 %v2535, 104
    %v3044 = vpop.permute.xlu0 %3043
    %3045 = vrot.lane.b32.xlu0 %v1851, 104
    %v3046 = vpop.permute.xlu0 %3045
    %v3047 = vsel %vm175, %v3044, 0
    %v3049 = vsel %vm175, %v3046, 0
    %3051 = vmatprep.subr.mxu0 0.0
    %3052 = vmatpush1.xpose.msra.mxu0 0.0
    %3053 = vmatprep.subr.mxu0 0.0
    %3054 = vmatpush1.xpose.msra.mxu0 0.0
    %3055 = vmatprep.subr.mxu0 0.0
    %3056 = vmatpush1.xpose.msra.mxu0 0.0
    %3057 = vmatprep.subr.mxu0 0.0
    %3058 = vmatpush1.xpose.msra.mxu0 0.0
    %3059 = vmatprep.subr.mxu0 0.0
    %3060 = vmatpush1.xpose.msra.mxu0 0.0
    %3061 = vmatprep.subr.mxu0 0.0
    %3062 = vmatpush1.xpose.msra.mxu0 0.0
    %3063 = vmatprep.subr.mxu0 0.0
    %3064 = vmatpush1.xpose.msra.mxu0 0.0
    %3065 = vmatprep.subr.mxu0 0.0
    %3066 = vmatpush1.xpose.msra.mxu0 0.0
    %3067 = vmatprep.subr.mxu0 0.0
    %3068 = vmatpush1.xpose.msra.mxu0 0.0
    %3069 = vmatprep.subr.mxu0 0.0
    %3070 = vmatpush1.xpose.msra.mxu0 0.0
    %3071 = vmatprep.subr.mxu0 0.0
    %3072 = vmatpush1.xpose.msra.mxu0 0.0
    %3073 = vmatprep.subr.mxu0 0.0
    %3074 = vmatpush1.xpose.msra.mxu0 0.0
    %3075 = vmatprep.subr.mxu0 0.0
    %3076 = vmatpush1.xpose.msra.mxu0 0.0
    %3077 = vmatprep.subr.mxu0 0.0
    %3078 = vmatpush1.xpose.msra.mxu0 0.0
    %3079 = vmatprep.subr.mxu0 0.0
    %3080 = vmatpush1.xpose.msra.mxu0 0.0
    %3081 = vmatprep.subr.mxu0 0.0
    %3082 = vmatpush1.xpose.msra.mxu0 %v3049
    %3083 = vmatprep.subr.mxu0 0.0
    %3084 = vmatpush2.xpose.msra.mxu0 0.0
    %3085 = vmatprep.subr.mxu0 0.0
    %3086 = vmatpush2.xpose.msra.mxu0 0.0
    %3087 = vmatprep.subr.mxu0 0.0
    %3088 = vmatpush2.xpose.msra.mxu0 0.0
    %3089 = vmatprep.subr.mxu0 0.0
    %3090 = vmatpush2.xpose.msra.mxu0 0.0
    %3091 = vmatprep.subr.mxu0 0.0
    %3092 = vmatpush2.xpose.msra.mxu0 0.0
    %3093 = vmatprep.subr.mxu0 0.0
    %3094 = vmatpush2.xpose.msra.mxu0 0.0
    %3095 = vmatprep.subr.mxu0 0.0
    %3096 = vmatpush2.xpose.msra.mxu0 0.0
    %3097 = vmatprep.subr.mxu0 0.0
    %3098 = vmatpush2.xpose.msra.mxu0 0.0
    %3099 = vmatprep.subr.mxu0 0.0
    %3100 = vmatpush2.xpose.msra.mxu0 0.0
    %3101 = vmatprep.subr.mxu0 0.0
    %3102 = vmatpush2.xpose.msra.mxu0 0.0
    %3103 = vmatprep.subr.mxu0 0.0
    %3104 = vmatpush2.xpose.msra.mxu0 0.0
    %3105 = vmatprep.subr.mxu0 0.0
    %3106 = vmatpush2.xpose.msra.mxu0 0.0
    %3107 = vmatprep.subr.mxu0 0.0
    %3108 = vmatpush2.xpose.msra.mxu0 0.0
    %3109 = vmatprep.subr.mxu0 0.0
    %3110 = vmatpush2.xpose.msra.mxu0 0.0
    %3111 = vmatprep.subr.mxu0 0.0
    %3112 = vmatpush2.xpose.msra.mxu0 0.0
    %3113 = vmatprep.subr.mxu0 0.0
    %3114 = vmatpush2.xpose.msra.mxu0 0.0
    %3115 = vmatprep.mubr.f32.mxu0 0.0
    %3116 = vmatmul.mubr.f32.gmra.mxu0 %v3047
    %v3117 = vpop.f32.mrf.mxu0
    %v3118 = vadd.f32 0.0, %v3117
    %v3119 = vpop.f32.mrf.mxu0
    %3120 = vdwg.mxu0
    %v3121 = vsel %vm175, %v3118, -inf
    %3122 = vmax.xlane.f32.xlu0 %v3121
    %v3123 = vpop.xlane.xlu0 %3122
    %v3124 = vsub.f32 %v3118, %v3123
    %v3125 = vmul.f32 %v3124, 1.442695
    %v3126 = vpow.pop %v3125
    %v3127 = vsel %vm175, %v3126, 0.0
    %3128 = vadd.xlane.f32.xlu0 %v3127
    %v3129 = vpop.xlane.xlu0 %3128
    %v3130 = vrcp.pop %v3129
    %v3131 = vmul.f32 %v3126, %v3130
    %v3132 = vadd.f32 %v2961, %v3131
    %3133 = vrot.lane.b32.xlu0 %v1851, 72
    %v3134 = vpop.permute.xlu0 %3133
    %v3137 = vsel %vm175, %v3131, 0
    %3139 = vmatprep.subr.mxu0 0.0
    %3140 = vmatpush1.msra.mxu0 0.0
    %3141 = vmatprep.subr.mxu0 0.0
    %3142 = vmatpush1.msra.mxu0 0.0
    %3143 = vmatprep.subr.mxu0 0.0
    %3144 = vmatpush1.msra.mxu0 0.0
    %3145 = vmatprep.subr.mxu0 0.0
    %3146 = vmatpush1.msra.mxu0 0.0
    %3147 = vmatprep.subr.mxu0 0.0
    %3148 = vmatpush1.msra.mxu0 0.0
    %3149 = vmatprep.subr.mxu0 0.0
    %3150 = vmatpush1.msra.mxu0 0.0
    %3151 = vmatprep.subr.mxu0 0.0
    %3152 = vmatpush1.msra.mxu0 0.0
    %3153 = vmatprep.subr.mxu0 0.0
    %3154 = vmatpush1.msra.mxu0 0.0
    %3155 = vmatprep.subr.mxu0 0.0
    %3156 = vmatpush1.msra.mxu0 0.0
    %3157 = vmatprep.subr.mxu0 0.0
    %3158 = vmatpush1.msra.mxu0 0.0
    %3159 = vmatprep.subr.mxu0 0.0
    %3160 = vmatpush1.msra.mxu0 0.0
    %3161 = vmatprep.subr.mxu0 0.0
    %3162 = vmatpush1.msra.mxu0 0.0
    %3163 = vmatprep.subr.mxu0 0.0
    %3164 = vmatpush1.msra.mxu0 0.0
    %3165 = vmatprep.subr.mxu0 0.0
    %3166 = vmatpush1.msra.mxu0 0.0
    %3167 = vmatprep.subr.mxu0 0.0
    %3168 = vmatpush1.msra.mxu0 0.0
    %3169 = vmatprep.subr.mxu0 0.0
    %3170 = vmatpush1.msra.mxu0 %v3134
    %3171 = vmatprep.subr.mxu0 0.0
    %3172 = vmatpush2.msra.mxu0 0.0
    %3173 = vmatprep.subr.mxu0 0.0
    %3174 = vmatpush2.msra.mxu0 0.0
    %3175 = vmatprep.subr.mxu0 0.0
    %3176 = vmatpush2.msra.mxu0 0.0
    %3177 = vmatprep.subr.mxu0 0.0
    %3178 = vmatpush2.msra.mxu0 0.0
    %3179 = vmatprep.subr.mxu0 0.0
    %3180 = vmatpush2.msra.mxu0 0.0
    %3181 = vmatprep.subr.mxu0 0.0
    %3182 = vmatpush2.msra.mxu0 0.0
    %3183 = vmatprep.subr.mxu0 0.0
    %3184 = vmatpush2.msra.mxu0 0.0
    %3185 = vmatprep.subr.mxu0 0.0
    %3186 = vmatpush2.msra.mxu0 0.0
    %3187 = vmatprep.subr.mxu0 0.0
    %3188 = vmatpush2.msra.mxu0 0.0
    %3189 = vmatprep.subr.mxu0 0.0
    %3190 = vmatpush2.msra.mxu0 0.0
    %3191 = vmatprep.subr.mxu0 0.0
    %3192 = vmatpush2.msra.mxu0 0.0
    %3193 = vmatprep.subr.mxu0 0.0
    %3194 = vmatpush2.msra.mxu0 0.0
    %3195 = vmatprep.subr.mxu0 0.0
    %3196 = vmatpush2.msra.mxu0 0.0
    %3197 = vmatprep.subr.mxu0 0.0
    %3198 = vmatpush2.msra.mxu0 0.0
    %3199 = vmatprep.subr.mxu0 0.0
    %3200 = vmatpush2.msra.mxu0 0.0
    %3201 = vmatprep.subr.mxu0 0.0
    %3202 = vmatpush2.msra.mxu0 0.0
    %3203 = vmatprep.mubr.f32.mxu0 0.0
    %3204 = vmatmul.mubr.f32.gmra.mxu0 %v3137
    %v3205 = vpop.f32.mrf.mxu0
    %v3206 = vadd.f32 0.0, %v3205
    %v3207 = vpop.f32.mrf.mxu0
    %3208 = vdwg.mxu0
    %3210 = vrot.lane.b32.xlu0 %v3206, 24
    %v3211 = vpop.permute.xlu0 %3210
    %3213 = vst.msk [vmem:[#allocation2 + $0x8] sm:$0xff] %vm850, %v3211
    %v3214 = vmul.f32 %v3132, 0.25
    %3215 = vst.msk [vmem:[#allocation3 + $0x8] sm:$0xff] %vm175, %v3214
    %v3216 = vld [vmem:[#allocation2] sm:$0xff]
    %v3217 = vld [vmem:[#allocation2 + $0x8] sm:$0xff]
    %v3218 = vld [vmem:[%s12] sm:$0xff]
    %v3219 = vld [vmem:[%s12 + $0x8] sm:$0xff]
    %v3220 = vld [vmem:[%s12 + $0x10] sm:$0xff]
    %v3221 = vld [vmem:[%s12 + $0x18] sm:$0xff]
    %v3222 = vld [vmem:[%s13] sm:$0x1]
    %v3224 = vlaneseq
    %v3225 = vshrl.u32 %v3224, 7
    %v3226 = vsub.s32 0, %v3225
    %v3227 = vrot.slane %v3222, %v3226
    %v3230 = vsel %vm89, %v3216, 0
    %v3233 = vsel %vm89, %v3217, 0
    %3235 = vmatprep.subr.mxu0 0.0
    %3236 = vmatpush1.msra.mxu0 0.0
    %3237 = vmatprep.subr.mxu0 0.0
    %3238 = vmatpush1.msra.mxu0 0.0
    %3239 = vmatprep.subr.mxu0 0.0
    %3240 = vmatpush1.msra.mxu0 0.0
    %3241 = vmatprep.subr.mxu0 0.0
    %3242 = vmatpush1.msra.mxu0 0.0
    %3243 = vmatprep.subr.mxu0 0.0
    %3244 = vmatpush1.msra.mxu0 0.0
    %3245 = vmatprep.subr.mxu0 0.0
    %3246 = vmatpush1.msra.mxu0 0.0
    %3247 = vmatprep.subr.mxu0 0.0
    %3248 = vmatpush1.msra.mxu0 0.0
    %3249 = vmatprep.subr.mxu0 0.0
    %3250 = vmatpush1.msra.mxu0 0.0
    %3251 = vmatprep.subr.mxu0 0.0
    %3252 = vmatpush1.msra.mxu0 0.0
    %3253 = vmatprep.subr.mxu0 0.0
    %3254 = vmatpush1.msra.mxu0 0.0
    %3255 = vmatprep.subr.mxu0 0.0
    %3256 = vmatpush1.msra.mxu0 0.0
    %3257 = vmatprep.subr.mxu0 0.0
    %3258 = vmatpush1.msra.mxu0 0.0
    %3259 = vmatprep.subr.mxu0 0.0
    %3260 = vmatpush1.msra.mxu0 %v3221
    %3261 = vmatprep.subr.mxu0 0.0
    %3262 = vmatpush1.msra.mxu0 %v3220
    %3263 = vmatprep.subr.mxu0 0.0
    %3264 = vmatpush1.msra.mxu0 %v3219
    %3265 = vmatprep.subr.mxu0 0.0
    %3266 = vmatpush1.msra.mxu0 %v3218
    %3267 = vmatprep.subr.mxu0 0.0
    %3268 = vmatpush2.msra.mxu0 0.0
    %3269 = vmatprep.subr.mxu0 0.0
    %3270 = vmatpush2.msra.mxu0 0.0
    %3271 = vmatprep.subr.mxu0 0.0
    %3272 = vmatpush2.msra.mxu0 0.0
    %3273 = vmatprep.subr.mxu0 0.0
    %3274 = vmatpush2.msra.mxu0 0.0
    %3275 = vmatprep.subr.mxu0 0.0
    %3276 = vmatpush2.msra.mxu0 0.0
    %3277 = vmatprep.subr.mxu0 0.0
    %3278 = vmatpush2.msra.mxu0 0.0
    %3279 = vmatprep.subr.mxu0 0.0
    %3280 = vmatpush2.msra.mxu0 0.0
    %3281 = vmatprep.subr.mxu0 0.0
    %3282 = vmatpush2.msra.mxu0 0.0
    %3283 = vmatprep.subr.mxu0 0.0
    %3284 = vmatpush2.msra.mxu0 0.0
    %3285 = vmatprep.subr.mxu0 0.0
    %3286 = vmatpush2.msra.mxu0 0.0
    %3287 = vmatprep.subr.mxu0 0.0
    %3288 = vmatpush2.msra.mxu0 0.0
    %3289 = vmatprep.subr.mxu0 0.0
    %3290 = vmatpush2.msra.mxu0 0.0
    %3291 = vmatprep.subr.mxu0 0.0
    %3292 = vmatpush2.msra.mxu0 0.0
    %3293 = vmatprep.subr.mxu0 0.0
    %3294 = vmatpush2.msra.mxu0 0.0
    %3295 = vmatprep.subr.mxu0 0.0
    %3296 = vmatpush2.msra.mxu0 0.0
    %3297 = vmatprep.subr.mxu0 0.0
    %3298 = vmatpush2.msra.mxu0 0.0
    %3299 = vmatprep.mubr.f32.mxu0 0.0
    %3300 = vmatmul.mubr.f32.gmra.mxu0 %v3230
    %v3301 = vpop.f32.mrf.mxu0
    %v3302 = vadd.f32 %v3227, %v3301
    %v3303 = vpop.f32.mrf.mxu0
    %3304 = vmatprep.mubr.f32.mxu0 0.0
    %3305 = vmatmul.mubr.f32.gmra.mxu0 %v3233
    %v3306 = vpop.f32.mrf.mxu0
    %v3307 = vadd.f32 %v3227, %v3306
    %v3308 = vpop.f32.mrf.mxu0
    %3309 = vdwg.mxu0
    %v3310 = vadd.f32 %v3302, %v1668
    %v3311 = vadd.f32 %v3307, %v1669
    %v3312 = vld [vmem:[%s14] sm:$0x1]
    %v3313 = vld [vmem:[%s15] sm:$0x1]
    %v3314 = vsel %vm89, %v3310, 0.0
    %3315 = vadd.xlane.f32.xlu0 %v3314
    %v3316 = vpop.xlane.xlu0 %3315
    %v3317 = vsel %vm89, %v3311, 0.0
    %3318 = vadd.xlane.f32.xlu0 %v3317
    %v3319 = vpop.xlane.xlu0 %3318
    %v3320 = vmul.f32 %v3316, %v1633
    %v3321 = vmul.f32 %v3319, %v1633
    %v3322 = vsub.f32 %v3310, %v3320
    %v3323 = vsub.f32 %v3311, %v3321
    %v3324 = vmul.f32 %v3322, %v3322
    %v3325 = vmul.f32 %v3323, %v3323
    %v3326 = vsel %vm89, %v3324, 0.0
    %3327 = vadd.xlane.f32.xlu0 %v3326
    %v3328 = vpop.xlane.xlu0 %3327
    %v3329 = vsel %vm89, %v3325, 0.0
    %3330 = vadd.xlane.f32.xlu0 %v3329
    %v3331 = vpop.xlane.xlu0 %3330
    %v3332 = vmul.f32 %v3328, %v1633
    %v3333 = vmul.f32 %v3331, %v1633
    %v3334 = vadd.f32 %v3332, 1e-05
    %v3335 = vadd.f32 %v3333, 1e-05
    %v3336 = vrsqrt.pop %v3334
    %v3337 = vrsqrt.pop %v3335
    %v3338 = vmul.f32 %v3322, %v3336
    %v3339 = vmul.f32 %v3323, %v3337
    %v3341 = vlaneseq
    %v3342 = vshrl.u32 %v3341, 7
    %v3343 = vsub.s32 0, %v3342
    %v3344 = vrot.slane %v3312, %v3343
    %v3346 = vmul.f32 %v3338, %v3344
    %v3347 = vmul.f32 %v3339, %v3344
    %v3349 = vlaneseq
    %v3350 = vshrl.u32 %v3349, 7
    %v3351 = vsub.s32 0, %v3350
    %v3352 = vrot.slane %v3313, %v3351
    %v3354 = vadd.f32 %v3346, %v3352
    %v3355 = vadd.f32 %v3347, %v3352
    %v3356 = vld [vmem:[%s16] sm:$0xff]
    %v3357 = vld [vmem:[%s16 + $0x8] sm:$0xff]
    %v3358 = vld [vmem:[%s16 + $0x10] sm:$0xff]
    %v3359 = vld [vmem:[%s16 + $0x18] sm:$0xff]
    %v3360 = vld [vmem:[%s17] sm:$0x1]
    %v3362 = vlaneseq
    %v3363 = vshrl.u32 %v3362, 7
    %v3364 = vsub.s32 0, %v3363
    %v3365 = vrot.slane %v3360, %v3364
    %v3368 = vsel %vm89, %v3354, 0
    %v3371 = vsel %vm89, %v3355, 0
    %3373 = vmatprep.subr.mxu0 0.0
    %3374 = vmatpush1.msra.mxu0 0.0
    %3375 = vmatprep.subr.mxu0 0.0
    %3376 = vmatpush1.msra.mxu0 0.0
    %3377 = vmatprep.subr.mxu0 0.0
    %3378 = vmatpush1.msra.mxu0 0.0
    %3379 = vmatprep.subr.mxu0 0.0
    %3380 = vmatpush1.msra.mxu0 0.0
    %3381 = vmatprep.subr.mxu0 0.0
    %3382 = vmatpush1.msra.mxu0 0.0
    %3383 = vmatprep.subr.mxu0 0.0
    %3384 = vmatpush1.msra.mxu0 0.0
    %3385 = vmatprep.subr.mxu0 0.0
    %3386 = vmatpush1.msra.mxu0 0.0
    %3387 = vmatprep.subr.mxu0 0.0
    %3388 = vmatpush1.msra.mxu0 0.0
    %3389 = vmatprep.subr.mxu0 0.0
    %3390 = vmatpush1.msra.mxu0 0.0
    %3391 = vmatprep.subr.mxu0 0.0
    %3392 = vmatpush1.msra.mxu0 0.0
    %3393 = vmatprep.subr.mxu0 0.0
    %3394 = vmatpush1.msra.mxu0 0.0
    %3395 = vmatprep.subr.mxu0 0.0
    %3396 = vmatpush1.msra.mxu0 0.0
    %3397 = vmatprep.subr.mxu0 0.0
    %3398 = vmatpush1.msra.mxu0 %v3359
    %3399 = vmatprep.subr.mxu0 0.0
    %3400 = vmatpush1.msra.mxu0 %v3358
    %3401 = vmatprep.subr.mxu0 0.0
    %3402 = vmatpush1.msra.mxu0 %v3357
    %3403 = vmatprep.subr.mxu0 0.0
    %3404 = vmatpush1.msra.mxu0 %v3356
    %3405 = vmatprep.subr.mxu0 0.0
    %3406 = vmatpush2.msra.mxu0 0.0
    %3407 = vmatprep.subr.mxu0 0.0
    %3408 = vmatpush2.msra.mxu0 0.0
    %3409 = vmatprep.subr.mxu0 0.0
    %3410 = vmatpush2.msra.mxu0 0.0
    %3411 = vmatprep.subr.mxu0 0.0
    %3412 = vmatpush2.msra.mxu0 0.0
    %3413 = vmatprep.subr.mxu0 0.0
    %3414 = vmatpush2.msra.mxu0 0.0
    %3415 = vmatprep.subr.mxu0 0.0
    %3416 = vmatpush2.msra.mxu0 0.0
    %3417 = vmatprep.subr.mxu0 0.0
    %3418 = vmatpush2.msra.mxu0 0.0
    %3419 = vmatprep.subr.mxu0 0.0
    %3420 = vmatpush2.msra.mxu0 0.0
    %3421 = vmatprep.subr.mxu0 0.0
    %3422 = vmatpush2.msra.mxu0 0.0
    %3423 = vmatprep.subr.mxu0 0.0
    %3424 = vmatpush2.msra.mxu0 0.0
    %3425 = vmatprep.subr.mxu0 0.0
    %3426 = vmatpush2.msra.mxu0 0.0
    %3427 = vmatprep.subr.mxu0 0.0
    %3428 = vmatpush2.msra.mxu0 0.0
    %3429 = vmatprep.subr.mxu0 0.0
    %3430 = vmatpush2.msra.mxu0 0.0
    %3431 = vmatprep.subr.mxu0 0.0
    %3432 = vmatpush2.msra.mxu0 0.0
    %3433 = vmatprep.subr.mxu0 0.0
    %3434 = vmatpush2.msra.mxu0 0.0
    %3435 = vmatprep.subr.mxu0 0.0
    %3436 = vmatpush2.msra.mxu0 0.0
    %3437 = vmatprep.mubr.f32.mxu0 0.0
    %3438 = vmatmul.mubr.f32.gmra.mxu0 %v3368
    %v3439 = vpop.f32.mrf.mxu0
    %v3440 = vadd.f32 %v3365, %v3439
    %v3441 = vpop.f32.mrf.mxu0
    %3442 = vmatprep.mubr.f32.mxu0 0.0
    %3443 = vmatmul.mubr.f32.gmra.mxu0 %v3371
    %v3444 = vpop.f32.mrf.mxu0
    %v3445 = vadd.f32 %v3365, %v3444
    %v3446 = vpop.f32.mrf.mxu0
    %3447 = vdwg.mxu0
    %v3448 = vmax.f32 %v3440, 0.0
    %v3449 = vmax.f32 %v3445, 0.0
    %v3450 = vld [vmem:[%s18] sm:$0xff]
    %v3451 = vld [vmem:[%s18 + $0x8] sm:$0xff]
    %v3452 = vld [vmem:[%s18 + $0x10] sm:$0xff]
    %v3453 = vld [vmem:[%s18 + $0x18] sm:$0xff]
    %v3454 = vld [vmem:[%s18 + $0x20] sm:$0xff]
    %v3455 = vld [vmem:[%s18 + $0x28] sm:$0xff]
    %v3456 = vld [vmem:[%s18 + $0x30] sm:$0xff]
    %v3457 = vld [vmem:[%s18 + $0x38] sm:$0xff]
    %v3458 = vld [vmem:[%s19] sm:$0x1]
    %v3460 = vlaneseq
    %v3461 = vshrl.u32 %v3460, 7
    %v3462 = vsub.s32 0, %v3461
    %v3463 = vrot.slane %v3458, %v3462
    %vm3465 = vcmask 523264
    %v3467 = vsel %vm3465, %v3448, 0
    %v3470 = vsel %vm3465, %v3449, 0
    %3472 = vmatprep.subr.mxu0 0.0
    %3473 = vmatpush1.msra.mxu0 0.0
    %3474 = vmatprep.subr.mxu0 0.0
    %3475 = vmatpush1.msra.mxu0 0.0
    %3476 = vmatprep.subr.mxu0 0.0
    %3477 = vmatpush1.msra.mxu0 0.0
    %3478 = vmatprep.subr.mxu0 0.0
    %3479 = vmatpush1.msra.mxu0 0.0
    %3480 = vmatprep.subr.mxu0 0.0
    %3481 = vmatpush1.msra.mxu0 0.0
    %3482 = vmatprep.subr.mxu0 0.0
    %3483 = vmatpush1.msra.mxu0 0.0
    %3484 = vmatprep.subr.mxu0 0.0
    %3485 = vmatpush1.msra.mxu0 0.0
    %3486 = vmatprep.subr.mxu0 0.0
    %3487 = vmatpush1.msra.mxu0 0.0
    %3488 = vmatprep.subr.mxu0 0.0
    %3489 = vmatpush1.msra.mxu0 %v3457
    %3490 = vmatprep.subr.mxu0 0.0
    %3491 = vmatpush1.msra.mxu0 %v3456
    %3492 = vmatprep.subr.mxu0 0.0
    %3493 = vmatpush1.msra.mxu0 %v3455
    %3494 = vmatprep.subr.mxu0 0.0
    %3495 = vmatpush1.msra.mxu0 %v3454
    %3496 = vmatprep.subr.mxu0 0.0
    %3497 = vmatpush1.msra.mxu0 %v3453
    %3498 = vmatprep.subr.mxu0 0.0
    %3499 = vmatpush1.msra.mxu0 %v3452
    %3500 = vmatprep.subr.mxu0 0.0
    %3501 = vmatpush1.msra.mxu0 %v3451
    %3502 = vmatprep.subr.mxu0 0.0
    %3503 = vmatpush1.msra.mxu0 %v3450
    %3504 = vmatprep.subr.mxu0 0.0
    %3505 = vmatpush2.msra.mxu0 0.0
    %3506 = vmatprep.subr.mxu0 0.0
    %3507 = vmatpush2.msra.mxu0 0.0
    %3508 = vmatprep.subr.mxu0 0.0
    %3509 = vmatpush2.msra.mxu0 0.0
    %3510 = vmatprep.subr.mxu0 0.0
    %3511 = vmatpush2.msra.mxu0 0.0
    %3512 = vmatprep.subr.mxu0 0.0
    %3513 = vmatpush2.msra.mxu0 0.0
    %3514 = vmatprep.subr.mxu0 0.0
    %3515 = vmatpush2.msra.mxu0 0.0
    %3516 = vmatprep.subr.mxu0 0.0
    %3517 = vmatpush2.msra.mxu0 0.0
    %3518 = vmatprep.subr.mxu0 0.0
    %3519 = vmatpush2.msra.mxu0 0.0
    %3520 = vmatprep.subr.mxu0 0.0
    %3521 = vmatpush2.msra.mxu0 0.0
    %3522 = vmatprep.subr.mxu0 0.0
    %3523 = vmatpush2.msra.mxu0 0.0
    %3524 = vmatprep.subr.mxu0 0.0
    %3525 = vmatpush2.msra.mxu0 0.0
    %3526 = vmatprep.subr.mxu0 0.0
    %3527 = vmatpush2.msra.mxu0 0.0
    %3528 = vmatprep.subr.mxu0 0.0
    %3529 = vmatpush2.msra.mxu0 0.0
    %3530 = vmatprep.subr.mxu0 0.0
    %3531 = vmatpush2.msra.mxu0 0.0
    %3532 = vmatprep.subr.mxu0 0.0
    %3533 = vmatpush2.msra.mxu0 0.0
    %3534 = vmatprep.subr.mxu0 0.0
    %3535 = vmatpush2.msra.mxu0 0.0
    %3536 = vmatprep.mubr.f32.mxu0 0.0
    %3537 = vmatmul.mubr.f32.gmra.mxu0 %v3467
    %v3538 = vpop.f32.mrf.mxu0
    %v3539 = vadd.f32 %v3463, %v3538
    %v3540 = vpop.f32.mrf.mxu0
    %3541 = vmatprep.mubr.f32.mxu0 0.0
    %3542 = vmatmul.mubr.f32.gmra.mxu0 %v3470
    %v3543 = vpop.f32.mrf.mxu0
    %v3544 = vadd.f32 %v3463, %v3543
    %v3545 = vpop.f32.mrf.mxu0
    %3546 = vdwg.mxu0
    %v3547 = vadd.f32 %v3539, %v3354
    %v3548 = vadd.f32 %v3544, %v3355
    %v3549 = vld [vmem:[%s20] sm:$0x1]
    %v3550 = vld [vmem:[%s21] sm:$0x1]
    %v3551 = vsel %vm89, %v3547, 0.0
    %3552 = vadd.xlane.f32.xlu0 %v3551
    %v3553 = vpop.xlane.xlu0 %3552
    %v3554 = vsel %vm89, %v3548, 0.0
    %3555 = vadd.xlane.f32.xlu0 %v3554
    %v3556 = vpop.xlane.xlu0 %3555
    %v3557 = vmul.f32 %v3553, %v1633
    %v3558 = vmul.f32 %v3556, %v1633
    %v3559 = vsub.f32 %v3547, %v3557
    %v3560 = vsub.f32 %v3548, %v3558
    %v3561 = vmul.f32 %v3559, %v3559
    %v3562 = vmul.f32 %v3560, %v3560
    %v3563 = vsel %vm89, %v3561, 0.0
    %3564 = vadd.xlane.f32.xlu0 %v3563
    %v3565 = vpop.xlane.xlu0 %3564
    %v3566 = vsel %vm89, %v3562, 0.0
    %3567 = vadd.xlane.f32.xlu0 %v3566
    %v3568 = vpop.xlane.xlu0 %3567
    %v3569 = vmul.f32 %v3565, %v1633
    %v3570 = vmul.f32 %v3568, %v1633
    %v3571 = vadd.f32 %v3569, 1e-05
    %v3572 = vadd.f32 %v3570, 1e-05
    %v3573 = vrsqrt.pop %v3571
    %v3574 = vrsqrt.pop %v3572
    %v3575 = vmul.f32 %v3559, %v3573
    %v3576 = vmul.f32 %v3560, %v3574
    %v3578 = vlaneseq
    %v3579 = vshrl.u32 %v3578, 7
    %v3580 = vsub.s32 0, %v3579
    %v3581 = vrot.slane %v3549, %v3580
    %v3583 = vmul.f32 %v3575, %v3581
    %v3584 = vmul.f32 %v3576, %v3581
    %v3586 = vlaneseq
    %v3587 = vshrl.u32 %v3586, 7
    %v3588 = vsub.s32 0, %v3587
    %v3589 = vrot.slane %v3550, %v3588
    %v3591 = vadd.f32 %v3583, %v3589
    %v3592 = vadd.f32 %v3584, %v3589
    %3593 = vst.msk [vmem:[%s22] sm:$0xff] %vm89, %v3591
    %3594 = vst.msk [vmem:[%s22 + $0x8] sm:$0xff] %vm89, %v3592
    // Predicated region
    $region90: #{decoder_layer_forward.1} parent=1 // pred_check
      _
    $region91: #{decoder_layer_forward.1} parent=1 // pred_check_branch
      %3596 = sbr.rel (0) target = $region93
    $region92: #{decoder_layer_forward.1} parent=1 // pred_region
      _
    $region93: #{decoder_layer_forward.1} parent=1 // pred_fallthru
      _
    // Predicated region
    $region94: #{decoder_layer_forward.1} parent=1 // pred_check
      _
    $region95: #{decoder_layer_forward.1} parent=1 // pred_check_branch
      %3598 = sbr.rel (0) target = $region97
    $region96: #{decoder_layer_forward.1} parent=1 // pred_region
      %s3600 = ssub.s32 256, 256
      %3601 = vsyncadd [#allocation4], %s3600
      %s3602 = sshll.u32 [#allocation3], 4
      %s3603 = int_to_ptr.vmem [resolvable:$true] %s3602
      %3608 = dma.vmem_to_hbm [thread:$0]  %s3603, 256, %s23, [#allocation4], 128, 128, 8
    $region97: #{decoder_layer_forward.1} parent=1 // pred_fallthru
      _
    // Predicated region
    $region98: #{decoder_layer_forward.1} parent=1 // pred_check
      _
    $region99: #{decoder_layer_forward.1} parent=1 // pred_check_branch
      %3610 = sbr.rel (0) target = $region101
    $region100: #{decoder_layer_forward.1} parent=1 // pred_region
      _
    $region101: #{decoder_layer_forward.1} parent=1 // pred_fallthru
      _
    // Predicated region
    $region102: #{decoder_layer_forward.1} parent=1 // pred_check
      _
    $region103: #{decoder_layer_forward.1} parent=1 // pred_check_branch
      %3612 = sbr.rel (0) target = $region105
    $region104: #{decoder_layer_forward.1} parent=1 // pred_region
      %3613 = dma.done [#allocation4], 256
    $region105: #{decoder_layer_forward.1} parent=1 // pred_fallthru
      _
    %3614 = vsyncpa [#allocation4], 1

</llo_original>
